<compile_context>
chip_gen: v7x
topology: tpu7x:2x2x1
jax: 0.10.0
libtpu: 0.0.40
codegen_flags: <defaults>
</compile_context>

<pallas_src>
import functools
import math

import jax
import jax.numpy as jnp
from jax import lax
from jax.experimental import pallas as pl
from jax.experimental.pallas import tpu as pltpu

_LN_EPS = 1e-5


def _erf(z):
    # Abramowitz & Stegun 7.1.26, |abs err| <= 1.5e-7 (numerically exact relative to
    # bf16 matmul noise); avoids relying on an erf lowering inside Mosaic.
    p = 0.3275911
    a1, a2, a3, a4, a5 = (0.254829592, -0.284496736, 1.421413741,
                          -1.453152027, 1.061405429)
    az = jnp.abs(z)
    t = 1.0 / (1.0 + p * az)
    poly = t * (a1 + t * (a2 + t * (a3 + t * (a4 + t * a5))))
    e = 1.0 - poly * jnp.exp(-az * az)
    return jnp.where(z < 0.0, -e, e)


def _gelu(x):
    # torch.nn.functional.gelu default (exact, erf-based) semantics.
    # TODO(synk): a tanh-approximate GELU would move work to the idle EUP slot but
    # diverges from torch's default; kept exact.
    return 0.5 * x * (1.0 + _erf(x * (1.0 / math.sqrt(2.0))))


def _layer_norm(x, gamma, beta):
    mu = jnp.mean(x, axis=-1, keepdims=True)
    xc = x - mu
    var = jnp.mean(xc * xc, axis=-1, keepdims=True)
    return xc * lax.rsqrt(var + _LN_EPS) * gamma + beta


def _softmax_last(x):
    m = jnp.max(x, axis=-1, keepdims=True)
    e = jnp.exp(x - m)
    return e * pl.reciprocal(jnp.sum(e, axis=-1, keepdims=True), approx=False)


def temporal_encoder_kernel(
    x_ref, pe_ref, wemb_ref,
    wqkv_ref, bqkv_ref, wo_ref, bo_ref, ln1g_ref, ln1b_ref,
    w1_ref, b1_ref, w2_ref, b2_ref, ln2g_ref, ln2b_ref,
    wp1_ref, bp1_ref, wp2_ref,
    out_ref,
    *, num_layers, num_heads, head_dim, block_batch, seq_len,
):
    H = num_heads * head_dim
    R = block_batch * seq_len
    scale = 1.0 / math.sqrt(head_dim)
    bf16 = jnp.bfloat16

    # feature embedding; pe_ref already holds (embedding bias + positional encoding)
    # pre-tiled to the [R, H] row layout of this batch tile.  Dropouts = identity (eval).
    h = jnp.dot(x_ref[...].astype(bf16), wemb_ref[...],
                preferred_element_type=jnp.float32) + pe_ref[...]           # [R, H] f32

    def layer_step(l, h):
        wqkv = wqkv_ref[l]
        wo = wo_ref[l]
        w1 = w1_ref[l]
        w2 = w2_ref[l]

        # fused QKV projection over the whole batch tile (single MXU pass, bf16 operands)
        qkv = jnp.dot(h.astype(bf16), wqkv,
                      preferred_element_type=jnp.float32) + bqkv_ref[l]     # [R, 3H]

        # multi-head self-attention, batched over the batch tile per head.
        # concat(heads) @ Wo is folded into per-head [R, hd] @ Wo[head rows] matmuls.
        # TODO(synk): for production head_dim % 128 == 0, assemble heads into one
        # lane-aligned [R, H] panel and use a single K=H output projection instead.
        attn = None
        for hh in range(num_heads):
            lo = hh * head_dim
            q = qkv[:, lo:lo + head_dim].reshape(block_batch, seq_len, head_dim)
            k = qkv[:, H + lo:H + lo + head_dim].reshape(block_batch, seq_len, head_dim)
            v = qkv[:, 2 * H + lo:2 * H + lo + head_dim].reshape(
                block_batch, seq_len, head_dim)
            sc = jnp.einsum("bqd,bkd->bqk", q.astype(bf16), k.astype(bf16),
                            preferred_element_type=jnp.float32) * scale     # [bb,S,S]
            p = _softmax_last(sc)
            o = jnp.einsum("bqk,bkd->bqd", p.astype(bf16), v.astype(bf16),
                           preferred_element_type=jnp.float32)              # [bb,S,hd]
            contrib = jnp.dot(o.reshape(R, head_dim).astype(bf16),
                              wo[lo:lo + head_dim, :],
                              preferred_element_type=jnp.float32)            # [R, H]
            attn = contrib if attn is None else attn + contrib
        attn = attn + bo_ref[l]

        h = _layer_norm(h + attn, ln1g_ref[l], ln1b_ref[l])

        ffh = _gelu(jnp.dot(h.astype(bf16), w1,
                            preferred_element_type=jnp.float32) + b1_ref[l])
        ff = jnp.dot(ffh.astype(bf16), w2,
                     preferred_element_type=jnp.float32) + b2_ref[l]
        return _layer_norm(h + ff, ln2g_ref[l], ln2b_ref[l])

    if num_layers <= 4:
        for l in range(num_layers):            # tiny L: static unroll
            h = layer_step(l, h)
    else:                                      # larger L: bounded code size/live ranges
        h = lax.fori_loop(0, num_layers, layer_step, h)

    # ---- temporal attention pooling ----
    a = _gelu(jnp.dot(h.astype(bf16), wp1_ref[...],
                      preferred_element_type=jnp.float32) + bp1_ref[...])    # [R, H/2]
    # wp2 projects to a single column -> VPU reduction instead of an N=1 MXU pass.
    # The scalar logit bias bp2 is invariant under the per-sequence softmax (dropped).
    logits = jnp.sum(a * wp2_ref[...], axis=-1, keepdims=True)               # [R, 1]
    lg = logits.reshape(block_batch, seq_len, 1)
    m = jnp.max(lg, axis=1, keepdims=True)
    e = jnp.exp(lg - m)
    w = e * pl.reciprocal(jnp.sum(e, axis=1, keepdims=True), approx=False)   # [bb,S,1]
    h3 = h.reshape(block_batch, seq_len, H)
    out_ref[...] = jnp.sum(h3 * w, axis=1)                                   # [bb, H]


def make_positional_encoding(max_len, d_model):
    pos = jnp.arange(max_len, dtype=jnp.float32)[:, None]
    div = jnp.exp(jnp.arange(0, d_model, 2, dtype=jnp.float32)
                  * (-math.log(10000.0) / d_model))
    pe = jnp.zeros((max_len, d_model), jnp.float32)
    pe = pe.at[:, 0::2].set(jnp.sin(pos * div))
    pe = pe.at[:, 1::2].set(jnp.cos(pos * div))
    return pe


def init_params(key, feature_dim, hidden_dim, num_layers):
    F, H, L = feature_dim, hidden_dim, num_layers
    keys = iter(jax.random.split(key, 24))

    def w(shape, fan_in):
        return jax.random.normal(next(keys), shape, jnp.float32) / math.sqrt(fan_in)

    def b(shape):
        return 0.02 * jax.random.normal(next(keys), shape, jnp.float32)

    def ln_g(shape):
        return 1.0 + 0.05 * jax.random.normal(next(keys), shape, jnp.float32)

    def ln_b(shape):
        return 0.05 * jax.random.normal(next(keys), shape, jnp.float32)

    return dict(
        wemb=w((F, H), F), bemb=b((1, H)),
        wqkv=w((L, H, 3 * H), H), bqkv=b((L, 1, 3 * H)),
        wo=w((L, H, H), H), bo=b((L, 1, H)),
        ln1g=ln_g((L, 1, H)), ln1b=ln_b((L, 1, H)),
        w1=w((L, H, 4 * H), H), b1=b((L, 1, 4 * H)),
        w2=w((L, 4 * H, H), 4 * H), b2=b((L, 1, H)),
        ln2g=ln_g((L, 1, H)), ln2b=ln_b((L, 1, H)),
        wp1=w((H, H // 2), H), bp1=b((1, H // 2)),
        wp2=w((H // 2, 1), H // 2), bp2=b((1, 1)),
    )


def temporal_encoder_forward(x, params, pe, *, num_heads, block_batch=None):
    B, S, F = x.shape
    H = params["wemb"].shape[1]
    L = params["wqkv"].shape[0]
    head_dim = H // num_heads
    assert head_dim * num_heads == H

    # Batch tiling: aim for >= 128 LHS rows (block_batch * S) per grid step.
    # (On v7x keep the number of tiles >= 2 so both TensorCores get work.)
    if block_batch is None:
        target = max(1, pl.cdiv(128, S))
        block_batch = B if B <= target else max(8, (target // 8) * 8)
    b_pad = pl.cdiv(B, block_batch) * block_batch
    if b_pad != B:
        x = jnp.concatenate([x, jnp.zeros((b_pad - B, S, F), x.dtype)], axis=0)
    num_tiles = b_pad // block_batch
    R = block_batch * S

    bf16 = jnp.bfloat16
    x2 = x.reshape(b_pad * S, F).astype(jnp.float32)
    # embedding bias + positional encoding, pre-tiled to the [R, H] batch-tile layout
    pe_bias = jnp.tile(pe[:S] + params["bemb"], (block_batch, 1)).astype(jnp.float32)
    wp2_row = params["wp2"].reshape(1, H // 2).astype(jnp.float32)

    args = (
        x2, pe_bias, params["wemb"].astype(bf16),
        params["wqkv"].astype(bf16), params["bqkv"],
        params["wo"].astype(bf16), params["bo"],
        params["ln1g"], params["ln1b"],
        params["w1"].astype(bf16), params["b1"],
        params["w2"].astype(bf16), params["b2"],
        params["ln2g"], params["ln2b"],
        params["wp1"].astype(bf16), params["bp1"], wp2_row,
    )

    def rep(a):
        nd = a.ndim
        return pl.BlockSpec(a.shape, lambda b, _nd=nd: (0,) * _nd)

    in_specs = [pl.BlockSpec((R, F), lambda b: (b, 0))] + [rep(a) for a in args[1:]]

    kernel = functools.partial(
        temporal_encoder_kernel,
        num_layers=L, num_heads=num_heads, head_dim=head_dim,
        block_batch=block_batch, seq_len=S,
    )

    # All layer weights stay VMEM-resident (fine at small/medium L*H^2); raise the
    # scoped VMEM limit past the 16/32 MiB defaults, capped at v7x's 64 MiB physical.
    # TODO(synk): for large L*H^2 stream layer weights via an inner "arbitrary" layer
    # grid axis (per-layer index_map) instead of keeping them all resident.
    resident_bytes = sum(int(a.size) * a.dtype.itemsize for a in args)
    vmem_limit = int(min(64 * 2 ** 20, max(32 * 2 ** 20, 4 * resident_bytes)))

    flops_layer = (2 * R * H * 3 * H
                   + num_heads * (4 * block_batch * S * S * head_dim)
                   + 2 * R * H * H
                   + 2 * R * H * 4 * H + 2 * R * 4 * H * H)
    flops = num_tiles * (2 * R * F * H + L * flops_layer + 2 * R * H * (H // 2))
    transcendentals = num_tiles * (L * (num_heads * block_batch * S * S + R * 5 * H)
                                   + R * (H // 2) + R)
    bytes_accessed = (4 * (int(x2.size) + b_pad * H)
                      + num_tiles * sum(int(a.size) * a.dtype.itemsize
                                        for a in args[1:]))

    out = pl.pallas_call(
        kernel,
        grid=(num_tiles,),
        in_specs=in_specs,
        out_specs=pl.BlockSpec((block_batch, H), lambda b: (b, 0)),
        out_shape=jax.ShapeDtypeStruct((b_pad, H), jnp.float32),
        compiler_params=pltpu.CompilerParams(
            dimension_semantics=("parallel",),
            vmem_limit_bytes=vmem_limit),
        cost_estimate=pl.CostEstimate(
            flops=int(flops), transcendentals=int(transcendentals),
            bytes_accessed=int(bytes_accessed)),
    )(*args)
    return out[:B]


def temporal_encoder_reference(x, params, pe, num_heads, matmul_dtype=jnp.float32):
    """Pure-JAX reference of the PyTorch TemporalEncoder forward (eval mode).

    matmul_dtype controls the matmul *operand* precision (accumulation always f32),
    so the kernel's bf16-operand MXU policy can be verified with a tight tolerance.
    """
    B, S, F = x.shape
    H = params["wemb"].shape[1]
    L = params["wqkv"].shape[0]
    hd = H // num_heads
    md = matmul_dtype

    def mm(a, b):
        return jnp.matmul(a.astype(md), b.astype(md),
                          preferred_element_type=jnp.float32)

    def gelu(z):
        return 0.5 * z * (1.0 + lax.erf(z / math.sqrt(2.0)))

    def layer_norm(z, g, bb):
        mu = jnp.mean(z, axis=-1, keepdims=True)
        var = jnp.mean((z - mu) ** 2, axis=-1, keepdims=True)
        return (z - mu) / jnp.sqrt(var + _LN_EPS) * g + bb

    h = mm(x, params["wemb"]) + params["bemb"] + pe[None, :S, :]
    for l in range(L):
        qkv = mm(h, params["wqkv"][l]) + params["bqkv"][l]
        q, k, v = qkv[..., :H], qkv[..., H:2 * H], qkv[..., 2 * H:]

        def heads(t):
            return jnp.transpose(t.reshape(B, S, num_heads, hd), (0, 2, 1, 3))

        qh, kh, vh = heads(q), heads(k), heads(v)
        sc = jnp.einsum("bhqd,bhkd->bhqk", qh.astype(md), kh.astype(md),
                        preferred_element_type=jnp.float32) / math.sqrt(hd)
        pr = jax.nn.softmax(sc, axis=-1)
        o = jnp.einsum("bhqk,bhkd->bhqd", pr.astype(md), vh.astype(md),
                       preferred_element_type=jnp.float32)
        o = jnp.transpose(o, (0, 2, 1, 3)).reshape(B, S, H)
        o = mm(o, params["wo"][l]) + params["bo"][l]
        h = layer_norm(h + o, params["ln1g"][l], params["ln1b"][l])
        ff = mm(gelu(mm(h, params["w1"][l]) + params["b1"][l]),
                params["w2"][l]) + params["b2"][l]
        h = layer_norm(h + ff, params["ln2g"][l], params["ln2b"][l])

    a = gelu(mm(h, params["wp1"]) + params["bp1"])
    logits = jnp.matmul(a, params["wp2"],
                        preferred_element_type=jnp.float32) + params["bp2"]
    w = jax.nn.softmax(logits, axis=1)
    return jnp.sum(h * w, axis=1)


if __name__ == "__main__":
    B, S, FEAT, HID, NHEAD, NLAYER = 2, 8, 16, 32, 4, 2
    MAX_LEN = 16

    key = jax.random.PRNGKey(0)
    k_x, k_p = jax.random.split(key)
    x = jax.random.normal(k_x, (B, S, FEAT), jnp.float32)
    params = init_params(k_p, FEAT, HID, NLAYER)
    pe = make_positional_encoding(MAX_LEN, HID)

    out = jax.block_until_ready(
        temporal_encoder_forward(x, params, pe, num_heads=NHEAD))
    assert out.shape == (B, HID), out.shape

    with jax.default_matmul_precision("highest"):
        ref_bf16 = jax.block_until_ready(
            temporal_encoder_reference(x, params, pe, NHEAD,
                                       matmul_dtype=jnp.bfloat16))
        ref_f32 = jax.block_until_ready(
            temporal_encoder_reference(x, params, pe, NHEAD,
                                       matmul_dtype=jnp.float32))

    err_strict = float(jnp.max(jnp.abs(out - ref_bf16)))
    assert jnp.allclose(out, ref_bf16, atol=5e-3, rtol=5e-3), (
        f"mismatch vs bf16-operand reference (max abs err {err_strict})")

    err_loose = float(jnp.max(jnp.abs(out - ref_f32)))
    assert jnp.allclose(out, ref_f32, atol=1e-1, rtol=1e-1), (
        f"mismatch vs f32 reference (max abs err {err_loose})")

    print("KERNEL_OK")
</pallas_src>

<mosaic_0001>
module attributes {stable_mosaic.version = 11 : i64} {
  func.func @temporal_encoder_kernel(%arg0: i32, %arg1: memref<16x16xf32, #tpu.memory_space<vmem>>, %arg2: memref<16x32xf32, #tpu.memory_space<vmem>>, %arg3: memref<16x32xbf16, #tpu.memory_space<vmem>>, %arg4: memref<2x32x96xbf16, #tpu.memory_space<vmem>>, %arg5: memref<2x1x96xf32, #tpu.memory_space<vmem>>, %arg6: memref<2x32x32xbf16, #tpu.memory_space<vmem>>, %arg7: memref<2x1x32xf32, #tpu.memory_space<vmem>>, %arg8: memref<2x1x32xf32, #tpu.memory_space<vmem>>, %arg9: memref<2x1x32xf32, #tpu.memory_space<vmem>>, %arg10: memref<2x32x128xbf16, #tpu.memory_space<vmem>>, %arg11: memref<2x1x128xf32, #tpu.memory_space<vmem>>, %arg12: memref<2x128x32xbf16, #tpu.memory_space<vmem>>, %arg13: memref<2x1x32xf32, #tpu.memory_space<vmem>>, %arg14: memref<2x1x32xf32, #tpu.memory_space<vmem>>, %arg15: memref<2x1x32xf32, #tpu.memory_space<vmem>>, %arg16: memref<32x16xbf16, #tpu.memory_space<vmem>>, %arg17: memref<1x16xf32, #tpu.memory_space<vmem>>, %arg18: memref<1x16xf32, #tpu.memory_space<vmem>>, %arg19: memref<2x32xf32, #tpu.memory_space<vmem>>) attributes {dimension_semantics = [#tpu.dimension_semantics<parallel>], iteration_bounds = array<i64: 1>, scalar_prefetch = 0 : i64, scratch_operands = 0 : i64, tpu.core_type = #tpu.core_type<tc>, window_params = [{transform_indices = @transform_0, window_bounds = array<i64: 16, 16>}, {pipeline_mode = #tpu.pipeline_mode<synchronous>, transform_indices = @transform_1, window_bounds = array<i64: 16, 32>}, {pipeline_mode = #tpu.pipeline_mode<synchronous>, transform_indices = @transform_2, window_bounds = array<i64: 16, 32>}, {pipeline_mode = #tpu.pipeline_mode<synchronous>, transform_indices = @transform_3, window_bounds = array<i64: 2, 32, 96>}, {pipeline_mode = #tpu.pipeline_mode<synchronous>, transform_indices = @transform_4, window_bounds = array<i64: 2, 1, 96>}, {pipeline_mode = #tpu.pipeline_mode<synchronous>, transform_indices = @transform_5, window_bounds = array<i64: 2, 32, 32>}, {pipeline_mode = #tpu.pipeline_mode<synchronous>, transform_indices = @transform_6, window_bounds = array<i64: 2, 1, 32>}, {pipeline_mode = #tpu.pipeline_mode<synchronous>, transform_indices = @transform_7, window_bounds = array<i64: 2, 1, 32>}, {pipeline_mode = #tpu.pipeline_mode<synchronous>, transform_indices = @transform_8, window_bounds = array<i64: 2, 1, 32>}, {pipeline_mode = #tpu.pipeline_mode<synchronous>, transform_indices = @transform_9, window_bounds = array<i64: 2, 32, 128>}, {pipeline_mode = #tpu.pipeline_mode<synchronous>, transform_indices = @transform_10, window_bounds = array<i64: 2, 1, 128>}, {pipeline_mode = #tpu.pipeline_mode<synchronous>, transform_indices = @transform_11, window_bounds = array<i64: 2, 128, 32>}, {pipeline_mode = #tpu.pipeline_mode<synchronous>, transform_indices = @transform_12, window_bounds = array<i64: 2, 1, 32>}, {pipeline_mode = #tpu.pipeline_mode<synchronous>, transform_indices = @transform_13, window_bounds = array<i64: 2, 1, 32>}, {pipeline_mode = #tpu.pipeline_mode<synchronous>, transform_indices = @transform_14, window_bounds = array<i64: 2, 1, 32>}, {pipeline_mode = #tpu.pipeline_mode<synchronous>, transform_indices = @transform_15, window_bounds = array<i64: 32, 16>}, {pipeline_mode = #tpu.pipeline_mode<synchronous>, transform_indices = @transform_16, window_bounds = array<i64: 1, 16>}, {pipeline_mode = #tpu.pipeline_mode<synchronous>, transform_indices = @transform_17, window_bounds = array<i64: 1, 16>}, {transform_indices = @transform_18, window_bounds = array<i64: 2, 32>}]} {
    %c0 = arith.constant 0 : index
    %c0_0 = arith.constant 0 : index
    %0 = vector.load %arg1[%c0, %c0_0] : memref<16x16xf32, #tpu.memory_space<vmem>>, vector<16x16xf32>
    %1 = arith.truncf %0 : vector<16x16xf32> to vector<16x16xbf16>
    %c0_1 = arith.constant 0 : index
    %c0_2 = arith.constant 0 : index
    %2 = vector.load %arg3[%c0_1, %c0_2] : memref<16x32xbf16, #tpu.memory_space<vmem>>, vector<16x32xbf16>
    %cst = arith.constant dense<0.000000e+00> : vector<16x32xf32>
    %3 = tpu.matmul %1, %2, %cst {dimension_numbers = #tpu.dot_dimension_numbers<[1], [0], [0], [1], [0, 0, 1, 1], [], []>} : vector<16x16xbf16>, vector<16x32xbf16>, vector<16x32xf32> -> vector<16x32xf32>
    %c0_3 = arith.constant 0 : index
    %c0_4 = arith.constant 0 : index
    %4 = vector.load %arg2[%c0_3, %c0_4] : memref<16x32xf32, #tpu.memory_space<vmem>>, vector<16x32xf32>
    %5 = arith.addf %3, %4 : vector<16x32xf32>
    %c0_5 = arith.constant 0 : index
    %c0_6 = arith.constant 0 : index
    %c0_7 = arith.constant 0 : index
    %6 = vector.load %arg4[%c0_5, %c0_6, %c0_7] : memref<2x32x96xbf16, #tpu.memory_space<vmem>>, vector<1x32x96xbf16>
    %7 = vector.shape_cast %6 : vector<1x32x96xbf16> to vector<32x96xbf16>
    %c0_8 = arith.constant 0 : index
    %c0_9 = arith.constant 0 : index
    %c0_10 = arith.constant 0 : index
    %8 = vector.load %arg6[%c0_8, %c0_9, %c0_10] : memref<2x32x32xbf16, #tpu.memory_space<vmem>>, vector<1x32x32xbf16>
    %9 = vector.shape_cast %8 : vector<1x32x32xbf16> to vector<32x32xbf16>
    %c0_11 = arith.constant 0 : index
    %c0_12 = arith.constant 0 : index
    %c0_13 = arith.constant 0 : index
    %10 = vector.load %arg10[%c0_11, %c0_12, %c0_13] : memref<2x32x128xbf16, #tpu.memory_space<vmem>>, vector<1x32x128xbf16>
    %11 = vector.shape_cast %10 : vector<1x32x128xbf16> to vector<32x128xbf16>
    %c0_14 = arith.constant 0 : index
    %c0_15 = arith.constant 0 : index
    %c0_16 = arith.constant 0 : index
    %12 = vector.load %arg12[%c0_14, %c0_15, %c0_16] : memref<2x128x32xbf16, #tpu.memory_space<vmem>>, vector<1x128x32xbf16>
    %13 = vector.shape_cast %12 : vector<1x128x32xbf16> to vector<128x32xbf16>
    %14 = arith.truncf %5 : vector<16x32xf32> to vector<16x32xbf16>
    %cst_17 = arith.constant dense<0.000000e+00> : vector<16x96xf32>
    %15 = tpu.matmul %14, %7, %cst_17 {dimension_numbers = #tpu.dot_dimension_numbers<[1], [0], [0], [1], [0, 0, 1, 1], [], []>} : vector<16x32xbf16>, vector<32x96xbf16>, vector<16x96xf32> -> vector<16x96xf32>
    %c0_18 = arith.constant 0 : index
    %c0_19 = arith.constant 0 : index
    %c0_20 = arith.constant 0 : index
    %16 = vector.load %arg5[%c0_18, %c0_19, %c0_20] : memref<2x1x96xf32, #tpu.memory_space<vmem>>, vector<1x1x96xf32>
    %17 = vector.shape_cast %16 : vector<1x1x96xf32> to vector<1x96xf32>
    %18 = vector.broadcast %17 : vector<1x96xf32> to vector<16x96xf32>
    %19 = arith.addf %15, %18 : vector<16x96xf32>
    %20 = vector.extract_strided_slice %19 {offsets = [0, 0], sizes = [16, 8], strides = [1, 1]} : vector<16x96xf32> to vector<16x8xf32>
    %21 = vector.shape_cast %20 : vector<16x8xf32> to vector<2x8x8xf32>
    %22 = vector.extract_strided_slice %19 {offsets = [0, 32], sizes = [16, 8], strides = [1, 1]} : vector<16x96xf32> to vector<16x8xf32>
    %23 = vector.shape_cast %22 : vector<16x8xf32> to vector<2x8x8xf32>
    %24 = vector.extract_strided_slice %19 {offsets = [0, 64], sizes = [16, 8], strides = [1, 1]} : vector<16x96xf32> to vector<16x8xf32>
    %25 = vector.shape_cast %24 : vector<16x8xf32> to vector<2x8x8xf32>
    %26 = arith.truncf %21 : vector<2x8x8xf32> to vector<2x8x8xbf16>
    %27 = arith.truncf %23 : vector<2x8x8xf32> to vector<2x8x8xbf16>
    "tpu.trace_start"() <{level = 10 : i32, message = "bqd,bkd->bqk"}> : () -> ()
    %cst_21 = arith.constant dense<0.000000e+00> : vector<2x8x8xf32>
    %28 = tpu.matmul %26, %27, %cst_21 {dimension_numbers = #tpu.dot_dimension_numbers<[2], [2], [1], [1], [0, 0, 0, 1, 1, 1], [0], [0]>} : vector<2x8x8xbf16>, vector<2x8x8xbf16>, vector<2x8x8xf32> -> vector<2x8x8xf32>
    "tpu.trace_stop"() : () -> ()
    %cst_22 = arith.constant 0.353553385 : f32
    %29 = vector.broadcast %cst_22 : f32 to vector<2x8x8xf32>
    %30 = arith.mulf %28, %29 : vector<2x8x8xf32>
    %cst_23 = arith.constant dense<0xFF800000> : vector<2x8xf32>
    %31 = vector.multi_reduction <maximumf>, %30, %cst_23 [2] : vector<2x8x8xf32> to vector<2x8xf32>
    %32 = vector.shape_cast %31 : vector<2x8xf32> to vector<2x8x1xf32>
    %33 = vector.broadcast %32 : vector<2x8x1xf32> to vector<2x8x8xf32>
    %34 = arith.subf %30, %33 : vector<2x8x8xf32>
    %35 = math.exp %34 : vector<2x8x8xf32>
    %cst_24 = arith.constant dense<0.000000e+00> : vector<2x8xf32>
    %36 = vector.multi_reduction <add>, %35, %cst_24 [2] : vector<2x8x8xf32> to vector<2x8xf32>
    %37 = vector.shape_cast %36 : vector<2x8xf32> to vector<2x8x1xf32>
    %38 = tpu.reciprocal %37 : vector<2x8x1xf32> -> vector<2x8x1xf32>
    %39 = vector.broadcast %38 : vector<2x8x1xf32> to vector<2x8x8xf32>
    %40 = arith.mulf %35, %39 : vector<2x8x8xf32>
    %41 = arith.truncf %40 : vector<2x8x8xf32> to vector<2x8x8xbf16>
    %42 = arith.truncf %25 : vector<2x8x8xf32> to vector<2x8x8xbf16>
    "tpu.trace_start"() <{level = 10 : i32, message = "bqk,bkd->bqd"}> : () -> ()
    %cst_25 = arith.constant dense<0.000000e+00> : vector<2x8x8xf32>
    %43 = tpu.matmul %41, %42, %cst_25 {dimension_numbers = #tpu.dot_dimension_numbers<[2], [1], [1], [2], [0, 0, 0, 1, 1, 2], [0], [0]>} : vector<2x8x8xbf16>, vector<2x8x8xbf16>, vector<2x8x8xf32> -> vector<2x8x8xf32>
    "tpu.trace_stop"() : () -> ()
    %44 = vector.shape_cast %43 : vector<2x8x8xf32> to vector<16x8xf32>
    %45 = arith.truncf %44 : vector<16x8xf32> to vector<16x8xbf16>
    %46 = vector.extract_strided_slice %9 {offsets = [0, 0], sizes = [8, 32], strides = [1, 1]} : vector<32x32xbf16> to vector<8x32xbf16>
    %cst_26 = arith.constant dense<0.000000e+00> : vector<16x32xf32>
    %47 = tpu.matmul %45, %46, %cst_26 {dimension_numbers = #tpu.dot_dimension_numbers<[1], [0], [0], [1], [0, 0, 1, 1], [], []>} : vector<16x8xbf16>, vector<8x32xbf16>, vector<16x32xf32> -> vector<16x32xf32>
    %48 = vector.extract_strided_slice %19 {offsets = [0, 8], sizes = [16, 8], strides = [1, 1]} : vector<16x96xf32> to vector<16x8xf32>
    %49 = vector.shape_cast %48 : vector<16x8xf32> to vector<2x8x8xf32>
    %50 = vector.extract_strided_slice %19 {offsets = [0, 40], sizes = [16, 8], strides = [1, 1]} : vector<16x96xf32> to vector<16x8xf32>
    %51 = vector.shape_cast %50 : vector<16x8xf32> to vector<2x8x8xf32>
    %52 = vector.extract_strided_slice %19 {offsets = [0, 72], sizes = [16, 8], strides = [1, 1]} : vector<16x96xf32> to vector<16x8xf32>
    %53 = vector.shape_cast %52 : vector<16x8xf32> to vector<2x8x8xf32>
    %54 = arith.truncf %49 : vector<2x8x8xf32> to vector<2x8x8xbf16>
    %55 = arith.truncf %51 : vector<2x8x8xf32> to vector<2x8x8xbf16>
    "tpu.trace_start"() <{level = 10 : i32, message = "bqd,bkd->bqk"}> : () -> ()
    %cst_27 = arith.constant dense<0.000000e+00> : vector<2x8x8xf32>
    %56 = tpu.matmul %54, %55, %cst_27 {dimension_numbers = #tpu.dot_dimension_numbers<[2], [2], [1], [1], [0, 0, 0, 1, 1, 1], [0], [0]>} : vector<2x8x8xbf16>, vector<2x8x8xbf16>, vector<2x8x8xf32> -> vector<2x8x8xf32>
    "tpu.trace_stop"() : () -> ()
    %cst_28 = arith.constant 0.353553385 : f32
    %57 = vector.broadcast %cst_28 : f32 to vector<2x8x8xf32>
    %58 = arith.mulf %56, %57 : vector<2x8x8xf32>
    %cst_29 = arith.constant dense<0xFF800000> : vector<2x8xf32>
    %59 = vector.multi_reduction <maximumf>, %58, %cst_29 [2] : vector<2x8x8xf32> to vector<2x8xf32>
    %60 = vector.shape_cast %59 : vector<2x8xf32> to vector<2x8x1xf32>
    %61 = vector.broadcast %60 : vector<2x8x1xf32> to vector<2x8x8xf32>
    %62 = arith.subf %58, %61 : vector<2x8x8xf32>
    %63 = math.exp %62 : vector<2x8x8xf32>
    %cst_30 = arith.constant dense<0.000000e+00> : vector<2x8xf32>
    %64 = vector.multi_reduction <add>, %63, %cst_30 [2] : vector<2x8x8xf32> to vector<2x8xf32>
    %65 = vector.shape_cast %64 : vector<2x8xf32> to vector<2x8x1xf32>
    %66 = tpu.reciprocal %65 : vector<2x8x1xf32> -> vector<2x8x1xf32>
    %67 = vector.broadcast %66 : vector<2x8x1xf32> to vector<2x8x8xf32>
    %68 = arith.mulf %63, %67 : vector<2x8x8xf32>
    %69 = arith.truncf %68 : vector<2x8x8xf32> to vector<2x8x8xbf16>
    %70 = arith.truncf %53 : vector<2x8x8xf32> to vector<2x8x8xbf16>
    "tpu.trace_start"() <{level = 10 : i32, message = "bqk,bkd->bqd"}> : () -> ()
    %cst_31 = arith.constant dense<0.000000e+00> : vector<2x8x8xf32>
    %71 = tpu.matmul %69, %70, %cst_31 {dimension_numbers = #tpu.dot_dimension_numbers<[2], [1], [1], [2], [0, 0, 0, 1, 1, 2], [0], [0]>} : vector<2x8x8xbf16>, vector<2x8x8xbf16>, vector<2x8x8xf32> -> vector<2x8x8xf32>
    "tpu.trace_stop"() : () -> ()
    %72 = vector.shape_cast %71 : vector<2x8x8xf32> to vector<16x8xf32>
    %73 = arith.truncf %72 : vector<16x8xf32> to vector<16x8xbf16>
    %74 = vector.extract_strided_slice %9 {offsets = [8, 0], sizes = [8, 32], strides = [1, 1]} : vector<32x32xbf16> to vector<8x32xbf16>
    %cst_32 = arith.constant dense<0.000000e+00> : vector<16x32xf32>
    %75 = tpu.matmul %73, %74, %cst_32 {dimension_numbers = #tpu.dot_dimension_numbers<[1], [0], [0], [1], [0, 0, 1, 1], [], []>} : vector<16x8xbf16>, vector<8x32xbf16>, vector<16x32xf32> -> vector<16x32xf32>
    %76 = arith.addf %47, %75 : vector<16x32xf32>
    %77 = vector.extract_strided_slice %19 {offsets = [0, 16], sizes = [16, 8], strides = [1, 1]} : vector<16x96xf32> to vector<16x8xf32>
    %78 = vector.shape_cast %77 : vector<16x8xf32> to vector<2x8x8xf32>
    %79 = vector.extract_strided_slice %19 {offsets = [0, 48], sizes = [16, 8], strides = [1, 1]} : vector<16x96xf32> to vector<16x8xf32>
    %80 = vector.shape_cast %79 : vector<16x8xf32> to vector<2x8x8xf32>
    %81 = vector.extract_strided_slice %19 {offsets = [0, 80], sizes = [16, 8], strides = [1, 1]} : vector<16x96xf32> to vector<16x8xf32>
    %82 = vector.shape_cast %81 : vector<16x8xf32> to vector<2x8x8xf32>
    %83 = arith.truncf %78 : vector<2x8x8xf32> to vector<2x8x8xbf16>
    %84 = arith.truncf %80 : vector<2x8x8xf32> to vector<2x8x8xbf16>
    "tpu.trace_start"() <{level = 10 : i32, message = "bqd,bkd->bqk"}> : () -> ()
    %cst_33 = arith.constant dense<0.000000e+00> : vector<2x8x8xf32>
    %85 = tpu.matmul %83, %84, %cst_33 {dimension_numbers = #tpu.dot_dimension_numbers<[2], [2], [1], [1], [0, 0, 0, 1, 1, 1], [0], [0]>} : vector<2x8x8xbf16>, vector<2x8x8xbf16>, vector<2x8x8xf32> -> vector<2x8x8xf32>
    "tpu.trace_stop"() : () -> ()
    %cst_34 = arith.constant 0.353553385 : f32
    %86 = vector.broadcast %cst_34 : f32 to vector<2x8x8xf32>
    %87 = arith.mulf %85, %86 : vector<2x8x8xf32>
    %cst_35 = arith.constant dense<0xFF800000> : vector<2x8xf32>
    %88 = vector.multi_reduction <maximumf>, %87, %cst_35 [2] : vector<2x8x8xf32> to vector<2x8xf32>
    %89 = vector.shape_cast %88 : vector<2x8xf32> to vector<2x8x1xf32>
    %90 = vector.broadcast %89 : vector<2x8x1xf32> to vector<2x8x8xf32>
    %91 = arith.subf %87, %90 : vector<2x8x8xf32>
    %92 = math.exp %91 : vector<2x8x8xf32>
    %cst_36 = arith.constant dense<0.000000e+00> : vector<2x8xf32>
    %93 = vector.multi_reduction <add>, %92, %cst_36 [2] : vector<2x8x8xf32> to vector<2x8xf32>
    %94 = vector.shape_cast %93 : vector<2x8xf32> to vector<2x8x1xf32>
    %95 = tpu.reciprocal %94 : vector<2x8x1xf32> -> vector<2x8x1xf32>
    %96 = vector.broadcast %95 : vector<2x8x1xf32> to vector<2x8x8xf32>
    %97 = arith.mulf %92, %96 : vector<2x8x8xf32>
    %98 = arith.truncf %97 : vector<2x8x8xf32> to vector<2x8x8xbf16>
    %99 = arith.truncf %82 : vector<2x8x8xf32> to vector<2x8x8xbf16>
    "tpu.trace_start"() <{level = 10 : i32, message = "bqk,bkd->bqd"}> : () -> ()
    %cst_37 = arith.constant dense<0.000000e+00> : vector<2x8x8xf32>
    %100 = tpu.matmul %98, %99, %cst_37 {dimension_numbers = #tpu.dot_dimension_numbers<[2], [1], [1], [2], [0, 0, 0, 1, 1, 2], [0], [0]>} : vector<2x8x8xbf16>, vector<2x8x8xbf16>, vector<2x8x8xf32> -> vector<2x8x8xf32>
    "tpu.trace_stop"() : () -> ()
    %101 = vector.shape_cast %100 : vector<2x8x8xf32> to vector<16x8xf32>
    %102 = arith.truncf %101 : vector<16x8xf32> to vector<16x8xbf16>
    %103 = vector.extract_strided_slice %9 {offsets = [16, 0], sizes = [8, 32], strides = [1, 1]} : vector<32x32xbf16> to vector<8x32xbf16>
    %cst_38 = arith.constant dense<0.000000e+00> : vector<16x32xf32>
    %104 = tpu.matmul %102, %103, %cst_38 {dimension_numbers = #tpu.dot_dimension_numbers<[1], [0], [0], [1], [0, 0, 1, 1], [], []>} : vector<16x8xbf16>, vector<8x32xbf16>, vector<16x32xf32> -> vector<16x32xf32>
    %105 = arith.addf %76, %104 : vector<16x32xf32>
    %106 = vector.extract_strided_slice %19 {offsets = [0, 24], sizes = [16, 8], strides = [1, 1]} : vector<16x96xf32> to vector<16x8xf32>
    %107 = vector.shape_cast %106 : vector<16x8xf32> to vector<2x8x8xf32>
    %108 = vector.extract_strided_slice %19 {offsets = [0, 56], sizes = [16, 8], strides = [1, 1]} : vector<16x96xf32> to vector<16x8xf32>
    %109 = vector.shape_cast %108 : vector<16x8xf32> to vector<2x8x8xf32>
    %110 = vector.extract_strided_slice %19 {offsets = [0, 88], sizes = [16, 8], strides = [1, 1]} : vector<16x96xf32> to vector<16x8xf32>
    %111 = vector.shape_cast %110 : vector<16x8xf32> to vector<2x8x8xf32>
    %112 = arith.truncf %107 : vector<2x8x8xf32> to vector<2x8x8xbf16>
    %113 = arith.truncf %109 : vector<2x8x8xf32> to vector<2x8x8xbf16>
    "tpu.trace_start"() <{level = 10 : i32, message = "bqd,bkd->bqk"}> : () -> ()
    %cst_39 = arith.constant dense<0.000000e+00> : vector<2x8x8xf32>
    %114 = tpu.matmul %112, %113, %cst_39 {dimension_numbers = #tpu.dot_dimension_numbers<[2], [2], [1], [1], [0, 0, 0, 1, 1, 1], [0], [0]>} : vector<2x8x8xbf16>, vector<2x8x8xbf16>, vector<2x8x8xf32> -> vector<2x8x8xf32>
    "tpu.trace_stop"() : () -> ()
    %cst_40 = arith.constant 0.353553385 : f32
    %115 = vector.broadcast %cst_40 : f32 to vector<2x8x8xf32>
    %116 = arith.mulf %114, %115 : vector<2x8x8xf32>
    %cst_41 = arith.constant dense<0xFF800000> : vector<2x8xf32>
    %117 = vector.multi_reduction <maximumf>, %116, %cst_41 [2] : vector<2x8x8xf32> to vector<2x8xf32>
    %118 = vector.shape_cast %117 : vector<2x8xf32> to vector<2x8x1xf32>
    %119 = vector.broadcast %118 : vector<2x8x1xf32> to vector<2x8x8xf32>
    %120 = arith.subf %116, %119 : vector<2x8x8xf32>
    %121 = math.exp %120 : vector<2x8x8xf32>
    %cst_42 = arith.constant dense<0.000000e+00> : vector<2x8xf32>
    %122 = vector.multi_reduction <add>, %121, %cst_42 [2] : vector<2x8x8xf32> to vector<2x8xf32>
    %123 = vector.shape_cast %122 : vector<2x8xf32> to vector<2x8x1xf32>
    %124 = tpu.reciprocal %123 : vector<2x8x1xf32> -> vector<2x8x1xf32>
    %125 = vector.broadcast %124 : vector<2x8x1xf32> to vector<2x8x8xf32>
    %126 = arith.mulf %121, %125 : vector<2x8x8xf32>
    %127 = arith.truncf %126 : vector<2x8x8xf32> to vector<2x8x8xbf16>
    %128 = arith.truncf %111 : vector<2x8x8xf32> to vector<2x8x8xbf16>
    "tpu.trace_start"() <{level = 10 : i32, message = "bqk,bkd->bqd"}> : () -> ()
    %cst_43 = arith.constant dense<0.000000e+00> : vector<2x8x8xf32>
    %129 = tpu.matmul %127, %128, %cst_43 {dimension_numbers = #tpu.dot_dimension_numbers<[2], [1], [1], [2], [0, 0, 0, 1, 1, 2], [0], [0]>} : vector<2x8x8xbf16>, vector<2x8x8xbf16>, vector<2x8x8xf32> -> vector<2x8x8xf32>
    "tpu.trace_stop"() : () -> ()
    %130 = vector.shape_cast %129 : vector<2x8x8xf32> to vector<16x8xf32>
    %131 = arith.truncf %130 : vector<16x8xf32> to vector<16x8xbf16>
    %132 = vector.extract_strided_slice %9 {offsets = [24, 0], sizes = [8, 32], strides = [1, 1]} : vector<32x32xbf16> to vector<8x32xbf16>
    %cst_44 = arith.constant dense<0.000000e+00> : vector<16x32xf32>
    %133 = tpu.matmul %131, %132, %cst_44 {dimension_numbers = #tpu.dot_dimension_numbers<[1], [0], [0], [1], [0, 0, 1, 1], [], []>} : vector<16x8xbf16>, vector<8x32xbf16>, vector<16x32xf32> -> vector<16x32xf32>
    %134 = arith.addf %105, %133 : vector<16x32xf32>
    %c0_45 = arith.constant 0 : index
    %c0_46 = arith.constant 0 : index
    %c0_47 = arith.constant 0 : index
    %135 = vector.load %arg7[%c0_45, %c0_46, %c0_47] : memref<2x1x32xf32, #tpu.memory_space<vmem>>, vector<1x1x32xf32>
    %136 = vector.shape_cast %135 : vector<1x1x32xf32> to vector<1x32xf32>
    %137 = vector.broadcast %136 : vector<1x32xf32> to vector<16x32xf32>
    %138 = arith.addf %134, %137 : vector<16x32xf32>
    %139 = arith.addf %5, %138 : vector<16x32xf32>
    %c0_48 = arith.constant 0 : index
    %c0_49 = arith.constant 0 : index
    %c0_50 = arith.constant 0 : index
    %140 = vector.load %arg8[%c0_48, %c0_49, %c0_50] : memref<2x1x32xf32, #tpu.memory_space<vmem>>, vector<1x1x32xf32>
    %141 = vector.shape_cast %140 : vector<1x1x32xf32> to vector<1x32xf32>
    %c0_51 = arith.constant 0 : index
    %c0_52 = arith.constant 0 : index
    %c0_53 = arith.constant 0 : index
    %142 = vector.load %arg9[%c0_51, %c0_52, %c0_53] : memref<2x1x32xf32, #tpu.memory_space<vmem>>, vector<1x1x32xf32>
    %143 = vector.shape_cast %142 : vector<1x1x32xf32> to vector<1x32xf32>
    %cst_54 = arith.constant dense<0.000000e+00> : vector<16xf32>
    %144 = vector.multi_reduction <add>, %139, %cst_54 [1] : vector<16x32xf32> to vector<16xf32>
    %145 = vector.shape_cast %144 : vector<16xf32> to vector<16x1xf32>
    %cst_55 = arith.constant 3.200000e+01 : f32
    %146 = vector.broadcast %cst_55 : f32 to vector<16x1xf32>
    %147 = arith.divf %145, %146 : vector<16x1xf32>
    %148 = vector.broadcast %147 : vector<16x1xf32> to vector<16x32xf32>
    %149 = arith.subf %139, %148 : vector<16x32xf32>
    %150 = arith.mulf %149, %149 : vector<16x32xf32>
    %cst_56 = arith.constant dense<0.000000e+00> : vector<16xf32>
    %151 = vector.multi_reduction <add>, %150, %cst_56 [1] : vector<16x32xf32> to vector<16xf32>
    %152 = vector.shape_cast %151 : vector<16xf32> to vector<16x1xf32>
    %cst_57 = arith.constant 3.200000e+01 : f32
    %153 = vector.broadcast %cst_57 : f32 to vector<16x1xf32>
    %154 = arith.divf %152, %153 : vector<16x1xf32>
    %cst_58 = arith.constant 9.99999974E-6 : f32
    %155 = vector.broadcast %cst_58 : f32 to vector<16x1xf32>
    %156 = arith.addf %154, %155 : vector<16x1xf32>
    %157 = math.rsqrt %156 : vector<16x1xf32>
    %158 = vector.broadcast %157 : vector<16x1xf32> to vector<16x32xf32>
    %159 = arith.mulf %149, %158 : vector<16x32xf32>
    %160 = vector.broadcast %141 : vector<1x32xf32> to vector<16x32xf32>
    %161 = arith.mulf %159, %160 : vector<16x32xf32>
    %162 = vector.broadcast %143 : vector<1x32xf32> to vector<16x32xf32>
    %163 = arith.addf %161, %162 : vector<16x32xf32>
    %164 = arith.truncf %163 : vector<16x32xf32> to vector<16x32xbf16>
    %cst_59 = arith.constant dense<0.000000e+00> : vector<16x128xf32>
    %165 = tpu.matmul %164, %11, %cst_59 {dimension_numbers = #tpu.dot_dimension_numbers<[1], [0], [0], [1], [0, 0, 1, 1], [], []>} : vector<16x32xbf16>, vector<32x128xbf16>, vector<16x128xf32> -> vector<16x128xf32>
    %c0_60 = arith.constant 0 : index
    %c0_61 = arith.constant 0 : index
    %c0_62 = arith.constant 0 : index
    %166 = vector.load %arg11[%c0_60, %c0_61, %c0_62] : memref<2x1x128xf32, #tpu.memory_space<vmem>>, vector<1x1x128xf32>
    %167 = vector.shape_cast %166 : vector<1x1x128xf32> to vector<1x128xf32>
    %168 = vector.broadcast %167 : vector<1x128xf32> to vector<16x128xf32>
    %169 = arith.addf %165, %168 : vector<16x128xf32>
    %cst_63 = arith.constant 5.000000e-01 : f32
    %170 = vector.broadcast %cst_63 : f32 to vector<16x128xf32>
    %171 = arith.mulf %170, %169 : vector<16x128xf32>
    %cst_64 = arith.constant 0.707106769 : f32
    %172 = vector.broadcast %cst_64 : f32 to vector<16x128xf32>
    %173 = arith.mulf %169, %172 : vector<16x128xf32>
    %174 = math.absf %173 : vector<16x128xf32>
    %cst_65 = arith.constant 0.327591091 : f32
    %175 = vector.broadcast %cst_65 : f32 to vector<16x128xf32>
    %176 = arith.mulf %175, %174 : vector<16x128xf32>
    %cst_66 = arith.constant 1.000000e+00 : f32
    %177 = vector.broadcast %cst_66 : f32 to vector<16x128xf32>
    %178 = arith.addf %177, %176 : vector<16x128xf32>
    %cst_67 = arith.constant 1.000000e+00 : f32
    %179 = vector.broadcast %cst_67 : f32 to vector<16x128xf32>
    %180 = arith.divf %179, %178 : vector<16x128xf32>
    %cst_68 = arith.constant 1.06140542 : f32
    %181 = vector.broadcast %cst_68 : f32 to vector<16x128xf32>
    %182 = arith.mulf %180, %181 : vector<16x128xf32>
    %cst_69 = arith.constant -1.45315206 : f32
    %183 = vector.broadcast %cst_69 : f32 to vector<16x128xf32>
    %184 = arith.addf %183, %182 : vector<16x128xf32>
    %185 = arith.mulf %180, %184 : vector<16x128xf32>
    %cst_70 = arith.constant 1.42141378 : f32
    %186 = vector.broadcast %cst_70 : f32 to vector<16x128xf32>
    %187 = arith.addf %186, %185 : vector<16x128xf32>
    %188 = arith.mulf %180, %187 : vector<16x128xf32>
    %cst_71 = arith.constant -0.284496725 : f32
    %189 = vector.broadcast %cst_71 : f32 to vector<16x128xf32>
    %190 = arith.addf %189, %188 : vector<16x128xf32>
    %191 = arith.mulf %180, %190 : vector<16x128xf32>
    %cst_72 = arith.constant 0.254829586 : f32
    %192 = vector.broadcast %cst_72 : f32 to vector<16x128xf32>
    %193 = arith.addf %192, %191 : vector<16x128xf32>
    %194 = arith.mulf %180, %193 : vector<16x128xf32>
    %cst_73 = arith.constant 0.000000e+00 : f32
    %195 = vector.broadcast %cst_73 : f32 to vector<16x128xf32>
    %196 = arith.subf %195, %174 : vector<16x128xf32>
    %197 = arith.mulf %196, %174 : vector<16x128xf32>
    %198 = math.exp %197 : vector<16x128xf32>
    %199 = arith.mulf %194, %198 : vector<16x128xf32>
    %cst_74 = arith.constant 1.000000e+00 : f32
    %200 = vector.broadcast %cst_74 : f32 to vector<16x128xf32>
    %201 = arith.subf %200, %199 : vector<16x128xf32>
    %cst_75 = arith.constant 0.000000e+00 : f32
    %202 = vector.broadcast %cst_75 : f32 to vector<16x128xf32>
    %203 = arith.cmpf olt, %173, %202 : vector<16x128xf32>
    %cst_76 = arith.constant 0.000000e+00 : f32
    %204 = vector.broadcast %cst_76 : f32 to vector<16x128xf32>
    %205 = arith.subf %204, %201 : vector<16x128xf32>
    %206 = arith.select %203, %205, %201 : vector<16x128xi1>, vector<16x128xf32>
    %cst_77 = arith.constant 1.000000e+00 : f32
    %207 = vector.broadcast %cst_77 : f32 to vector<16x128xf32>
    %208 = arith.addf %207, %206 : vector<16x128xf32>
    %209 = arith.mulf %171, %208 : vector<16x128xf32>
    %210 = arith.truncf %209 : vector<16x128xf32> to vector<16x128xbf16>
    %cst_78 = arith.constant dense<0.000000e+00> : vector<16x32xf32>
    %211 = tpu.matmul %210, %13, %cst_78 {dimension_numbers = #tpu.dot_dimension_numbers<[1], [0], [0], [1], [0, 0, 1, 1], [], []>} : vector<16x128xbf16>, vector<128x32xbf16>, vector<16x32xf32> -> vector<16x32xf32>
    %c0_79 = arith.constant 0 : index
    %c0_80 = arith.constant 0 : index
    %c0_81 = arith.constant 0 : index
    %212 = vector.load %arg13[%c0_79, %c0_80, %c0_81] : memref<2x1x32xf32, #tpu.memory_space<vmem>>, vector<1x1x32xf32>
    %213 = vector.shape_cast %212 : vector<1x1x32xf32> to vector<1x32xf32>
    %214 = vector.broadcast %213 : vector<1x32xf32> to vector<16x32xf32>
    %215 = arith.addf %211, %214 : vector<16x32xf32>
    %216 = arith.addf %163, %215 : vector<16x32xf32>
    %c0_82 = arith.constant 0 : index
    %c0_83 = arith.constant 0 : index
    %c0_84 = arith.constant 0 : index
    %217 = vector.load %arg14[%c0_82, %c0_83, %c0_84] : memref<2x1x32xf32, #tpu.memory_space<vmem>>, vector<1x1x32xf32>
    %218 = vector.shape_cast %217 : vector<1x1x32xf32> to vector<1x32xf32>
    %c0_85 = arith.constant 0 : index
    %c0_86 = arith.constant 0 : index
    %c0_87 = arith.constant 0 : index
    %219 = vector.load %arg15[%c0_85, %c0_86, %c0_87] : memref<2x1x32xf32, #tpu.memory_space<vmem>>, vector<1x1x32xf32>
    %220 = vector.shape_cast %219 : vector<1x1x32xf32> to vector<1x32xf32>
    %cst_88 = arith.constant dense<0.000000e+00> : vector<16xf32>
    %221 = vector.multi_reduction <add>, %216, %cst_88 [1] : vector<16x32xf32> to vector<16xf32>
    %222 = vector.shape_cast %221 : vector<16xf32> to vector<16x1xf32>
    %cst_89 = arith.constant 3.200000e+01 : f32
    %223 = vector.broadcast %cst_89 : f32 to vector<16x1xf32>
    %224 = arith.divf %222, %223 : vector<16x1xf32>
    %225 = vector.broadcast %224 : vector<16x1xf32> to vector<16x32xf32>
    %226 = arith.subf %216, %225 : vector<16x32xf32>
    %227 = arith.mulf %226, %226 : vector<16x32xf32>
    %cst_90 = arith.constant dense<0.000000e+00> : vector<16xf32>
    %228 = vector.multi_reduction <add>, %227, %cst_90 [1] : vector<16x32xf32> to vector<16xf32>
    %229 = vector.shape_cast %228 : vector<16xf32> to vector<16x1xf32>
    %cst_91 = arith.constant 3.200000e+01 : f32
    %230 = vector.broadcast %cst_91 : f32 to vector<16x1xf32>
    %231 = arith.divf %229, %230 : vector<16x1xf32>
    %cst_92 = arith.constant 9.99999974E-6 : f32
    %232 = vector.broadcast %cst_92 : f32 to vector<16x1xf32>
    %233 = arith.addf %231, %232 : vector<16x1xf32>
    %234 = math.rsqrt %233 : vector<16x1xf32>
    %235 = vector.broadcast %234 : vector<16x1xf32> to vector<16x32xf32>
    %236 = arith.mulf %226, %235 : vector<16x32xf32>
    %237 = vector.broadcast %218 : vector<1x32xf32> to vector<16x32xf32>
    %238 = arith.mulf %236, %237 : vector<16x32xf32>
    %239 = vector.broadcast %220 : vector<1x32xf32> to vector<16x32xf32>
    %240 = arith.addf %238, %239 : vector<16x32xf32>
    %c1 = arith.constant 1 : index
    %c0_93 = arith.constant 0 : index
    %c0_94 = arith.constant 0 : index
    %241 = vector.load %arg4[%c1, %c0_93, %c0_94] : memref<2x32x96xbf16, #tpu.memory_space<vmem>>, vector<1x32x96xbf16>
    %242 = vector.shape_cast %241 : vector<1x32x96xbf16> to vector<32x96xbf16>
    %c1_95 = arith.constant 1 : index
    %c0_96 = arith.constant 0 : index
    %c0_97 = arith.constant 0 : index
    %243 = vector.load %arg6[%c1_95, %c0_96, %c0_97] : memref<2x32x32xbf16, #tpu.memory_space<vmem>>, vector<1x32x32xbf16>
    %244 = vector.shape_cast %243 : vector<1x32x32xbf16> to vector<32x32xbf16>
    %c1_98 = arith.constant 1 : index
    %c0_99 = arith.constant 0 : index
    %c0_100 = arith.constant 0 : index
    %245 = vector.load %arg10[%c1_98, %c0_99, %c0_100] : memref<2x32x128xbf16, #tpu.memory_space<vmem>>, vector<1x32x128xbf16>
    %246 = vector.shape_cast %245 : vector<1x32x128xbf16> to vector<32x128xbf16>
    %c1_101 = arith.constant 1 : index
    %c0_102 = arith.constant 0 : index
    %c0_103 = arith.constant 0 : index
    %247 = vector.load %arg12[%c1_101, %c0_102, %c0_103] : memref<2x128x32xbf16, #tpu.memory_space<vmem>>, vector<1x128x32xbf16>
    %248 = vector.shape_cast %247 : vector<1x128x32xbf16> to vector<128x32xbf16>
    %249 = arith.truncf %240 : vector<16x32xf32> to vector<16x32xbf16>
    %cst_104 = arith.constant dense<0.000000e+00> : vector<16x96xf32>
    %250 = tpu.matmul %249, %242, %cst_104 {dimension_numbers = #tpu.dot_dimension_numbers<[1], [0], [0], [1], [0, 0, 1, 1], [], []>} : vector<16x32xbf16>, vector<32x96xbf16>, vector<16x96xf32> -> vector<16x96xf32>
    %c1_105 = arith.constant 1 : index
    %c0_106 = arith.constant 0 : index
    %c0_107 = arith.constant 0 : index
    %251 = vector.load %arg5[%c1_105, %c0_106, %c0_107] : memref<2x1x96xf32, #tpu.memory_space<vmem>>, vector<1x1x96xf32>
    %252 = vector.shape_cast %251 : vector<1x1x96xf32> to vector<1x96xf32>
    %253 = vector.broadcast %252 : vector<1x96xf32> to vector<16x96xf32>
    %254 = arith.addf %250, %253 : vector<16x96xf32>
    %255 = vector.extract_strided_slice %254 {offsets = [0, 0], sizes = [16, 8], strides = [1, 1]} : vector<16x96xf32> to vector<16x8xf32>
    %256 = vector.shape_cast %255 : vector<16x8xf32> to vector<2x8x8xf32>
    %257 = vector.extract_strided_slice %254 {offsets = [0, 32], sizes = [16, 8], strides = [1, 1]} : vector<16x96xf32> to vector<16x8xf32>
    %258 = vector.shape_cast %257 : vector<16x8xf32> to vector<2x8x8xf32>
    %259 = vector.extract_strided_slice %254 {offsets = [0, 64], sizes = [16, 8], strides = [1, 1]} : vector<16x96xf32> to vector<16x8xf32>
    %260 = vector.shape_cast %259 : vector<16x8xf32> to vector<2x8x8xf32>
    %261 = arith.truncf %256 : vector<2x8x8xf32> to vector<2x8x8xbf16>
    %262 = arith.truncf %258 : vector<2x8x8xf32> to vector<2x8x8xbf16>
    "tpu.trace_start"() <{level = 10 : i32, message = "bqd,bkd->bqk"}> : () -> ()
    %cst_108 = arith.constant dense<0.000000e+00> : vector<2x8x8xf32>
    %263 = tpu.matmul %261, %262, %cst_108 {dimension_numbers = #tpu.dot_dimension_numbers<[2], [2], [1], [1], [0, 0, 0, 1, 1, 1], [0], [0]>} : vector<2x8x8xbf16>, vector<2x8x8xbf16>, vector<2x8x8xf32> -> vector<2x8x8xf32>
    "tpu.trace_stop"() : () -> ()
    %cst_109 = arith.constant 0.353553385 : f32
    %264 = vector.broadcast %cst_109 : f32 to vector<2x8x8xf32>
    %265 = arith.mulf %263, %264 : vector<2x8x8xf32>
    %cst_110 = arith.constant dense<0xFF800000> : vector<2x8xf32>
    %266 = vector.multi_reduction <maximumf>, %265, %cst_110 [2] : vector<2x8x8xf32> to vector<2x8xf32>
    %267 = vector.shape_cast %266 : vector<2x8xf32> to vector<2x8x1xf32>
    %268 = vector.broadcast %267 : vector<2x8x1xf32> to vector<2x8x8xf32>
    %269 = arith.subf %265, %268 : vector<2x8x8xf32>
    %270 = math.exp %269 : vector<2x8x8xf32>
    %cst_111 = arith.constant dense<0.000000e+00> : vector<2x8xf32>
    %271 = vector.multi_reduction <add>, %270, %cst_111 [2] : vector<2x8x8xf32> to vector<2x8xf32>
    %272 = vector.shape_cast %271 : vector<2x8xf32> to vector<2x8x1xf32>
    %273 = tpu.reciprocal %272 : vector<2x8x1xf32> -> vector<2x8x1xf32>
    %274 = vector.broadcast %273 : vector<2x8x1xf32> to vector<2x8x8xf32>
    %275 = arith.mulf %270, %274 : vector<2x8x8xf32>
    %276 = arith.truncf %275 : vector<2x8x8xf32> to vector<2x8x8xbf16>
    %277 = arith.truncf %260 : vector<2x8x8xf32> to vector<2x8x8xbf16>
    "tpu.trace_start"() <{level = 10 : i32, message = "bqk,bkd->bqd"}> : () -> ()
    %cst_112 = arith.constant dense<0.000000e+00> : vector<2x8x8xf32>
    %278 = tpu.matmul %276, %277, %cst_112 {dimension_numbers = #tpu.dot_dimension_numbers<[2], [1], [1], [2], [0, 0, 0, 1, 1, 2], [0], [0]>} : vector<2x8x8xbf16>, vector<2x8x8xbf16>, vector<2x8x8xf32> -> vector<2x8x8xf32>
    "tpu.trace_stop"() : () -> ()
    %279 = vector.shape_cast %278 : vector<2x8x8xf32> to vector<16x8xf32>
    %280 = arith.truncf %279 : vector<16x8xf32> to vector<16x8xbf16>
    %281 = vector.extract_strided_slice %244 {offsets = [0, 0], sizes = [8, 32], strides = [1, 1]} : vector<32x32xbf16> to vector<8x32xbf16>
    %cst_113 = arith.constant dense<0.000000e+00> : vector<16x32xf32>
    %282 = tpu.matmul %280, %281, %cst_113 {dimension_numbers = #tpu.dot_dimension_numbers<[1], [0], [0], [1], [0, 0, 1, 1], [], []>} : vector<16x8xbf16>, vector<8x32xbf16>, vector<16x32xf32> -> vector<16x32xf32>
    %283 = vector.extract_strided_slice %254 {offsets = [0, 8], sizes = [16, 8], strides = [1, 1]} : vector<16x96xf32> to vector<16x8xf32>
    %284 = vector.shape_cast %283 : vector<16x8xf32> to vector<2x8x8xf32>
    %285 = vector.extract_strided_slice %254 {offsets = [0, 40], sizes = [16, 8], strides = [1, 1]} : vector<16x96xf32> to vector<16x8xf32>
    %286 = vector.shape_cast %285 : vector<16x8xf32> to vector<2x8x8xf32>
    %287 = vector.extract_strided_slice %254 {offsets = [0, 72], sizes = [16, 8], strides = [1, 1]} : vector<16x96xf32> to vector<16x8xf32>
    %288 = vector.shape_cast %287 : vector<16x8xf32> to vector<2x8x8xf32>
    %289 = arith.truncf %284 : vector<2x8x8xf32> to vector<2x8x8xbf16>
    %290 = arith.truncf %286 : vector<2x8x8xf32> to vector<2x8x8xbf16>
    "tpu.trace_start"() <{level = 10 : i32, message = "bqd,bkd->bqk"}> : () -> ()
    %cst_114 = arith.constant dense<0.000000e+00> : vector<2x8x8xf32>
    %291 = tpu.matmul %289, %290, %cst_114 {dimension_numbers = #tpu.dot_dimension_numbers<[2], [2], [1], [1], [0, 0, 0, 1, 1, 1], [0], [0]>} : vector<2x8x8xbf16>, vector<2x8x8xbf16>, vector<2x8x8xf32> -> vector<2x8x8xf32>
    "tpu.trace_stop"() : () -> ()
    %cst_115 = arith.constant 0.353553385 : f32
    %292 = vector.broadcast %cst_115 : f32 to vector<2x8x8xf32>
    %293 = arith.mulf %291, %292 : vector<2x8x8xf32>
    %cst_116 = arith.constant dense<0xFF800000> : vector<2x8xf32>
    %294 = vector.multi_reduction <maximumf>, %293, %cst_116 [2] : vector<2x8x8xf32> to vector<2x8xf32>
    %295 = vector.shape_cast %294 : vector<2x8xf32> to vector<2x8x1xf32>
    %296 = vector.broadcast %295 : vector<2x8x1xf32> to vector<2x8x8xf32>
    %297 = arith.subf %293, %296 : vector<2x8x8xf32>
    %298 = math.exp %297 : vector<2x8x8xf32>
    %cst_117 = arith.constant dense<0.000000e+00> : vector<2x8xf32>
    %299 = vector.multi_reduction <add>, %298, %cst_117 [2] : vector<2x8x8xf32> to vector<2x8xf32>
    %300 = vector.shape_cast %299 : vector<2x8xf32> to vector<2x8x1xf32>
    %301 = tpu.reciprocal %300 : vector<2x8x1xf32> -> vector<2x8x1xf32>
    %302 = vector.broadcast %301 : vector<2x8x1xf32> to vector<2x8x8xf32>
    %303 = arith.mulf %298, %302 : vector<2x8x8xf32>
    %304 = arith.truncf %303 : vector<2x8x8xf32> to vector<2x8x8xbf16>
    %305 = arith.truncf %288 : vector<2x8x8xf32> to vector<2x8x8xbf16>
    "tpu.trace_start"() <{level = 10 : i32, message = "bqk,bkd->bqd"}> : () -> ()
    %cst_118 = arith.constant dense<0.000000e+00> : vector<2x8x8xf32>
    %306 = tpu.matmul %304, %305, %cst_118 {dimension_numbers = #tpu.dot_dimension_numbers<[2], [1], [1], [2], [0, 0, 0, 1, 1, 2], [0], [0]>} : vector<2x8x8xbf16>, vector<2x8x8xbf16>, vector<2x8x8xf32> -> vector<2x8x8xf32>
    "tpu.trace_stop"() : () -> ()
    %307 = vector.shape_cast %306 : vector<2x8x8xf32> to vector<16x8xf32>
    %308 = arith.truncf %307 : vector<16x8xf32> to vector<16x8xbf16>
    %309 = vector.extract_strided_slice %244 {offsets = [8, 0], sizes = [8, 32], strides = [1, 1]} : vector<32x32xbf16> to vector<8x32xbf16>
    %cst_119 = arith.constant dense<0.000000e+00> : vector<16x32xf32>
    %310 = tpu.matmul %308, %309, %cst_119 {dimension_numbers = #tpu.dot_dimension_numbers<[1], [0], [0], [1], [0, 0, 1, 1], [], []>} : vector<16x8xbf16>, vector<8x32xbf16>, vector<16x32xf32> -> vector<16x32xf32>
    %311 = arith.addf %282, %310 : vector<16x32xf32>
    %312 = vector.extract_strided_slice %254 {offsets = [0, 16], sizes = [16, 8], strides = [1, 1]} : vector<16x96xf32> to vector<16x8xf32>
    %313 = vector.shape_cast %312 : vector<16x8xf32> to vector<2x8x8xf32>
    %314 = vector.extract_strided_slice %254 {offsets = [0, 48], sizes = [16, 8], strides = [1, 1]} : vector<16x96xf32> to vector<16x8xf32>
    %315 = vector.shape_cast %314 : vector<16x8xf32> to vector<2x8x8xf32>
    %316 = vector.extract_strided_slice %254 {offsets = [0, 80], sizes = [16, 8], strides = [1, 1]} : vector<16x96xf32> to vector<16x8xf32>
    %317 = vector.shape_cast %316 : vector<16x8xf32> to vector<2x8x8xf32>
    %318 = arith.truncf %313 : vector<2x8x8xf32> to vector<2x8x8xbf16>
    %319 = arith.truncf %315 : vector<2x8x8xf32> to vector<2x8x8xbf16>
    "tpu.trace_start"() <{level = 10 : i32, message = "bqd,bkd->bqk"}> : () -> ()
    %cst_120 = arith.constant dense<0.000000e+00> : vector<2x8x8xf32>
    %320 = tpu.matmul %318, %319, %cst_120 {dimension_numbers = #tpu.dot_dimension_numbers<[2], [2], [1], [1], [0, 0, 0, 1, 1, 1], [0], [0]>} : vector<2x8x8xbf16>, vector<2x8x8xbf16>, vector<2x8x8xf32> -> vector<2x8x8xf32>
    "tpu.trace_stop"() : () -> ()
    %cst_121 = arith.constant 0.353553385 : f32
    %321 = vector.broadcast %cst_121 : f32 to vector<2x8x8xf32>
    %322 = arith.mulf %320, %321 : vector<2x8x8xf32>
    %cst_122 = arith.constant dense<0xFF800000> : vector<2x8xf32>
    %323 = vector.multi_reduction <maximumf>, %322, %cst_122 [2] : vector<2x8x8xf32> to vector<2x8xf32>
    %324 = vector.shape_cast %323 : vector<2x8xf32> to vector<2x8x1xf32>
    %325 = vector.broadcast %324 : vector<2x8x1xf32> to vector<2x8x8xf32>
    %326 = arith.subf %322, %325 : vector<2x8x8xf32>
    %327 = math.exp %326 : vector<2x8x8xf32>
    %cst_123 = arith.constant dense<0.000000e+00> : vector<2x8xf32>
    %328 = vector.multi_reduction <add>, %327, %cst_123 [2] : vector<2x8x8xf32> to vector<2x8xf32>
    %329 = vector.shape_cast %328 : vector<2x8xf32> to vector<2x8x1xf32>
    %330 = tpu.reciprocal %329 : vector<2x8x1xf32> -> vector<2x8x1xf32>
    %331 = vector.broadcast %330 : vector<2x8x1xf32> to vector<2x8x8xf32>
    %332 = arith.mulf %327, %331 : vector<2x8x8xf32>
    %333 = arith.truncf %332 : vector<2x8x8xf32> to vector<2x8x8xbf16>
    %334 = arith.truncf %317 : vector<2x8x8xf32> to vector<2x8x8xbf16>
    "tpu.trace_start"() <{level = 10 : i32, message = "bqk,bkd->bqd"}> : () -> ()
    %cst_124 = arith.constant dense<0.000000e+00> : vector<2x8x8xf32>
    %335 = tpu.matmul %333, %334, %cst_124 {dimension_numbers = #tpu.dot_dimension_numbers<[2], [1], [1], [2], [0, 0, 0, 1, 1, 2], [0], [0]>} : vector<2x8x8xbf16>, vector<2x8x8xbf16>, vector<2x8x8xf32> -> vector<2x8x8xf32>
    "tpu.trace_stop"() : () -> ()
    %336 = vector.shape_cast %335 : vector<2x8x8xf32> to vector<16x8xf32>
    %337 = arith.truncf %336 : vector<16x8xf32> to vector<16x8xbf16>
    %338 = vector.extract_strided_slice %244 {offsets = [16, 0], sizes = [8, 32], strides = [1, 1]} : vector<32x32xbf16> to vector<8x32xbf16>
    %cst_125 = arith.constant dense<0.000000e+00> : vector<16x32xf32>
    %339 = tpu.matmul %337, %338, %cst_125 {dimension_numbers = #tpu.dot_dimension_numbers<[1], [0], [0], [1], [0, 0, 1, 1], [], []>} : vector<16x8xbf16>, vector<8x32xbf16>, vector<16x32xf32> -> vector<16x32xf32>
    %340 = arith.addf %311, %339 : vector<16x32xf32>
    %341 = vector.extract_strided_slice %254 {offsets = [0, 24], sizes = [16, 8], strides = [1, 1]} : vector<16x96xf32> to vector<16x8xf32>
    %342 = vector.shape_cast %341 : vector<16x8xf32> to vector<2x8x8xf32>
    %343 = vector.extract_strided_slice %254 {offsets = [0, 56], sizes = [16, 8], strides = [1, 1]} : vector<16x96xf32> to vector<16x8xf32>
    %344 = vector.shape_cast %343 : vector<16x8xf32> to vector<2x8x8xf32>
    %345 = vector.extract_strided_slice %254 {offsets = [0, 88], sizes = [16, 8], strides = [1, 1]} : vector<16x96xf32> to vector<16x8xf32>
    %346 = vector.shape_cast %345 : vector<16x8xf32> to vector<2x8x8xf32>
    %347 = arith.truncf %342 : vector<2x8x8xf32> to vector<2x8x8xbf16>
    %348 = arith.truncf %344 : vector<2x8x8xf32> to vector<2x8x8xbf16>
    "tpu.trace_start"() <{level = 10 : i32, message = "bqd,bkd->bqk"}> : () -> ()
    %cst_126 = arith.constant dense<0.000000e+00> : vector<2x8x8xf32>
    %349 = tpu.matmul %347, %348, %cst_126 {dimension_numbers = #tpu.dot_dimension_numbers<[2], [2], [1], [1], [0, 0, 0, 1, 1, 1], [0], [0]>} : vector<2x8x8xbf16>, vector<2x8x8xbf16>, vector<2x8x8xf32> -> vector<2x8x8xf32>
    "tpu.trace_stop"() : () -> ()
    %cst_127 = arith.constant 0.353553385 : f32
    %350 = vector.broadcast %cst_127 : f32 to vector<2x8x8xf32>
    %351 = arith.mulf %349, %350 : vector<2x8x8xf32>
    %cst_128 = arith.constant dense<0xFF800000> : vector<2x8xf32>
    %352 = vector.multi_reduction <maximumf>, %351, %cst_128 [2] : vector<2x8x8xf32> to vector<2x8xf32>
    %353 = vector.shape_cast %352 : vector<2x8xf32> to vector<2x8x1xf32>
    %354 = vector.broadcast %353 : vector<2x8x1xf32> to vector<2x8x8xf32>
    %355 = arith.subf %351, %354 : vector<2x8x8xf32>
    %356 = math.exp %355 : vector<2x8x8xf32>
    %cst_129 = arith.constant dense<0.000000e+00> : vector<2x8xf32>
    %357 = vector.multi_reduction <add>, %356, %cst_129 [2] : vector<2x8x8xf32> to vector<2x8xf32>
    %358 = vector.shape_cast %357 : vector<2x8xf32> to vector<2x8x1xf32>
    %359 = tpu.reciprocal %358 : vector<2x8x1xf32> -> vector<2x8x1xf32>
    %360 = vector.broadcast %359 : vector<2x8x1xf32> to vector<2x8x8xf32>
    %361 = arith.mulf %356, %360 : vector<2x8x8xf32>
    %362 = arith.truncf %361 : vector<2x8x8xf32> to vector<2x8x8xbf16>
    %363 = arith.truncf %346 : vector<2x8x8xf32> to vector<2x8x8xbf16>
    "tpu.trace_start"() <{level = 10 : i32, message = "bqk,bkd->bqd"}> : () -> ()
    %cst_130 = arith.constant dense<0.000000e+00> : vector<2x8x8xf32>
    %364 = tpu.matmul %362, %363, %cst_130 {dimension_numbers = #tpu.dot_dimension_numbers<[2], [1], [1], [2], [0, 0, 0, 1, 1, 2], [0], [0]>} : vector<2x8x8xbf16>, vector<2x8x8xbf16>, vector<2x8x8xf32> -> vector<2x8x8xf32>
    "tpu.trace_stop"() : () -> ()
    %365 = vector.shape_cast %364 : vector<2x8x8xf32> to vector<16x8xf32>
    %366 = arith.truncf %365 : vector<16x8xf32> to vector<16x8xbf16>
    %367 = vector.extract_strided_slice %244 {offsets = [24, 0], sizes = [8, 32], strides = [1, 1]} : vector<32x32xbf16> to vector<8x32xbf16>
    %cst_131 = arith.constant dense<0.000000e+00> : vector<16x32xf32>
    %368 = tpu.matmul %366, %367, %cst_131 {dimension_numbers = #tpu.dot_dimension_numbers<[1], [0], [0], [1], [0, 0, 1, 1], [], []>} : vector<16x8xbf16>, vector<8x32xbf16>, vector<16x32xf32> -> vector<16x32xf32>
    %369 = arith.addf %340, %368 : vector<16x32xf32>
    %c1_132 = arith.constant 1 : index
    %c0_133 = arith.constant 0 : index
    %c0_134 = arith.constant 0 : index
    %370 = vector.load %arg7[%c1_132, %c0_133, %c0_134] : memref<2x1x32xf32, #tpu.memory_space<vmem>>, vector<1x1x32xf32>
    %371 = vector.shape_cast %370 : vector<1x1x32xf32> to vector<1x32xf32>
    %372 = vector.broadcast %371 : vector<1x32xf32> to vector<16x32xf32>
    %373 = arith.addf %369, %372 : vector<16x32xf32>
    %374 = arith.addf %240, %373 : vector<16x32xf32>
    %c1_135 = arith.constant 1 : index
    %c0_136 = arith.constant 0 : index
    %c0_137 = arith.constant 0 : index
    %375 = vector.load %arg8[%c1_135, %c0_136, %c0_137] : memref<2x1x32xf32, #tpu.memory_space<vmem>>, vector<1x1x32xf32>
    %376 = vector.shape_cast %375 : vector<1x1x32xf32> to vector<1x32xf32>
    %c1_138 = arith.constant 1 : index
    %c0_139 = arith.constant 0 : index
    %c0_140 = arith.constant 0 : index
    %377 = vector.load %arg9[%c1_138, %c0_139, %c0_140] : memref<2x1x32xf32, #tpu.memory_space<vmem>>, vector<1x1x32xf32>
    %378 = vector.shape_cast %377 : vector<1x1x32xf32> to vector<1x32xf32>
    %cst_141 = arith.constant dense<0.000000e+00> : vector<16xf32>
    %379 = vector.multi_reduction <add>, %374, %cst_141 [1] : vector<16x32xf32> to vector<16xf32>
    %380 = vector.shape_cast %379 : vector<16xf32> to vector<16x1xf32>
    %cst_142 = arith.constant 3.200000e+01 : f32
    %381 = vector.broadcast %cst_142 : f32 to vector<16x1xf32>
    %382 = arith.divf %380, %381 : vector<16x1xf32>
    %383 = vector.broadcast %382 : vector<16x1xf32> to vector<16x32xf32>
    %384 = arith.subf %374, %383 : vector<16x32xf32>
    %385 = arith.mulf %384, %384 : vector<16x32xf32>
    %cst_143 = arith.constant dense<0.000000e+00> : vector<16xf32>
    %386 = vector.multi_reduction <add>, %385, %cst_143 [1] : vector<16x32xf32> to vector<16xf32>
    %387 = vector.shape_cast %386 : vector<16xf32> to vector<16x1xf32>
    %cst_144 = arith.constant 3.200000e+01 : f32
    %388 = vector.broadcast %cst_144 : f32 to vector<16x1xf32>
    %389 = arith.divf %387, %388 : vector<16x1xf32>
    %cst_145 = arith.constant 9.99999974E-6 : f32
    %390 = vector.broadcast %cst_145 : f32 to vector<16x1xf32>
    %391 = arith.addf %389, %390 : vector<16x1xf32>
    %392 = math.rsqrt %391 : vector<16x1xf32>
    %393 = vector.broadcast %392 : vector<16x1xf32> to vector<16x32xf32>
    %394 = arith.mulf %384, %393 : vector<16x32xf32>
    %395 = vector.broadcast %376 : vector<1x32xf32> to vector<16x32xf32>
    %396 = arith.mulf %394, %395 : vector<16x32xf32>
    %397 = vector.broadcast %378 : vector<1x32xf32> to vector<16x32xf32>
    %398 = arith.addf %396, %397 : vector<16x32xf32>
    %399 = arith.truncf %398 : vector<16x32xf32> to vector<16x32xbf16>
    %cst_146 = arith.constant dense<0.000000e+00> : vector<16x128xf32>
    %400 = tpu.matmul %399, %246, %cst_146 {dimension_numbers = #tpu.dot_dimension_numbers<[1], [0], [0], [1], [0, 0, 1, 1], [], []>} : vector<16x32xbf16>, vector<32x128xbf16>, vector<16x128xf32> -> vector<16x128xf32>
    %c1_147 = arith.constant 1 : index
    %c0_148 = arith.constant 0 : index
    %c0_149 = arith.constant 0 : index
    %401 = vector.load %arg11[%c1_147, %c0_148, %c0_149] : memref<2x1x128xf32, #tpu.memory_space<vmem>>, vector<1x1x128xf32>
    %402 = vector.shape_cast %401 : vector<1x1x128xf32> to vector<1x128xf32>
    %403 = vector.broadcast %402 : vector<1x128xf32> to vector<16x128xf32>
    %404 = arith.addf %400, %403 : vector<16x128xf32>
    %cst_150 = arith.constant 5.000000e-01 : f32
    %405 = vector.broadcast %cst_150 : f32 to vector<16x128xf32>
    %406 = arith.mulf %405, %404 : vector<16x128xf32>
    %cst_151 = arith.constant 0.707106769 : f32
    %407 = vector.broadcast %cst_151 : f32 to vector<16x128xf32>
    %408 = arith.mulf %404, %407 : vector<16x128xf32>
    %409 = math.absf %408 : vector<16x128xf32>
    %cst_152 = arith.constant 0.327591091 : f32
    %410 = vector.broadcast %cst_152 : f32 to vector<16x128xf32>
    %411 = arith.mulf %410, %409 : vector<16x128xf32>
    %cst_153 = arith.constant 1.000000e+00 : f32
    %412 = vector.broadcast %cst_153 : f32 to vector<16x128xf32>
    %413 = arith.addf %412, %411 : vector<16x128xf32>
    %cst_154 = arith.constant 1.000000e+00 : f32
    %414 = vector.broadcast %cst_154 : f32 to vector<16x128xf32>
    %415 = arith.divf %414, %413 : vector<16x128xf32>
    %cst_155 = arith.constant 1.06140542 : f32
    %416 = vector.broadcast %cst_155 : f32 to vector<16x128xf32>
    %417 = arith.mulf %415, %416 : vector<16x128xf32>
    %cst_156 = arith.constant -1.45315206 : f32
    %418 = vector.broadcast %cst_156 : f32 to vector<16x128xf32>
    %419 = arith.addf %418, %417 : vector<16x128xf32>
    %420 = arith.mulf %415, %419 : vector<16x128xf32>
    %cst_157 = arith.constant 1.42141378 : f32
    %421 = vector.broadcast %cst_157 : f32 to vector<16x128xf32>
    %422 = arith.addf %421, %420 : vector<16x128xf32>
    %423 = arith.mulf %415, %422 : vector<16x128xf32>
    %cst_158 = arith.constant -0.284496725 : f32
    %424 = vector.broadcast %cst_158 : f32 to vector<16x128xf32>
    %425 = arith.addf %424, %423 : vector<16x128xf32>
    %426 = arith.mulf %415, %425 : vector<16x128xf32>
    %cst_159 = arith.constant 0.254829586 : f32
    %427 = vector.broadcast %cst_159 : f32 to vector<16x128xf32>
    %428 = arith.addf %427, %426 : vector<16x128xf32>
    %429 = arith.mulf %415, %428 : vector<16x128xf32>
    %cst_160 = arith.constant 0.000000e+00 : f32
    %430 = vector.broadcast %cst_160 : f32 to vector<16x128xf32>
    %431 = arith.subf %430, %409 : vector<16x128xf32>
    %432 = arith.mulf %431, %409 : vector<16x128xf32>
    %433 = math.exp %432 : vector<16x128xf32>
    %434 = arith.mulf %429, %433 : vector<16x128xf32>
    %cst_161 = arith.constant 1.000000e+00 : f32
    %435 = vector.broadcast %cst_161 : f32 to vector<16x128xf32>
    %436 = arith.subf %435, %434 : vector<16x128xf32>
    %cst_162 = arith.constant 0.000000e+00 : f32
    %437 = vector.broadcast %cst_162 : f32 to vector<16x128xf32>
    %438 = arith.cmpf olt, %408, %437 : vector<16x128xf32>
    %cst_163 = arith.constant 0.000000e+00 : f32
    %439 = vector.broadcast %cst_163 : f32 to vector<16x128xf32>
    %440 = arith.subf %439, %436 : vector<16x128xf32>
    %441 = arith.select %438, %440, %436 : vector<16x128xi1>, vector<16x128xf32>
    %cst_164 = arith.constant 1.000000e+00 : f32
    %442 = vector.broadcast %cst_164 : f32 to vector<16x128xf32>
    %443 = arith.addf %442, %441 : vector<16x128xf32>
    %444 = arith.mulf %406, %443 : vector<16x128xf32>
    %445 = arith.truncf %444 : vector<16x128xf32> to vector<16x128xbf16>
    %cst_165 = arith.constant dense<0.000000e+00> : vector<16x32xf32>
    %446 = tpu.matmul %445, %248, %cst_165 {dimension_numbers = #tpu.dot_dimension_numbers<[1], [0], [0], [1], [0, 0, 1, 1], [], []>} : vector<16x128xbf16>, vector<128x32xbf16>, vector<16x32xf32> -> vector<16x32xf32>
    %c1_166 = arith.constant 1 : index
    %c0_167 = arith.constant 0 : index
    %c0_168 = arith.constant 0 : index
    %447 = vector.load %arg13[%c1_166, %c0_167, %c0_168] : memref<2x1x32xf32, #tpu.memory_space<vmem>>, vector<1x1x32xf32>
    %448 = vector.shape_cast %447 : vector<1x1x32xf32> to vector<1x32xf32>
    %449 = vector.broadcast %448 : vector<1x32xf32> to vector<16x32xf32>
    %450 = arith.addf %446, %449 : vector<16x32xf32>
    %451 = arith.addf %398, %450 : vector<16x32xf32>
    %c1_169 = arith.constant 1 : index
    %c0_170 = arith.constant 0 : index
    %c0_171 = arith.constant 0 : index
    %452 = vector.load %arg14[%c1_169, %c0_170, %c0_171] : memref<2x1x32xf32, #tpu.memory_space<vmem>>, vector<1x1x32xf32>
    %453 = vector.shape_cast %452 : vector<1x1x32xf32> to vector<1x32xf32>
    %c1_172 = arith.constant 1 : index
    %c0_173 = arith.constant 0 : index
    %c0_174 = arith.constant 0 : index
    %454 = vector.load %arg15[%c1_172, %c0_173, %c0_174] : memref<2x1x32xf32, #tpu.memory_space<vmem>>, vector<1x1x32xf32>
    %455 = vector.shape_cast %454 : vector<1x1x32xf32> to vector<1x32xf32>
    %cst_175 = arith.constant dense<0.000000e+00> : vector<16xf32>
    %456 = vector.multi_reduction <add>, %451, %cst_175 [1] : vector<16x32xf32> to vector<16xf32>
    %457 = vector.shape_cast %456 : vector<16xf32> to vector<16x1xf32>
    %cst_176 = arith.constant 3.200000e+01 : f32
    %458 = vector.broadcast %cst_176 : f32 to vector<16x1xf32>
    %459 = arith.divf %457, %458 : vector<16x1xf32>
    %460 = vector.broadcast %459 : vector<16x1xf32> to vector<16x32xf32>
    %461 = arith.subf %451, %460 : vector<16x32xf32>
    %462 = arith.mulf %461, %461 : vector<16x32xf32>
    %cst_177 = arith.constant dense<0.000000e+00> : vector<16xf32>
    %463 = vector.multi_reduction <add>, %462, %cst_177 [1] : vector<16x32xf32> to vector<16xf32>
    %464 = vector.shape_cast %463 : vector<16xf32> to vector<16x1xf32>
    %cst_178 = arith.constant 3.200000e+01 : f32
    %465 = vector.broadcast %cst_178 : f32 to vector<16x1xf32>
    %466 = arith.divf %464, %465 : vector<16x1xf32>
    %cst_179 = arith.constant 9.99999974E-6 : f32
    %467 = vector.broadcast %cst_179 : f32 to vector<16x1xf32>
    %468 = arith.addf %466, %467 : vector<16x1xf32>
    %469 = math.rsqrt %468 : vector<16x1xf32>
    %470 = vector.broadcast %469 : vector<16x1xf32> to vector<16x32xf32>
    %471 = arith.mulf %461, %470 : vector<16x32xf32>
    %472 = vector.broadcast %453 : vector<1x32xf32> to vector<16x32xf32>
    %473 = arith.mulf %471, %472 : vector<16x32xf32>
    %474 = vector.broadcast %455 : vector<1x32xf32> to vector<16x32xf32>
    %475 = arith.addf %473, %474 : vector<16x32xf32>
    %476 = arith.truncf %475 : vector<16x32xf32> to vector<16x32xbf16>
    %c0_180 = arith.constant 0 : index
    %c0_181 = arith.constant 0 : index
    %477 = vector.load %arg16[%c0_180, %c0_181] : memref<32x16xbf16, #tpu.memory_space<vmem>>, vector<32x16xbf16>
    %cst_182 = arith.constant dense<0.000000e+00> : vector<16x16xf32>
    %478 = tpu.matmul %476, %477, %cst_182 {dimension_numbers = #tpu.dot_dimension_numbers<[1], [0], [0], [1], [0, 0, 1, 1], [], []>} : vector<16x32xbf16>, vector<32x16xbf16>, vector<16x16xf32> -> vector<16x16xf32>
    %c0_183 = arith.constant 0 : index
    %c0_184 = arith.constant 0 : index
    %479 = vector.load %arg17[%c0_183, %c0_184] : memref<1x16xf32, #tpu.memory_space<vmem>>, vector<1x16xf32>
    %480 = vector.broadcast %479 : vector<1x16xf32> to vector<16x16xf32>
    %481 = arith.addf %478, %480 : vector<16x16xf32>
    %cst_185 = arith.constant 5.000000e-01 : f32
    %482 = vector.broadcast %cst_185 : f32 to vector<16x16xf32>
    %483 = arith.mulf %482, %481 : vector<16x16xf32>
    %cst_186 = arith.constant 0.707106769 : f32
    %484 = vector.broadcast %cst_186 : f32 to vector<16x16xf32>
    %485 = arith.mulf %481, %484 : vector<16x16xf32>
    %486 = math.absf %485 : vector<16x16xf32>
    %cst_187 = arith.constant 0.327591091 : f32
    %487 = vector.broadcast %cst_187 : f32 to vector<16x16xf32>
    %488 = arith.mulf %487, %486 : vector<16x16xf32>
    %cst_188 = arith.constant 1.000000e+00 : f32
    %489 = vector.broadcast %cst_188 : f32 to vector<16x16xf32>
    %490 = arith.addf %489, %488 : vector<16x16xf32>
    %cst_189 = arith.constant 1.000000e+00 : f32
    %491 = vector.broadcast %cst_189 : f32 to vector<16x16xf32>
    %492 = arith.divf %491, %490 : vector<16x16xf32>
    %cst_190 = arith.constant 1.06140542 : f32
    %493 = vector.broadcast %cst_190 : f32 to vector<16x16xf32>
    %494 = arith.mulf %492, %493 : vector<16x16xf32>
    %cst_191 = arith.constant -1.45315206 : f32
    %495 = vector.broadcast %cst_191 : f32 to vector<16x16xf32>
    %496 = arith.addf %495, %494 : vector<16x16xf32>
    %497 = arith.mulf %492, %496 : vector<16x16xf32>
    %cst_192 = arith.constant 1.42141378 : f32
    %498 = vector.broadcast %cst_192 : f32 to vector<16x16xf32>
    %499 = arith.addf %498, %497 : vector<16x16xf32>
    %500 = arith.mulf %492, %499 : vector<16x16xf32>
    %cst_193 = arith.constant -0.284496725 : f32
    %501 = vector.broadcast %cst_193 : f32 to vector<16x16xf32>
    %502 = arith.addf %501, %500 : vector<16x16xf32>
    %503 = arith.mulf %492, %502 : vector<16x16xf32>
    %cst_194 = arith.constant 0.254829586 : f32
    %504 = vector.broadcast %cst_194 : f32 to vector<16x16xf32>
    %505 = arith.addf %504, %503 : vector<16x16xf32>
    %506 = arith.mulf %492, %505 : vector<16x16xf32>
    %cst_195 = arith.constant 0.000000e+00 : f32
    %507 = vector.broadcast %cst_195 : f32 to vector<16x16xf32>
    %508 = arith.subf %507, %486 : vector<16x16xf32>
    %509 = arith.mulf %508, %486 : vector<16x16xf32>
    %510 = math.exp %509 : vector<16x16xf32>
    %511 = arith.mulf %506, %510 : vector<16x16xf32>
    %cst_196 = arith.constant 1.000000e+00 : f32
    %512 = vector.broadcast %cst_196 : f32 to vector<16x16xf32>
    %513 = arith.subf %512, %511 : vector<16x16xf32>
    %cst_197 = arith.constant 0.000000e+00 : f32
    %514 = vector.broadcast %cst_197 : f32 to vector<16x16xf32>
    %515 = arith.cmpf olt, %485, %514 : vector<16x16xf32>
    %cst_198 = arith.constant 0.000000e+00 : f32
    %516 = vector.broadcast %cst_198 : f32 to vector<16x16xf32>
    %517 = arith.subf %516, %513 : vector<16x16xf32>
    %518 = arith.select %515, %517, %513 : vector<16x16xi1>, vector<16x16xf32>
    %cst_199 = arith.constant 1.000000e+00 : f32
    %519 = vector.broadcast %cst_199 : f32 to vector<16x16xf32>
    %520 = arith.addf %519, %518 : vector<16x16xf32>
    %521 = arith.mulf %483, %520 : vector<16x16xf32>
    %c0_200 = arith.constant 0 : index
    %c0_201 = arith.constant 0 : index
    %522 = vector.load %arg18[%c0_200, %c0_201] : memref<1x16xf32, #tpu.memory_space<vmem>>, vector<1x16xf32>
    %523 = vector.broadcast %522 : vector<1x16xf32> to vector<16x16xf32>
    %524 = arith.mulf %521, %523 : vector<16x16xf32>
    %cst_202 = arith.constant dense<0.000000e+00> : vector<16xf32>
    %525 = vector.multi_reduction <add>, %524, %cst_202 [1] : vector<16x16xf32> to vector<16xf32>
    %526 = vector.shape_cast %525 : vector<16xf32> to vector<16x1xf32>
    %527 = vector.shape_cast %526 : vector<16x1xf32> to vector<2x8x1xf32>
    %cst_203 = arith.constant dense<0xFF800000> : vector<2x1xf32>
    %528 = vector.multi_reduction <maximumf>, %527, %cst_203 [1] : vector<2x8x1xf32> to vector<2x1xf32>
    %529 = vector.shape_cast %528 : vector<2x1xf32> to vector<2x1x1xf32>
    %530 = vector.broadcast %529 : vector<2x1x1xf32> to vector<2x8x1xf32>
    %531 = arith.subf %527, %530 : vector<2x8x1xf32>
    %532 = math.exp %531 : vector<2x8x1xf32>
    %cst_204 = arith.constant dense<0.000000e+00> : vector<2x1xf32>
    %533 = vector.multi_reduction <add>, %532, %cst_204 [1] : vector<2x8x1xf32> to vector<2x1xf32>
    %534 = vector.shape_cast %533 : vector<2x1xf32> to vector<2x1x1xf32>
    %535 = tpu.reciprocal %534 : vector<2x1x1xf32> -> vector<2x1x1xf32>
    %536 = vector.broadcast %535 : vector<2x1x1xf32> to vector<2x8x1xf32>
    %537 = arith.mulf %532, %536 : vector<2x8x1xf32>
    %538 = vector.shape_cast %475 : vector<16x32xf32> to vector<2x8x32xf32>
    %539 = vector.broadcast %537 : vector<2x8x1xf32> to vector<2x8x32xf32>
    %540 = arith.mulf %538, %539 : vector<2x8x32xf32>
    %cst_205 = arith.constant dense<0.000000e+00> : vector<2x32xf32>
    %541 = vector.multi_reduction <add>, %540, %cst_205 [1] : vector<2x8x32xf32> to vector<2x32xf32>
    %c0_206 = arith.constant 0 : index
    %c0_207 = arith.constant 0 : index
    %542 = vector.load %arg19[%c0_206, %c0_207] : memref<2x32xf32, #tpu.memory_space<vmem>>, vector<2x32xf32>
    tpu.vector_store %arg19[%c0_206, %c0_207], %541 {strides = array<i32>} : memref<2x32xf32, #tpu.memory_space<vmem>>, vector<2x32xf32>,
    return
  }
  func.func @transform_0(%arg0: i32) -> (i32, i32) {
    %c0_i32 = arith.constant 0 : i32
    %c0_i32_0 = arith.constant 0 : i32
    return %arg0, %c0_i32 : i32, i32
  }
  func.func @transform_1(%arg0: i32) -> (i32, i32) {
    %c0_i32 = arith.constant 0 : i32
    %c0_i32_0 = arith.constant 0 : i32
    %c0_i32_1 = arith.constant 0 : i32
    return %c0_i32, %c0_i32_0 : i32, i32
  }
  func.func @transform_2(%arg0: i32) -> (i32, i32) {
    %c0_i32 = arith.constant 0 : i32
    %c0_i32_0 = arith.constant 0 : i32
    %c0_i32_1 = arith.constant 0 : i32
    return %c0_i32, %c0_i32_0 : i32, i32
  }
  func.func @transform_3(%arg0: i32) -> (i32, i32, i32) {
    %c0_i32 = arith.constant 0 : i32
    %c0_i32_0 = arith.constant 0 : i32
    %c0_i32_1 = arith.constant 0 : i32
    %c0_i32_2 = arith.constant 0 : i32
    return %c0_i32, %c0_i32_0, %c0_i32_1 : i32, i32, i32
  }
  func.func @transform_4(%arg0: i32) -> (i32, i32, i32) {
    %c0_i32 = arith.constant 0 : i32
    %c0_i32_0 = arith.constant 0 : i32
    %c0_i32_1 = arith.constant 0 : i32
    %c0_i32_2 = arith.constant 0 : i32
    return %c0_i32, %c0_i32_0, %c0_i32_1 : i32, i32, i32
  }
  func.func @transform_5(%arg0: i32) -> (i32, i32, i32) {
    %c0_i32 = arith.constant 0 : i32
    %c0_i32_0 = arith.constant 0 : i32
    %c0_i32_1 = arith.constant 0 : i32
    %c0_i32_2 = arith.constant 0 : i32
    return %c0_i32, %c0_i32_0, %c0_i32_1 : i32, i32, i32
  }
  func.func @transform_6(%arg0: i32) -> (i32, i32, i32) {
    %c0_i32 = arith.constant 0 : i32
    %c0_i32_0 = arith.constant 0 : i32
    %c0_i32_1 = arith.constant 0 : i32
    %c0_i32_2 = arith.constant 0 : i32
    return %c0_i32, %c0_i32_0, %c0_i32_1 : i32, i32, i32
  }
  func.func @transform_7(%arg0: i32) -> (i32, i32, i32) {
    %c0_i32 = arith.constant 0 : i32
    %c0_i32_0 = arith.constant 0 : i32
    %c0_i32_1 = arith.constant 0 : i32
    %c0_i32_2 = arith.constant 0 : i32
    return %c0_i32, %c0_i32_0, %c0_i32_1 : i32, i32, i32
  }
  func.func @transform_8(%arg0: i32) -> (i32, i32, i32) {
    %c0_i32 = arith.constant 0 : i32
    %c0_i32_0 = arith.constant 0 : i32
    %c0_i32_1 = arith.constant 0 : i32
    %c0_i32_2 = arith.constant 0 : i32
    return %c0_i32, %c0_i32_0, %c0_i32_1 : i32, i32, i32
  }
  func.func @transform_9(%arg0: i32) -> (i32, i32, i32) {
    %c0_i32 = arith.constant 0 : i32
    %c0_i32_0 = arith.constant 0 : i32
    %c0_i32_1 = arith.constant 0 : i32
    %c0_i32_2 = arith.constant 0 : i32
    return %c0_i32, %c0_i32_0, %c0_i32_1 : i32, i32, i32
  }
  func.func @transform_10(%arg0: i32) -> (i32, i32, i32) {
    %c0_i32 = arith.constant 0 : i32
    %c0_i32_0 = arith.constant 0 : i32
    %c0_i32_1 = arith.constant 0 : i32
    %c0_i32_2 = arith.constant 0 : i32
    return %c0_i32, %c0_i32_0, %c0_i32_1 : i32, i32, i32
  }
  func.func @transform_11(%arg0: i32) -> (i32, i32, i32) {
    %c0_i32 = arith.constant 0 : i32
    %c0_i32_0 = arith.constant 0 : i32
    %c0_i32_1 = arith.constant 0 : i32
    %c0_i32_2 = arith.constant 0 : i32
    return %c0_i32, %c0_i32_0, %c0_i32_1 : i32, i32, i32
  }
  func.func @transform_12(%arg0: i32) -> (i32, i32, i32) {
    %c0_i32 = arith.constant 0 : i32
    %c0_i32_0 = arith.constant 0 : i32
    %c0_i32_1 = arith.constant 0 : i32
    %c0_i32_2 = arith.constant 0 : i32
    return %c0_i32, %c0_i32_0, %c0_i32_1 : i32, i32, i32
  }
  func.func @transform_13(%arg0: i32) -> (i32, i32, i32) {
    %c0_i32 = arith.constant 0 : i32
    %c0_i32_0 = arith.constant 0 : i32
    %c0_i32_1 = arith.constant 0 : i32
    %c0_i32_2 = arith.constant 0 : i32
    return %c0_i32, %c0_i32_0, %c0_i32_1 : i32, i32, i32
  }
  func.func @transform_14(%arg0: i32) -> (i32, i32, i32) {
    %c0_i32 = arith.constant 0 : i32
    %c0_i32_0 = arith.constant 0 : i32
    %c0_i32_1 = arith.constant 0 : i32
    %c0_i32_2 = arith.constant 0 : i32
    return %c0_i32, %c0_i32_0, %c0_i32_1 : i32, i32, i32
  }
  func.func @transform_15(%arg0: i32) -> (i32, i32) {
    %c0_i32 = arith.constant 0 : i32
    %c0_i32_0 = arith.constant 0 : i32
    %c0_i32_1 = arith.constant 0 : i32
    return %c0_i32, %c0_i32_0 : i32, i32
  }
  func.func @transform_16(%arg0: i32) -> (i32, i32) {
    %c0_i32 = arith.constant 0 : i32
    %c0_i32_0 = arith.constant 0 : i32
    %c0_i32_1 = arith.constant 0 : i32
    return %c0_i32, %c0_i32_0 : i32, i32
  }
  func.func @transform_17(%arg0: i32) -> (i32, i32) {
    %c0_i32 = arith.constant 0 : i32
    %c0_i32_0 = arith.constant 0 : i32
    %c0_i32_1 = arith.constant 0 : i32
    return %c0_i32, %c0_i32_0 : i32, i32
  }
  func.func @transform_18(%arg0: i32) -> (i32, i32) {
    %c0_i32 = arith.constant 0 : i32
    %c0_i32_0 = arith.constant 0 : i32
    return %arg0, %c0_i32 : i32, i32
  }
}

</mosaic_0001>

<llo_original>
// kernel: tpu_custom_call.1
$region0: #{tpu_custom_call.1}
  #allocation0 [shape = 'u32[]', space=smem, size = 0x4, offset = 0x4, fixed_abs, tag = 'smem constant byte address 0x4 - core index']
  #allocation1 [shape = 'u32[144,128]{1,0:T(1,128)}', space=vmem, size = 0x12000, scoped, tag = 'internal scratch']
  %s0 = inlined_call_operand.vmem [shape: f32[16,16], index: 0, kind: input, shape index: {}]
  %s1 = inlined_call_operand.vmem [shape: f32[16,32], index: 1, kind: input, shape index: {}]
  %s2 = inlined_call_operand.vmem [shape: bf16[16,32], index: 2, kind: input, shape index: {}]
  %s3 = inlined_call_operand.vmem [shape: bf16[2,32,96], index: 3, kind: input, shape index: {}]
  %s4 = inlined_call_operand.vmem [shape: f32[2,1,96], index: 4, kind: input, shape index: {}]
  %s5 = inlined_call_operand.vmem [shape: bf16[2,32,32], index: 5, kind: input, shape index: {}]
  %s6 = inlined_call_operand.vmem [shape: f32[2,1,32], index: 6, kind: input, shape index: {}]
  %s7 = inlined_call_operand.vmem [shape: f32[2,1,32], index: 7, kind: input, shape index: {}]
  %s8 = inlined_call_operand.vmem [shape: f32[2,1,32], index: 8, kind: input, shape index: {}]
  %s9 = inlined_call_operand.vmem [shape: bf16[2,32,128], index: 9, kind: input, shape index: {}]
  %s10 = inlined_call_operand.vmem [shape: f32[2,1,128], index: 10, kind: input, shape index: {}]
  %s11 = inlined_call_operand.vmem [shape: bf16[2,128,32], index: 11, kind: input, shape index: {}]
  %s12 = inlined_call_operand.vmem [shape: f32[2,1,32], index: 12, kind: input, shape index: {}]
  %s13 = inlined_call_operand.vmem [shape: f32[2,1,32], index: 13, kind: input, shape index: {}]
  %s14 = inlined_call_operand.vmem [shape: f32[2,1,32], index: 14, kind: input, shape index: {}]
  %s15 = inlined_call_operand.vmem [shape: bf16[32,16], index: 15, kind: input, shape index: {}]
  %s16 = inlined_call_operand.vmem [shape: f32[1,16], index: 16, kind: input, shape index: {}]
  %s17 = inlined_call_operand.vmem [shape: f32[1,16], index: 17, kind: input, shape index: {}]
  %s18 = inlined_call_operand.hbm [shape: f32[2,32], index: 18, kind: output, shape index: {}]
  %s19 = sld [smem:[#allocation0]]
  $region82: #{tpu_custom_call.1} parent=0
    _
  %s21 = ssub.s32 1, %s19
  %s22 = scalar_select 0, %s21, %s19
  $region1: #{tpu_custom_call.1} parent=0
    #allocation2 [shape = 'u8[1024]{0}', space=vmem, size = 0x400, scoped, tag = 'output window, operand 0, single buffered']
    #allocation3 [shape = 's32[1]{0}', space=sflag, size = 0x4, scoped, tag = 'scoped memory for tpu_custom_call.1']
    %23 = vsyncpa [#allocation3], 0
    // Predicated region
    $region2: #{tpu_custom_call.1} parent=1 // pred_check
      _
    $region3: #{tpu_custom_call.1} parent=1 // pred_check_branch
      %25 = sbr.rel (0) target = $region5
    $region4: #{tpu_custom_call.1} parent=1 // pred_region
      _
    $region5: #{tpu_custom_call.1} parent=1 // pred_fallthru
      _
    // Predicated region
    $region6: #{tpu_custom_call.1} parent=1 // pred_check
      _
    $region7: #{tpu_custom_call.1} parent=1 // pred_check_branch
      %27 = sbr.rel (0) target = $region9
    $region8: #{tpu_custom_call.1} parent=1 // pred_region
      _
    $region9: #{tpu_custom_call.1} parent=1 // pred_fallthru
      _
    // Predicated region
    $region10: #{tpu_custom_call.1} parent=1 // pred_check
      _
    $region11: #{tpu_custom_call.1} parent=1 // pred_check_branch
      %29 = sbr.rel (0) target = $region13
    $region12: #{tpu_custom_call.1} parent=1 // pred_region
      _
    $region13: #{tpu_custom_call.1} parent=1 // pred_fallthru
      _
    // Predicated region
    $region14: #{tpu_custom_call.1} parent=1 // pred_check
      _
    $region15: #{tpu_custom_call.1} parent=1 // pred_check_branch
      %31 = sbr.rel (0) target = $region17
    $region16: #{tpu_custom_call.1} parent=1 // pred_region
      _
    $region17: #{tpu_custom_call.1} parent=1 // pred_fallthru
      _
    // Predicated region
    $region18: #{tpu_custom_call.1} parent=1 // pred_check
      _
    $region19: #{tpu_custom_call.1} parent=1 // pred_check_branch
      %33 = sbr.rel (0) target = $region21
    $region20: #{tpu_custom_call.1} parent=1 // pred_region
      _
    $region21: #{tpu_custom_call.1} parent=1 // pred_fallthru
      _
    // Predicated region
    $region22: #{tpu_custom_call.1} parent=1 // pred_check
      _
    $region23: #{tpu_custom_call.1} parent=1 // pred_check_branch
      %35 = sbr.rel (0) target = $region25
    $region24: #{tpu_custom_call.1} parent=1 // pred_region
      _
    $region25: #{tpu_custom_call.1} parent=1 // pred_fallthru
      _
    // Predicated region
    $region26: #{tpu_custom_call.1} parent=1 // pred_check
      _
    $region27: #{tpu_custom_call.1} parent=1 // pred_check_branch
      %37 = sbr.rel (0) target = $region29
    $region28: #{tpu_custom_call.1} parent=1 // pred_region
      _
    $region29: #{tpu_custom_call.1} parent=1 // pred_fallthru
      _
    // Predicated region
    $region30: #{tpu_custom_call.1} parent=1 // pred_check
      _
    $region31: #{tpu_custom_call.1} parent=1 // pred_check_branch
      %39 = sbr.rel (0) target = $region33
    $region32: #{tpu_custom_call.1} parent=1 // pred_region
      _
    $region33: #{tpu_custom_call.1} parent=1 // pred_fallthru
      _
    // Predicated region
    $region34: #{tpu_custom_call.1} parent=1 // pred_check
      _
    $region35: #{tpu_custom_call.1} parent=1 // pred_check_branch
      %41 = sbr.rel (0) target = $region37
    $region36: #{tpu_custom_call.1} parent=1 // pred_region
      _
    $region37: #{tpu_custom_call.1} parent=1 // pred_fallthru
      _
    // Predicated region
    $region38: #{tpu_custom_call.1} parent=1 // pred_check
      _
    $region39: #{tpu_custom_call.1} parent=1 // pred_check_branch
      %43 = sbr.rel (0) target = $region41
    $region40: #{tpu_custom_call.1} parent=1 // pred_region
      _
    $region41: #{tpu_custom_call.1} parent=1 // pred_fallthru
      _
    // Predicated region
    $region42: #{tpu_custom_call.1} parent=1 // pred_check
      _
    $region43: #{tpu_custom_call.1} parent=1 // pred_check_branch
      %45 = sbr.rel (0) target = $region45
    $region44: #{tpu_custom_call.1} parent=1 // pred_region
      _
    $region45: #{tpu_custom_call.1} parent=1 // pred_fallthru
      _
    // Predicated region
    $region46: #{tpu_custom_call.1} parent=1 // pred_check
      _
    $region47: #{tpu_custom_call.1} parent=1 // pred_check_branch
      %47 = sbr.rel (0) target = $region49
    $region48: #{tpu_custom_call.1} parent=1 // pred_region
      _
    $region49: #{tpu_custom_call.1} parent=1 // pred_fallthru
      _
    // Predicated region
    $region50: #{tpu_custom_call.1} parent=1 // pred_check
      _
    $region51: #{tpu_custom_call.1} parent=1 // pred_check_branch
      %49 = sbr.rel (0) target = $region53
    $region52: #{tpu_custom_call.1} parent=1 // pred_region
      _
    $region53: #{tpu_custom_call.1} parent=1 // pred_fallthru
      _
    // Predicated region
    $region54: #{tpu_custom_call.1} parent=1 // pred_check
      _
    $region55: #{tpu_custom_call.1} parent=1 // pred_check_branch
      %51 = sbr.rel (0) target = $region57
    $region56: #{tpu_custom_call.1} parent=1 // pred_region
      _
    $region57: #{tpu_custom_call.1} parent=1 // pred_fallthru
      _
    // Predicated region
    $region58: #{tpu_custom_call.1} parent=1 // pred_check
      _
    $region59: #{tpu_custom_call.1} parent=1 // pred_check_branch
      %53 = sbr.rel (0) target = $region61
    $region60: #{tpu_custom_call.1} parent=1 // pred_region
      _
    $region61: #{tpu_custom_call.1} parent=1 // pred_fallthru
      _
    // Predicated region
    $region62: #{tpu_custom_call.1} parent=1 // pred_check
      _
    $region63: #{tpu_custom_call.1} parent=1 // pred_check_branch
      %55 = sbr.rel (0) target = $region65
    $region64: #{tpu_custom_call.1} parent=1 // pred_region
      _
    $region65: #{tpu_custom_call.1} parent=1 // pred_fallthru
      _
    // Predicated region
    $region66: #{tpu_custom_call.1} parent=1 // pred_check
      _
    $region67: #{tpu_custom_call.1} parent=1 // pred_check_branch
      %57 = sbr.rel (0) target = $region69
    $region68: #{tpu_custom_call.1} parent=1 // pred_region
      _
    $region69: #{tpu_custom_call.1} parent=1 // pred_fallthru
      _
    // Predicated region
    $region70: #{tpu_custom_call.1} parent=1 // pred_check
      _
    $region71: #{tpu_custom_call.1} parent=1 // pred_check_branch
      %59 = sbr.rel (0) target = $region73
    $region72: #{tpu_custom_call.1} parent=1 // pred_region
      _
    $region73: #{tpu_custom_call.1} parent=1 // pred_fallthru
      _
    %v61 = vld [vmem:[%s0] sm:$0xff]
    %v62 = vld [vmem:[%s0 + $0x8] sm:$0xff]
    %v63 = vpack.c.bf16 %v62, %v61
    %v64 = vld [vmem:[%s2] sm:$0xf]
    %v65 = vld [vmem:[%s2 + $0x4] sm:$0xf]
    %v66 = vld [vmem:[%s1] sm:$0xff]
    %v67 = vld [vmem:[%s1 + $0x8] sm:$0xff]
    %v70 = vunpack.c.l.b16 %v64
    %v71 = vunpack.c.l.b16 %v65
    %v72 = vpack.c.b16 %v71, %v70
    %vm74 = vcmask 130048
    %v76 = vsel %vm74, %v63, 0
    %78 = vmatprep.subr.bf16.mxu0 0
    %79 = vmatpush1.bf16.msra.mxu0 %v72
    %80 = vmatprep.subr.bf16.mxu0 0
    %81 = vmatpush1.bf16.msra.mxu0 0
    %82 = vmatprep.subr.bf16.mxu0 0
    %83 = vmatpush1.bf16.msra.mxu0 0
    %84 = vmatprep.subr.bf16.mxu0 0
    %85 = vmatpush1.bf16.msra.mxu0 0
    %86 = vmatprep.subr.bf16.mxu0 0
    %87 = vmatpush1.bf16.msra.mxu0 0
    %88 = vmatprep.subr.bf16.mxu0 0
    %89 = vmatpush1.bf16.msra.mxu0 0
    %90 = vmatprep.subr.bf16.mxu0 0
    %91 = vmatpush1.bf16.msra.mxu0 0
    %92 = vmatprep.subr.bf16.mxu0 0
    %93 = vmatpush1.bf16.msra.mxu0 0
    %94 = vmatprep.subr.bf16.mxu0 0
    %95 = vmatpush1.bf16.msra.mxu0 0
    %96 = vmatprep.subr.bf16.mxu0 0
    %97 = vmatpush1.bf16.msra.mxu0 0
    %98 = vmatprep.subr.bf16.mxu0 0
    %99 = vmatpush1.bf16.msra.mxu0 0
    %100 = vmatprep.subr.bf16.mxu0 0
    %101 = vmatpush1.bf16.msra.mxu0 0
    %102 = vmatprep.subr.bf16.mxu0 0
    %103 = vmatpush1.bf16.msra.mxu0 0
    %104 = vmatprep.subr.bf16.mxu0 0
    %105 = vmatpush1.bf16.msra.mxu0 0
    %106 = vmatprep.subr.bf16.mxu0 0
    %107 = vmatpush1.bf16.msra.mxu0 0
    %108 = vmatprep.subr.bf16.mxu0 0
    %109 = vmatpush1.bf16.msra.mxu0 0
    %110 = vmatprep.mubr.bf16.mxu0 0
    %111 = vmatmul.mubr.bf16.gmra.mrb[0].mxu0 %v76
    %v112 = vpop.f32.mrb[0].mxu0
    %v113 = vadd.f32 %v66, %v112
    %v114 = vpop.f32.mrb[0].mxu0
    %v115 = vpop.f32.mrb[0].mxu0
    %v116 = vadd.f32 %v67, %v115
    %v117 = vpop.f32.mrb[0].mxu0
    %118 = vdwg.mxu0
    %v119 = vld [vmem:[%s3] sm:$0xf]
    %v120 = vld [vmem:[%s3 + $0x4] sm:$0xf]
    %v121 = vld [vmem:[%s3 + $0x8] sm:$0xf]
    %v122 = vld [vmem:[%s3 + $0xc] sm:$0xf]
    %v123 = vld [vmem:[%s5] sm:$0xf]
    %v124 = vld [vmem:[%s5 + $0x4] sm:$0xf]
    %v125 = vld [vmem:[%s5 + $0x8] sm:$0xf]
    %v126 = vld [vmem:[%s5 + $0xc] sm:$0xf]
    %v127 = vld [vmem:[%s9] sm:$0xf]
    %v128 = vld [vmem:[%s9 + $0x4] sm:$0xf]
    %v129 = vld [vmem:[%s9 + $0x8] sm:$0xf]
    %v130 = vld [vmem:[%s9 + $0xc] sm:$0xf]
    %v131 = vld [vmem:[%s11] sm:$0xf]
    %v132 = vld [vmem:[%s11 + $0x4] sm:$0xf]
    %v133 = vld [vmem:[%s11 + $0x8] sm:$0xf]
    %v134 = vld [vmem:[%s11 + $0xc] sm:$0xf]
    %v135 = vld [vmem:[%s11 + $0x10] sm:$0xf]
    %v136 = vld [vmem:[%s11 + $0x14] sm:$0xf]
    %v137 = vld [vmem:[%s11 + $0x18] sm:$0xf]
    %v138 = vld [vmem:[%s11 + $0x1c] sm:$0xf]
    %v139 = vld [vmem:[%s11 + $0x20] sm:$0xf]
    %v140 = vld [vmem:[%s11 + $0x24] sm:$0xf]
    %v141 = vld [vmem:[%s11 + $0x28] sm:$0xf]
    %v142 = vld [vmem:[%s11 + $0x2c] sm:$0xf]
    %v143 = vld [vmem:[%s11 + $0x30] sm:$0xf]
    %v144 = vld [vmem:[%s11 + $0x34] sm:$0xf]
    %v145 = vld [vmem:[%s11 + $0x38] sm:$0xf]
    %v146 = vld [vmem:[%s11 + $0x3c] sm:$0xf]
    %v147 = vpack.c.bf16 %v116, %v113
    %v148 = vld [vmem:[%s4] sm:$0x1]
    %v150 = vlaneseq
    %v151 = vshrl.u32 %v150, 7
    %v152 = vsub.s32 0, %v151
    %v153 = vrot.slane %v148, %v152
    %v159 = vunpack.c.l.b16 %v119
    %v160 = vunpack.c.l.b16 %v120
    %v161 = vunpack.c.l.b16 %v121
    %v162 = vunpack.c.l.b16 %v122
    %v163 = vpack.c.b16 %v160, %v159
    %v164 = vpack.c.b16 %v162, %v161
    %vm167 = vcmask 261120
    %v169 = vsel %vm167, %v147, 0
    %171 = vmatprep.subr.bf16.mxu0 0
    %172 = vmatpush1.bf16.msra.mxu0 %v163
    %173 = vmatprep.subr.bf16.mxu0 0
    %174 = vmatpush1.bf16.msra.mxu0 %v164
    %175 = vmatprep.subr.bf16.mxu0 0
    %176 = vmatpush1.bf16.msra.mxu0 0
    %177 = vmatprep.subr.bf16.mxu0 0
    %178 = vmatpush1.bf16.msra.mxu0 0
    %179 = vmatprep.subr.bf16.mxu0 0
    %180 = vmatpush1.bf16.msra.mxu0 0
    %181 = vmatprep.subr.bf16.mxu0 0
    %182 = vmatpush1.bf16.msra.mxu0 0
    %183 = vmatprep.subr.bf16.mxu0 0
    %184 = vmatpush1.bf16.msra.mxu0 0
    %185 = vmatprep.subr.bf16.mxu0 0
    %186 = vmatpush1.bf16.msra.mxu0 0
    %187 = vmatprep.subr.bf16.mxu0 0
    %188 = vmatpush1.bf16.msra.mxu0 0
    %189 = vmatprep.subr.bf16.mxu0 0
    %190 = vmatpush1.bf16.msra.mxu0 0
    %191 = vmatprep.subr.bf16.mxu0 0
    %192 = vmatpush1.bf16.msra.mxu0 0
    %193 = vmatprep.subr.bf16.mxu0 0
    %194 = vmatpush1.bf16.msra.mxu0 0
    %195 = vmatprep.subr.bf16.mxu0 0
    %196 = vmatpush1.bf16.msra.mxu0 0
    %197 = vmatprep.subr.bf16.mxu0 0
    %198 = vmatpush1.bf16.msra.mxu0 0
    %199 = vmatprep.subr.bf16.mxu0 0
    %200 = vmatpush1.bf16.msra.mxu0 0
    %201 = vmatprep.subr.bf16.mxu0 0
    %202 = vmatpush1.bf16.msra.mxu0 0
    %203 = vmatprep.mubr.bf16.mxu0 0
    %204 = vmatmul.mubr.bf16.gmra.mrb[0].mxu0 %v169
    %v205 = vpop.f32.mrb[0].mxu0
    %v206 = vadd.f32 %v153, %v205
    %v207 = vpop.f32.mrb[0].mxu0
    %v208 = vpop.f32.mrb[0].mxu0
    %v209 = vadd.f32 %v153, %v208
    %v210 = vpop.f32.mrb[0].mxu0
    %211 = vdwg.mxu0
    %v212 = vpack.c.bf16 %v206, %v206
    %v213 = vpack.c.bf16 %v209, %v209
    %215 = vrot.lane.b32.xlu0 %v212, 96
    %v216 = vpop.permute.xlu0 %215
    %vm217 = vcmask 64512
    %v219 = vsel %vm217, %v212, 0
    %v222 = vsel %vm217, %v216, 0
    %224 = vmatprep.subr.bf16.mxu0 0
    %225 = vmatpush1.bf16.xpose.msra.mxu0 %v222
    %226 = vmatprep.subr.bf16.mxu0 0
    %227 = vmatpush1.bf16.xpose.msra.mxu0 0
    %228 = vmatprep.subr.bf16.mxu0 0
    %229 = vmatpush1.bf16.xpose.msra.mxu0 0
    %230 = vmatprep.subr.bf16.mxu0 0
    %231 = vmatpush1.bf16.xpose.msra.mxu0 0
    %232 = vmatprep.subr.bf16.mxu0 0
    %233 = vmatpush1.bf16.xpose.msra.mxu0 0
    %234 = vmatprep.subr.bf16.mxu0 0
    %235 = vmatpush1.bf16.xpose.msra.mxu0 0
    %236 = vmatprep.subr.bf16.mxu0 0
    %237 = vmatpush1.bf16.xpose.msra.mxu0 0
    %238 = vmatprep.subr.bf16.mxu0 0
    %239 = vmatpush1.bf16.xpose.msra.mxu0 0
    %240 = vmatprep.subr.bf16.mxu0 0
    %241 = vmatpush1.bf16.xpose.msra.mxu0 0
    %242 = vmatprep.subr.bf16.mxu0 0
    %243 = vmatpush1.bf16.xpose.msra.mxu0 0
    %244 = vmatprep.subr.bf16.mxu0 0
    %245 = vmatpush1.bf16.xpose.msra.mxu0 0
    %246 = vmatprep.subr.bf16.mxu0 0
    %247 = vmatpush1.bf16.xpose.msra.mxu0 0
    %248 = vmatprep.subr.bf16.mxu0 0
    %249 = vmatpush1.bf16.xpose.msra.mxu0 0
    %250 = vmatprep.subr.bf16.mxu0 0
    %251 = vmatpush1.bf16.xpose.msra.mxu0 0
    %252 = vmatprep.subr.bf16.mxu0 0
    %253 = vmatpush1.bf16.xpose.msra.mxu0 0
    %254 = vmatprep.subr.bf16.mxu0 0
    %255 = vmatpush1.bf16.xpose.msra.mxu0 0
    %256 = vmatprep.mubr.bf16.mxu0 0
    %257 = vmatmul.mubr.bf16.gmra.mrb[0].mxu0 %v219
    %v258 = vpop.f32.mrb[0].mxu0
    %v259 = vadd.f32 0.0, %v258
    %v260 = vpop.f32.mrb[0].mxu0
    %v261 = vpop.f32.mrb[0].mxu0
    %v262 = vpop.f32.mrb[0].mxu0
    %263 = vdwg.mxu0
    %265 = vrot.lane.b32.xlu0 %v213, 96
    %v266 = vpop.permute.xlu0 %265
    %v268 = vsel %vm217, %v213, 0
    %v271 = vsel %vm217, %v266, 0
    %273 = vmatprep.subr.bf16.mxu0 0
    %274 = vmatpush1.bf16.xpose.msra.mxu0 %v271
    %275 = vmatprep.subr.bf16.mxu0 0
    %276 = vmatpush1.bf16.xpose.msra.mxu0 0
    %277 = vmatprep.subr.bf16.mxu0 0
    %278 = vmatpush1.bf16.xpose.msra.mxu0 0
    %279 = vmatprep.subr.bf16.mxu0 0
    %280 = vmatpush1.bf16.xpose.msra.mxu0 0
    %281 = vmatprep.subr.bf16.mxu0 0
    %282 = vmatpush1.bf16.xpose.msra.mxu0 0
    %283 = vmatprep.subr.bf16.mxu0 0
    %284 = vmatpush1.bf16.xpose.msra.mxu0 0
    %285 = vmatprep.subr.bf16.mxu0 0
    %286 = vmatpush1.bf16.xpose.msra.mxu0 0
    %287 = vmatprep.subr.bf16.mxu0 0
    %288 = vmatpush1.bf16.xpose.msra.mxu0 0
    %289 = vmatprep.subr.bf16.mxu0 0
    %290 = vmatpush1.bf16.xpose.msra.mxu0 0
    %291 = vmatprep.subr.bf16.mxu0 0
    %292 = vmatpush1.bf16.xpose.msra.mxu0 0
    %293 = vmatprep.subr.bf16.mxu0 0
    %294 = vmatpush1.bf16.xpose.msra.mxu0 0
    %295 = vmatprep.subr.bf16.mxu0 0
    %296 = vmatpush1.bf16.xpose.msra.mxu0 0
    %297 = vmatprep.subr.bf16.mxu0 0
    %298 = vmatpush1.bf16.xpose.msra.mxu0 0
    %299 = vmatprep.subr.bf16.mxu0 0
    %300 = vmatpush1.bf16.xpose.msra.mxu0 0
    %301 = vmatprep.subr.bf16.mxu0 0
    %302 = vmatpush1.bf16.xpose.msra.mxu0 0
    %303 = vmatprep.subr.bf16.mxu0 0
    %304 = vmatpush1.bf16.xpose.msra.mxu0 0
    %305 = vmatprep.mubr.bf16.mxu0 0
    %306 = vmatmul.mubr.bf16.gmra.mrb[0].mxu0 %v268
    %v307 = vpop.f32.mrb[0].mxu0
    %v308 = vadd.f32 0.0, %v307
    %v309 = vpop.f32.mrb[0].mxu0
    %v310 = vpop.f32.mrb[0].mxu0
    %v311 = vpop.f32.mrb[0].mxu0
    %312 = vdwg.mxu0
    %v313 = vmul.f32 %v259, 0.35355338
    %v314 = vmul.f32 %v308, 0.35355338
    %v315 = vsel %vm217, %v313, -inf
    %316 = vmax.xlane.f32.xlu0 %v315
    %v317 = vpop.xlane.xlu0 %316
    %v318 = vsel %vm217, %v314, -inf
    %319 = vmax.xlane.f32.xlu0 %v318
    %v320 = vpop.xlane.xlu0 %319
    %v321 = vsub.f32 %v313, %v317
    %v322 = vsub.f32 %v314, %v320
    %v323 = vmul.f32 %v321, 1.442695
    %v324 = vpow.pop %v323
    %v325 = vmul.f32 %v322, 1.442695
    %v326 = vpow.pop %v325
    %v327 = vsel %vm217, %v324, 0.0
    %328 = vadd.xlane.f32.xlu0 %v327
    %v329 = vpop.xlane.xlu0 %328
    %v330 = vsel %vm217, %v326, 0.0
    %331 = vadd.xlane.f32.xlu0 %v330
    %v332 = vpop.xlane.xlu0 %331
    %v333 = vrcp.pop %v329
    %v334 = vrcp.pop %v332
    %v335 = vmul.f32 %v324, %v333
    %v336 = vmul.f32 %v326, %v334
    %v337 = vpack.c.bf16 %v335, %v335
    %v338 = vpack.c.bf16 %v336, %v336
    %339 = vrot.lane.b32.xlu0 %v212, 64
    %v340 = vpop.permute.xlu0 %339
    %v342 = vsel %vm217, %v337, 0
    %vm344 = vcmask 1043456
    %v346 = vsel %vm344, %v340, 0
    %348 = vmatprep.subr.bf16.mxu0 0
    %349 = vmatpush1.bf16.msra.mxu0 %v346
    %350 = vmatprep.subr.bf16.mxu0 0
    %351 = vmatpush1.bf16.msra.mxu0 0
    %352 = vmatprep.subr.bf16.mxu0 0
    %353 = vmatpush1.bf16.msra.mxu0 0
    %354 = vmatprep.subr.bf16.mxu0 0
    %355 = vmatpush1.bf16.msra.mxu0 0
    %356 = vmatprep.subr.bf16.mxu0 0
    %357 = vmatpush1.bf16.msra.mxu0 0
    %358 = vmatprep.subr.bf16.mxu0 0
    %359 = vmatpush1.bf16.msra.mxu0 0
    %360 = vmatprep.subr.bf16.mxu0 0
    %361 = vmatpush1.bf16.msra.mxu0 0
    %362 = vmatprep.subr.bf16.mxu0 0
    %363 = vmatpush1.bf16.msra.mxu0 0
    %364 = vmatprep.subr.bf16.mxu0 0
    %365 = vmatpush1.bf16.msra.mxu0 0
    %366 = vmatprep.subr.bf16.mxu0 0
    %367 = vmatpush1.bf16.msra.mxu0 0
    %368 = vmatprep.subr.bf16.mxu0 0
    %369 = vmatpush1.bf16.msra.mxu0 0
    %370 = vmatprep.subr.bf16.mxu0 0
    %371 = vmatpush1.bf16.msra.mxu0 0
    %372 = vmatprep.subr.bf16.mxu0 0
    %373 = vmatpush1.bf16.msra.mxu0 0
    %374 = vmatprep.subr.bf16.mxu0 0
    %375 = vmatpush1.bf16.msra.mxu0 0
    %376 = vmatprep.subr.bf16.mxu0 0
    %377 = vmatpush1.bf16.msra.mxu0 0
    %378 = vmatprep.subr.bf16.mxu0 0
    %379 = vmatpush1.bf16.msra.mxu0 0
    %380 = vmatprep.mubr.bf16.mxu0 0
    %381 = vmatmul.mubr.bf16.gmra.mrb[0].mxu0 %v342
    %v382 = vpop.f32.mrb[0].mxu0
    %v383 = vadd.f32 0.0, %v382
    %v384 = vpop.f32.mrb[0].mxu0
    %v385 = vpop.f32.mrb[0].mxu0
    %v386 = vpop.f32.mrb[0].mxu0
    %387 = vdwg.mxu0
    %388 = vrot.lane.b32.xlu0 %v213, 64
    %v389 = vpop.permute.xlu0 %388
    %v391 = vsel %vm217, %v338, 0
    %v394 = vsel %vm344, %v389, 0
    %396 = vmatprep.subr.bf16.mxu0 0
    %397 = vmatpush1.bf16.msra.mxu0 %v394
    %398 = vmatprep.subr.bf16.mxu0 0
    %399 = vmatpush1.bf16.msra.mxu0 0
    %400 = vmatprep.subr.bf16.mxu0 0
    %401 = vmatpush1.bf16.msra.mxu0 0
    %402 = vmatprep.subr.bf16.mxu0 0
    %403 = vmatpush1.bf16.msra.mxu0 0
    %404 = vmatprep.subr.bf16.mxu0 0
    %405 = vmatpush1.bf16.msra.mxu0 0
    %406 = vmatprep.subr.bf16.mxu0 0
    %407 = vmatpush1.bf16.msra.mxu0 0
    %408 = vmatprep.subr.bf16.mxu0 0
    %409 = vmatpush1.bf16.msra.mxu0 0
    %410 = vmatprep.subr.bf16.mxu0 0
    %411 = vmatpush1.bf16.msra.mxu0 0
    %412 = vmatprep.subr.bf16.mxu0 0
    %413 = vmatpush1.bf16.msra.mxu0 0
    %414 = vmatprep.subr.bf16.mxu0 0
    %415 = vmatpush1.bf16.msra.mxu0 0
    %416 = vmatprep.subr.bf16.mxu0 0
    %417 = vmatpush1.bf16.msra.mxu0 0
    %418 = vmatprep.subr.bf16.mxu0 0
    %419 = vmatpush1.bf16.msra.mxu0 0
    %420 = vmatprep.subr.bf16.mxu0 0
    %421 = vmatpush1.bf16.msra.mxu0 0
    %422 = vmatprep.subr.bf16.mxu0 0
    %423 = vmatpush1.bf16.msra.mxu0 0
    %424 = vmatprep.subr.bf16.mxu0 0
    %425 = vmatpush1.bf16.msra.mxu0 0
    %426 = vmatprep.subr.bf16.mxu0 0
    %427 = vmatpush1.bf16.msra.mxu0 0
    %428 = vmatprep.mubr.bf16.mxu0 0
    %429 = vmatmul.mubr.bf16.gmra.mrb[0].mxu0 %v391
    %v430 = vpop.f32.mrb[0].mxu0
    %v431 = vadd.f32 0.0, %v430
    %v432 = vpop.f32.mrb[0].mxu0
    %v433 = vpop.f32.mrb[0].mxu0
    %v434 = vpop.f32.mrb[0].mxu0
    %435 = vdwg.mxu0
    %v436 = vpack.c.bf16 %v431, %v383
    %437 = vrot.lane.b32.xlu0 %v212, 120
    %v438 = vpop.permute.xlu0 %437
    %439 = vrot.lane.b32.xlu0 %v212, 88
    %v440 = vpop.permute.xlu0 %439
    %v442 = vsel %vm217, %v438, 0
    %v445 = vsel %vm217, %v440, 0
    %447 = vmatprep.subr.bf16.mxu0 0
    %448 = vmatpush1.bf16.xpose.msra.mxu0 %v445
    %449 = vmatprep.subr.bf16.mxu0 0
    %450 = vmatpush1.bf16.xpose.msra.mxu0 0
    %451 = vmatprep.subr.bf16.mxu0 0
    %452 = vmatpush1.bf16.xpose.msra.mxu0 0
    %453 = vmatprep.subr.bf16.mxu0 0
    %454 = vmatpush1.bf16.xpose.msra.mxu0 0
    %455 = vmatprep.subr.bf16.mxu0 0
    %456 = vmatpush1.bf16.xpose.msra.mxu0 0
    %457 = vmatprep.subr.bf16.mxu0 0
    %458 = vmatpush1.bf16.xpose.msra.mxu0 0
    %459 = vmatprep.subr.bf16.mxu0 0
    %460 = vmatpush1.bf16.xpose.msra.mxu0 0
    %461 = vmatprep.subr.bf16.mxu0 0
    %462 = vmatpush1.bf16.xpose.msra.mxu0 0
    %463 = vmatprep.subr.bf16.mxu0 0
    %464 = vmatpush1.bf16.xpose.msra.mxu0 0
    %465 = vmatprep.subr.bf16.mxu0 0
    %466 = vmatpush1.bf16.xpose.msra.mxu0 0
    %467 = vmatprep.subr.bf16.mxu0 0
    %468 = vmatpush1.bf16.xpose.msra.mxu0 0
    %469 = vmatprep.subr.bf16.mxu0 0
    %470 = vmatpush1.bf16.xpose.msra.mxu0 0
    %471 = vmatprep.subr.bf16.mxu0 0
    %472 = vmatpush1.bf16.xpose.msra.mxu0 0
    %473 = vmatprep.subr.bf16.mxu0 0
    %474 = vmatpush1.bf16.xpose.msra.mxu0 0
    %475 = vmatprep.subr.bf16.mxu0 0
    %476 = vmatpush1.bf16.xpose.msra.mxu0 0
    %477 = vmatprep.subr.bf16.mxu0 0
    %478 = vmatpush1.bf16.xpose.msra.mxu0 0
    %479 = vmatprep.mubr.bf16.mxu0 0
    %480 = vmatmul.mubr.bf16.gmra.mrb[0].mxu0 %v442
    %v481 = vpop.f32.mrb[0].mxu0
    %v482 = vadd.f32 0.0, %v481
    %v483 = vpop.f32.mrb[0].mxu0
    %v484 = vpop.f32.mrb[0].mxu0
    %v485 = vpop.f32.mrb[0].mxu0
    %486 = vdwg.mxu0
    %487 = vrot.lane.b32.xlu0 %v213, 120
    %v488 = vpop.permute.xlu0 %487
    %489 = vrot.lane.b32.xlu0 %v213, 88
    %v490 = vpop.permute.xlu0 %489
    %v492 = vsel %vm217, %v488, 0
    %v495 = vsel %vm217, %v490, 0
    %497 = vmatprep.subr.bf16.mxu0 0
    %498 = vmatpush1.bf16.xpose.msra.mxu0 %v495
    %499 = vmatprep.subr.bf16.mxu0 0
    %500 = vmatpush1.bf16.xpose.msra.mxu0 0
    %501 = vmatprep.subr.bf16.mxu0 0
    %502 = vmatpush1.bf16.xpose.msra.mxu0 0
    %503 = vmatprep.subr.bf16.mxu0 0
    %504 = vmatpush1.bf16.xpose.msra.mxu0 0
    %505 = vmatprep.subr.bf16.mxu0 0
    %506 = vmatpush1.bf16.xpose.msra.mxu0 0
    %507 = vmatprep.subr.bf16.mxu0 0
    %508 = vmatpush1.bf16.xpose.msra.mxu0 0
    %509 = vmatprep.subr.bf16.mxu0 0
    %510 = vmatpush1.bf16.xpose.msra.mxu0 0
    %511 = vmatprep.subr.bf16.mxu0 0
    %512 = vmatpush1.bf16.xpose.msra.mxu0 0
    %513 = vmatprep.subr.bf16.mxu0 0
    %514 = vmatpush1.bf16.xpose.msra.mxu0 0
    %515 = vmatprep.subr.bf16.mxu0 0
    %516 = vmatpush1.bf16.xpose.msra.mxu0 0
    %517 = vmatprep.subr.bf16.mxu0 0
    %518 = vmatpush1.bf16.xpose.msra.mxu0 0
    %519 = vmatprep.subr.bf16.mxu0 0
    %520 = vmatpush1.bf16.xpose.msra.mxu0 0
    %521 = vmatprep.subr.bf16.mxu0 0
    %522 = vmatpush1.bf16.xpose.msra.mxu0 0
    %523 = vmatprep.subr.bf16.mxu0 0
    %524 = vmatpush1.bf16.xpose.msra.mxu0 0
    %525 = vmatprep.subr.bf16.mxu0 0
    %526 = vmatpush1.bf16.xpose.msra.mxu0 0
    %527 = vmatprep.subr.bf16.mxu0 0
    %528 = vmatpush1.bf16.xpose.msra.mxu0 0
    %529 = vmatprep.mubr.bf16.mxu0 0
    %530 = vmatmul.mubr.bf16.gmra.mrb[0].mxu0 %v492
    %v531 = vpop.f32.mrb[0].mxu0
    %v532 = vadd.f32 0.0, %v531
    %v533 = vpop.f32.mrb[0].mxu0
    %v534 = vpop.f32.mrb[0].mxu0
    %v535 = vpop.f32.mrb[0].mxu0
    %536 = vdwg.mxu0
    %v537 = vmul.f32 %v482, 0.35355338
    %v538 = vmul.f32 %v532, 0.35355338
    %v539 = vsel %vm217, %v537, -inf
    %540 = vmax.xlane.f32.xlu0 %v539
    %v541 = vpop.xlane.xlu0 %540
    %v542 = vsel %vm217, %v538, -inf
    %543 = vmax.xlane.f32.xlu0 %v542
    %v544 = vpop.xlane.xlu0 %543
    %v545 = vsub.f32 %v537, %v541
    %v546 = vsub.f32 %v538, %v544
    %v547 = vmul.f32 %v545, 1.442695
    %v548 = vpow.pop %v547
    %v549 = vmul.f32 %v546, 1.442695
    %v550 = vpow.pop %v549
    %v551 = vsel %vm217, %v548, 0.0
    %552 = vadd.xlane.f32.xlu0 %v551
    %v553 = vpop.xlane.xlu0 %552
    %v554 = vsel %vm217, %v550, 0.0
    %555 = vadd.xlane.f32.xlu0 %v554
    %v556 = vpop.xlane.xlu0 %555
    %v557 = vrcp.pop %v553
    %v558 = vrcp.pop %v556
    %v559 = vmul.f32 %v548, %v557
    %v560 = vmul.f32 %v550, %v558
    %v561 = vpack.c.bf16 %v559, %v559
    %v562 = vpack.c.bf16 %v560, %v560
    %563 = vrot.lane.b32.xlu0 %v212, 56
    %v564 = vpop.permute.xlu0 %563
    %v566 = vsel %vm217, %v561, 0
    %v569 = vsel %vm344, %v564, 0
    %571 = vmatprep.subr.bf16.mxu0 0
    %572 = vmatpush1.bf16.msra.mxu0 %v569
    %573 = vmatprep.subr.bf16.mxu0 0
    %574 = vmatpush1.bf16.msra.mxu0 0
    %575 = vmatprep.subr.bf16.mxu0 0
    %576 = vmatpush1.bf16.msra.mxu0 0
    %577 = vmatprep.subr.bf16.mxu0 0
    %578 = vmatpush1.bf16.msra.mxu0 0
    %579 = vmatprep.subr.bf16.mxu0 0
    %580 = vmatpush1.bf16.msra.mxu0 0
    %581 = vmatprep.subr.bf16.mxu0 0
    %582 = vmatpush1.bf16.msra.mxu0 0
    %583 = vmatprep.subr.bf16.mxu0 0
    %584 = vmatpush1.bf16.msra.mxu0 0
    %585 = vmatprep.subr.bf16.mxu0 0
    %586 = vmatpush1.bf16.msra.mxu0 0
    %587 = vmatprep.subr.bf16.mxu0 0
    %588 = vmatpush1.bf16.msra.mxu0 0
    %589 = vmatprep.subr.bf16.mxu0 0
    %590 = vmatpush1.bf16.msra.mxu0 0
    %591 = vmatprep.subr.bf16.mxu0 0
    %592 = vmatpush1.bf16.msra.mxu0 0
    %593 = vmatprep.subr.bf16.mxu0 0
    %594 = vmatpush1.bf16.msra.mxu0 0
    %595 = vmatprep.subr.bf16.mxu0 0
    %596 = vmatpush1.bf16.msra.mxu0 0
    %597 = vmatprep.subr.bf16.mxu0 0
    %598 = vmatpush1.bf16.msra.mxu0 0
    %599 = vmatprep.subr.bf16.mxu0 0
    %600 = vmatpush1.bf16.msra.mxu0 0
    %601 = vmatprep.subr.bf16.mxu0 0
    %602 = vmatpush1.bf16.msra.mxu0 0
    %603 = vmatprep.mubr.bf16.mxu0 0
    %604 = vmatmul.mubr.bf16.gmra.mrb[0].mxu0 %v566
    %v605 = vpop.f32.mrb[0].mxu0
    %v606 = vadd.f32 0.0, %v605
    %v607 = vpop.f32.mrb[0].mxu0
    %v608 = vpop.f32.mrb[0].mxu0
    %v609 = vpop.f32.mrb[0].mxu0
    %610 = vdwg.mxu0
    %611 = vrot.lane.b32.xlu0 %v213, 56
    %v612 = vpop.permute.xlu0 %611
    %v614 = vsel %vm217, %v562, 0
    %v617 = vsel %vm344, %v612, 0
    %619 = vmatprep.subr.bf16.mxu0 0
    %620 = vmatpush1.bf16.msra.mxu0 %v617
    %621 = vmatprep.subr.bf16.mxu0 0
    %622 = vmatpush1.bf16.msra.mxu0 0
    %623 = vmatprep.subr.bf16.mxu0 0
    %624 = vmatpush1.bf16.msra.mxu0 0
    %625 = vmatprep.subr.bf16.mxu0 0
    %626 = vmatpush1.bf16.msra.mxu0 0
    %627 = vmatprep.subr.bf16.mxu0 0
    %628 = vmatpush1.bf16.msra.mxu0 0
    %629 = vmatprep.subr.bf16.mxu0 0
    %630 = vmatpush1.bf16.msra.mxu0 0
    %631 = vmatprep.subr.bf16.mxu0 0
    %632 = vmatpush1.bf16.msra.mxu0 0
    %633 = vmatprep.subr.bf16.mxu0 0
    %634 = vmatpush1.bf16.msra.mxu0 0
    %635 = vmatprep.subr.bf16.mxu0 0
    %636 = vmatpush1.bf16.msra.mxu0 0
    %637 = vmatprep.subr.bf16.mxu0 0
    %638 = vmatpush1.bf16.msra.mxu0 0
    %639 = vmatprep.subr.bf16.mxu0 0
    %640 = vmatpush1.bf16.msra.mxu0 0
    %641 = vmatprep.subr.bf16.mxu0 0
    %642 = vmatpush1.bf16.msra.mxu0 0
    %643 = vmatprep.subr.bf16.mxu0 0
    %644 = vmatpush1.bf16.msra.mxu0 0
    %645 = vmatprep.subr.bf16.mxu0 0
    %646 = vmatpush1.bf16.msra.mxu0 0
    %647 = vmatprep.subr.bf16.mxu0 0
    %648 = vmatpush1.bf16.msra.mxu0 0
    %649 = vmatprep.subr.bf16.mxu0 0
    %650 = vmatpush1.bf16.msra.mxu0 0
    %651 = vmatprep.mubr.bf16.mxu0 0
    %652 = vmatmul.mubr.bf16.gmra.mrb[0].mxu0 %v614
    %v653 = vpop.f32.mrb[0].mxu0
    %v654 = vadd.f32 0.0, %v653
    %v655 = vpop.f32.mrb[0].mxu0
    %v656 = vpop.f32.mrb[0].mxu0
    %v657 = vpop.f32.mrb[0].mxu0
    %658 = vdwg.mxu0
    %v659 = vpack.c.bf16 %v654, %v606
    %v661 = vsel %vm217, %v659, 0
    %v664 = vsel %vm344, %v124, 0
    %666 = vmatprep.subr.bf16.mxu0 0
    %667 = vmatpush1.bf16.msra.mxu0 %v664
    %668 = vmatprep.subr.bf16.mxu0 0
    %669 = vmatpush1.bf16.msra.mxu0 0
    %670 = vmatprep.subr.bf16.mxu0 0
    %671 = vmatpush1.bf16.msra.mxu0 0
    %672 = vmatprep.subr.bf16.mxu0 0
    %673 = vmatpush1.bf16.msra.mxu0 0
    %674 = vmatprep.subr.bf16.mxu0 0
    %675 = vmatpush1.bf16.msra.mxu0 0
    %676 = vmatprep.subr.bf16.mxu0 0
    %677 = vmatpush1.bf16.msra.mxu0 0
    %678 = vmatprep.subr.bf16.mxu0 0
    %679 = vmatpush1.bf16.msra.mxu0 0
    %680 = vmatprep.subr.bf16.mxu0 0
    %681 = vmatpush1.bf16.msra.mxu0 0
    %682 = vmatprep.subr.bf16.mxu0 0
    %683 = vmatpush1.bf16.msra.mxu0 0
    %684 = vmatprep.subr.bf16.mxu0 0
    %685 = vmatpush1.bf16.msra.mxu0 0
    %686 = vmatprep.subr.bf16.mxu0 0
    %687 = vmatpush1.bf16.msra.mxu0 0
    %688 = vmatprep.subr.bf16.mxu0 0
    %689 = vmatpush1.bf16.msra.mxu0 0
    %690 = vmatprep.subr.bf16.mxu0 0
    %691 = vmatpush1.bf16.msra.mxu0 0
    %692 = vmatprep.subr.bf16.mxu0 0
    %693 = vmatpush1.bf16.msra.mxu0 0
    %694 = vmatprep.subr.bf16.mxu0 0
    %695 = vmatpush1.bf16.msra.mxu0 0
    %696 = vmatprep.subr.bf16.mxu0 0
    %697 = vmatpush1.bf16.msra.mxu0 0
    %698 = vmatprep.mubr.bf16.mxu0 0
    %699 = vmatmul.mubr.bf16.gmra.mrb[0].mxu0 %v661
    %v700 = vpop.f32.mrb[0].mxu0
    %v701 = vadd.f32 0.0, %v700
    %v702 = vpop.f32.mrb[0].mxu0
    %v703 = vpop.f32.mrb[0].mxu0
    %v704 = vadd.f32 0.0, %v703
    %v705 = vpop.f32.mrb[0].mxu0
    %706 = vdwg.mxu0
    %v708 = vsel %vm217, %v436, 0
    %v711 = vsel %vm344, %v123, 0
    %713 = vmatprep.subr.bf16.mxu0 0
    %714 = vmatpush1.bf16.msra.mxu0 %v711
    %715 = vmatprep.subr.bf16.mxu0 0
    %716 = vmatpush1.bf16.msra.mxu0 0
    %717 = vmatprep.subr.bf16.mxu0 0
    %718 = vmatpush1.bf16.msra.mxu0 0
    %719 = vmatprep.subr.bf16.mxu0 0
    %720 = vmatpush1.bf16.msra.mxu0 0
    %721 = vmatprep.subr.bf16.mxu0 0
    %722 = vmatpush1.bf16.msra.mxu0 0
    %723 = vmatprep.subr.bf16.mxu0 0
    %724 = vmatpush1.bf16.msra.mxu0 0
    %725 = vmatprep.subr.bf16.mxu0 0
    %726 = vmatpush1.bf16.msra.mxu0 0
    %727 = vmatprep.subr.bf16.mxu0 0
    %728 = vmatpush1.bf16.msra.mxu0 0
    %729 = vmatprep.subr.bf16.mxu0 0
    %730 = vmatpush1.bf16.msra.mxu0 0
    %731 = vmatprep.subr.bf16.mxu0 0
    %732 = vmatpush1.bf16.msra.mxu0 0
    %733 = vmatprep.subr.bf16.mxu0 0
    %734 = vmatpush1.bf16.msra.mxu0 0
    %735 = vmatprep.subr.bf16.mxu0 0
    %736 = vmatpush1.bf16.msra.mxu0 0
    %737 = vmatprep.subr.bf16.mxu0 0
    %738 = vmatpush1.bf16.msra.mxu0 0
    %739 = vmatprep.subr.bf16.mxu0 0
    %740 = vmatpush1.bf16.msra.mxu0 0
    %741 = vmatprep.subr.bf16.mxu0 0
    %742 = vmatpush1.bf16.msra.mxu0 0
    %743 = vmatprep.subr.bf16.mxu0 0
    %744 = vmatpush1.bf16.msra.mxu0 0
    %745 = vmatprep.mubr.bf16.mxu0 0
    %746 = vmatmul.mubr.bf16.gmra.mrb[0].mxu0 %v708
    %v747 = vpop.f32.mrb[0].mxu0
    %v748 = vadd.f32 %v701, %v747
    %v749 = vpop.f32.mrb[0].mxu0
    %v750 = vpop.f32.mrb[0].mxu0
    %v751 = vadd.f32 %v704, %v750
    %v752 = vpop.f32.mrb[0].mxu0
    %753 = vdwg.mxu0
    %754 = vrot.lane.b32.xlu0 %v212, 112
    %v755 = vpop.permute.xlu0 %754
    %756 = vrot.lane.b32.xlu0 %v212, 80
    %v757 = vpop.permute.xlu0 %756
    %v759 = vsel %vm217, %v755, 0
    %v762 = vsel %vm217, %v757, 0
    %764 = vmatprep.subr.bf16.mxu0 0
    %765 = vmatpush1.bf16.xpose.msra.mxu0 %v762
    %766 = vmatprep.subr.bf16.mxu0 0
    %767 = vmatpush1.bf16.xpose.msra.mxu0 0
    %768 = vmatprep.subr.bf16.mxu0 0
    %769 = vmatpush1.bf16.xpose.msra.mxu0 0
    %770 = vmatprep.subr.bf16.mxu0 0
    %771 = vmatpush1.bf16.xpose.msra.mxu0 0
    %772 = vmatprep.subr.bf16.mxu0 0
    %773 = vmatpush1.bf16.xpose.msra.mxu0 0
    %774 = vmatprep.subr.bf16.mxu0 0
    %775 = vmatpush1.bf16.xpose.msra.mxu0 0
    %776 = vmatprep.subr.bf16.mxu0 0
    %777 = vmatpush1.bf16.xpose.msra.mxu0 0
    %778 = vmatprep.subr.bf16.mxu0 0
    %779 = vmatpush1.bf16.xpose.msra.mxu0 0
    %780 = vmatprep.subr.bf16.mxu0 0
    %781 = vmatpush1.bf16.xpose.msra.mxu0 0
    %782 = vmatprep.subr.bf16.mxu0 0
    %783 = vmatpush1.bf16.xpose.msra.mxu0 0
    %784 = vmatprep.subr.bf16.mxu0 0
    %785 = vmatpush1.bf16.xpose.msra.mxu0 0
    %786 = vmatprep.subr.bf16.mxu0 0
    %787 = vmatpush1.bf16.xpose.msra.mxu0 0
    %788 = vmatprep.subr.bf16.mxu0 0
    %789 = vmatpush1.bf16.xpose.msra.mxu0 0
    %790 = vmatprep.subr.bf16.mxu0 0
    %791 = vmatpush1.bf16.xpose.msra.mxu0 0
    %792 = vmatprep.subr.bf16.mxu0 0
    %793 = vmatpush1.bf16.xpose.msra.mxu0 0
    %794 = vmatprep.subr.bf16.mxu0 0
    %795 = vmatpush1.bf16.xpose.msra.mxu0 0
    %796 = vmatprep.mubr.bf16.mxu0 0
    %797 = vmatmul.mubr.bf16.gmra.mrb[0].mxu0 %v759
    %v798 = vpop.f32.mrb[0].mxu0
    %v799 = vadd.f32 0.0, %v798
    %v800 = vpop.f32.mrb[0].mxu0
    %v801 = vpop.f32.mrb[0].mxu0
    %v802 = vpop.f32.mrb[0].mxu0
    %803 = vdwg.mxu0
    %804 = vrot.lane.b32.xlu0 %v213, 112
    %v805 = vpop.permute.xlu0 %804
    %806 = vrot.lane.b32.xlu0 %v213, 80
    %v807 = vpop.permute.xlu0 %806
    %v809 = vsel %vm217, %v805, 0
    %v812 = vsel %vm217, %v807, 0
    %814 = vmatprep.subr.bf16.mxu0 0
    %815 = vmatpush1.bf16.xpose.msra.mxu0 %v812
    %816 = vmatprep.subr.bf16.mxu0 0
    %817 = vmatpush1.bf16.xpose.msra.mxu0 0
    %818 = vmatprep.subr.bf16.mxu0 0
    %819 = vmatpush1.bf16.xpose.msra.mxu0 0
    %820 = vmatprep.subr.bf16.mxu0 0
    %821 = vmatpush1.bf16.xpose.msra.mxu0 0
    %822 = vmatprep.subr.bf16.mxu0 0
    %823 = vmatpush1.bf16.xpose.msra.mxu0 0
    %824 = vmatprep.subr.bf16.mxu0 0
    %825 = vmatpush1.bf16.xpose.msra.mxu0 0
    %826 = vmatprep.subr.bf16.mxu0 0
    %827 = vmatpush1.bf16.xpose.msra.mxu0 0
    %828 = vmatprep.subr.bf16.mxu0 0
    %829 = vmatpush1.bf16.xpose.msra.mxu0 0
    %830 = vmatprep.subr.bf16.mxu0 0
    %831 = vmatpush1.bf16.xpose.msra.mxu0 0
    %832 = vmatprep.subr.bf16.mxu0 0
    %833 = vmatpush1.bf16.xpose.msra.mxu0 0
    %834 = vmatprep.subr.bf16.mxu0 0
    %835 = vmatpush1.bf16.xpose.msra.mxu0 0
    %836 = vmatprep.subr.bf16.mxu0 0
    %837 = vmatpush1.bf16.xpose.msra.mxu0 0
    %838 = vmatprep.subr.bf16.mxu0 0
    %839 = vmatpush1.bf16.xpose.msra.mxu0 0
    %840 = vmatprep.subr.bf16.mxu0 0
    %841 = vmatpush1.bf16.xpose.msra.mxu0 0
    %842 = vmatprep.subr.bf16.mxu0 0
    %843 = vmatpush1.bf16.xpose.msra.mxu0 0
    %844 = vmatprep.subr.bf16.mxu0 0
    %845 = vmatpush1.bf16.xpose.msra.mxu0 0
    %846 = vmatprep.mubr.bf16.mxu0 0
    %847 = vmatmul.mubr.bf16.gmra.mrb[0].mxu0 %v809
    %v848 = vpop.f32.mrb[0].mxu0
    %v849 = vadd.f32 0.0, %v848
    %v850 = vpop.f32.mrb[0].mxu0
    %v851 = vpop.f32.mrb[0].mxu0
    %v852 = vpop.f32.mrb[0].mxu0
    %853 = vdwg.mxu0
    %v854 = vmul.f32 %v799, 0.35355338
    %v855 = vmul.f32 %v849, 0.35355338
    %v856 = vsel %vm217, %v854, -inf
    %857 = vmax.xlane.f32.xlu0 %v856
    %v858 = vpop.xlane.xlu0 %857
    %v859 = vsel %vm217, %v855, -inf
    %860 = vmax.xlane.f32.xlu0 %v859
    %v861 = vpop.xlane.xlu0 %860
    %v862 = vsub.f32 %v854, %v858
    %v863 = vsub.f32 %v855, %v861
    %v864 = vmul.f32 %v862, 1.442695
    %v865 = vpow.pop %v864
    %v866 = vmul.f32 %v863, 1.442695
    %v867 = vpow.pop %v866
    %v868 = vsel %vm217, %v865, 0.0
    %869 = vadd.xlane.f32.xlu0 %v868
    %v870 = vpop.xlane.xlu0 %869
    %v871 = vsel %vm217, %v867, 0.0
    %872 = vadd.xlane.f32.xlu0 %v871
    %v873 = vpop.xlane.xlu0 %872
    %v874 = vrcp.pop %v870
    %v875 = vrcp.pop %v873
    %v876 = vmul.f32 %v865, %v874
    %v877 = vmul.f32 %v867, %v875
    %v878 = vpack.c.bf16 %v876, %v876
    %v879 = vpack.c.bf16 %v877, %v877
    %880 = vrot.lane.b32.xlu0 %v212, 48
    %v881 = vpop.permute.xlu0 %880
    %v883 = vsel %vm217, %v878, 0
    %v886 = vsel %vm344, %v881, 0
    %888 = vmatprep.subr.bf16.mxu0 0
    %889 = vmatpush1.bf16.msra.mxu0 %v886
    %890 = vmatprep.subr.bf16.mxu0 0
    %891 = vmatpush1.bf16.msra.mxu0 0
    %892 = vmatprep.subr.bf16.mxu0 0
    %893 = vmatpush1.bf16.msra.mxu0 0
    %894 = vmatprep.subr.bf16.mxu0 0
    %895 = vmatpush1.bf16.msra.mxu0 0
    %896 = vmatprep.subr.bf16.mxu0 0
    %897 = vmatpush1.bf16.msra.mxu0 0
    %898 = vmatprep.subr.bf16.mxu0 0
    %899 = vmatpush1.bf16.msra.mxu0 0
    %900 = vmatprep.subr.bf16.mxu0 0
    %901 = vmatpush1.bf16.msra.mxu0 0
    %902 = vmatprep.subr.bf16.mxu0 0
    %903 = vmatpush1.bf16.msra.mxu0 0
    %904 = vmatprep.subr.bf16.mxu0 0
    %905 = vmatpush1.bf16.msra.mxu0 0
    %906 = vmatprep.subr.bf16.mxu0 0
    %907 = vmatpush1.bf16.msra.mxu0 0
    %908 = vmatprep.subr.bf16.mxu0 0
    %909 = vmatpush1.bf16.msra.mxu0 0
    %910 = vmatprep.subr.bf16.mxu0 0
    %911 = vmatpush1.bf16.msra.mxu0 0
    %912 = vmatprep.subr.bf16.mxu0 0
    %913 = vmatpush1.bf16.msra.mxu0 0
    %914 = vmatprep.subr.bf16.mxu0 0
    %915 = vmatpush1.bf16.msra.mxu0 0
    %916 = vmatprep.subr.bf16.mxu0 0
    %917 = vmatpush1.bf16.msra.mxu0 0
    %918 = vmatprep.subr.bf16.mxu0 0
    %919 = vmatpush1.bf16.msra.mxu0 0
    %920 = vmatprep.mubr.bf16.mxu0 0
    %921 = vmatmul.mubr.bf16.gmra.mrb[0].mxu0 %v883
    %v922 = vpop.f32.mrb[0].mxu0
    %v923 = vadd.f32 0.0, %v922
    %v924 = vpop.f32.mrb[0].mxu0
    %v925 = vpop.f32.mrb[0].mxu0
    %v926 = vpop.f32.mrb[0].mxu0
    %927 = vdwg.mxu0
    %928 = vrot.lane.b32.xlu0 %v213, 48
    %v929 = vpop.permute.xlu0 %928
    %v931 = vsel %vm217, %v879, 0
    %v934 = vsel %vm344, %v929, 0
    %936 = vmatprep.subr.bf16.mxu0 0
    %937 = vmatpush1.bf16.msra.mxu0 %v934
    %938 = vmatprep.subr.bf16.mxu0 0
    %939 = vmatpush1.bf16.msra.mxu0 0
    %940 = vmatprep.subr.bf16.mxu0 0
    %941 = vmatpush1.bf16.msra.mxu0 0
    %942 = vmatprep.subr.bf16.mxu0 0
    %943 = vmatpush1.bf16.msra.mxu0 0
    %944 = vmatprep.subr.bf16.mxu0 0
    %945 = vmatpush1.bf16.msra.mxu0 0
    %946 = vmatprep.subr.bf16.mxu0 0
    %947 = vmatpush1.bf16.msra.mxu0 0
    %948 = vmatprep.subr.bf16.mxu0 0
    %949 = vmatpush1.bf16.msra.mxu0 0
    %950 = vmatprep.subr.bf16.mxu0 0
    %951 = vmatpush1.bf16.msra.mxu0 0
    %952 = vmatprep.subr.bf16.mxu0 0
    %953 = vmatpush1.bf16.msra.mxu0 0
    %954 = vmatprep.subr.bf16.mxu0 0
    %955 = vmatpush1.bf16.msra.mxu0 0
    %956 = vmatprep.subr.bf16.mxu0 0
    %957 = vmatpush1.bf16.msra.mxu0 0
    %958 = vmatprep.subr.bf16.mxu0 0
    %959 = vmatpush1.bf16.msra.mxu0 0
    %960 = vmatprep.subr.bf16.mxu0 0
    %961 = vmatpush1.bf16.msra.mxu0 0
    %962 = vmatprep.subr.bf16.mxu0 0
    %963 = vmatpush1.bf16.msra.mxu0 0
    %964 = vmatprep.subr.bf16.mxu0 0
    %965 = vmatpush1.bf16.msra.mxu0 0
    %966 = vmatprep.subr.bf16.mxu0 0
    %967 = vmatpush1.bf16.msra.mxu0 0
    %968 = vmatprep.mubr.bf16.mxu0 0
    %969 = vmatmul.mubr.bf16.gmra.mrb[0].mxu0 %v931
    %v970 = vpop.f32.mrb[0].mxu0
    %v971 = vadd.f32 0.0, %v970
    %v972 = vpop.f32.mrb[0].mxu0
    %v973 = vpop.f32.mrb[0].mxu0
    %v974 = vpop.f32.mrb[0].mxu0
    %975 = vdwg.mxu0
    %v976 = vpack.c.bf16 %v971, %v923
    %v978 = vsel %vm217, %v976, 0
    %v981 = vsel %vm344, %v125, 0
    %983 = vmatprep.subr.bf16.mxu0 0
    %984 = vmatpush1.bf16.msra.mxu0 %v981
    %985 = vmatprep.subr.bf16.mxu0 0
    %986 = vmatpush1.bf16.msra.mxu0 0
    %987 = vmatprep.subr.bf16.mxu0 0
    %988 = vmatpush1.bf16.msra.mxu0 0
    %989 = vmatprep.subr.bf16.mxu0 0
    %990 = vmatpush1.bf16.msra.mxu0 0
    %991 = vmatprep.subr.bf16.mxu0 0
    %992 = vmatpush1.bf16.msra.mxu0 0
    %993 = vmatprep.subr.bf16.mxu0 0
    %994 = vmatpush1.bf16.msra.mxu0 0
    %995 = vmatprep.subr.bf16.mxu0 0
    %996 = vmatpush1.bf16.msra.mxu0 0
    %997 = vmatprep.subr.bf16.mxu0 0
    %998 = vmatpush1.bf16.msra.mxu0 0
    %999 = vmatprep.subr.bf16.mxu0 0
    %1000 = vmatpush1.bf16.msra.mxu0 0
    %1001 = vmatprep.subr.bf16.mxu0 0
    %1002 = vmatpush1.bf16.msra.mxu0 0
    %1003 = vmatprep.subr.bf16.mxu0 0
    %1004 = vmatpush1.bf16.msra.mxu0 0
    %1005 = vmatprep.subr.bf16.mxu0 0
    %1006 = vmatpush1.bf16.msra.mxu0 0
    %1007 = vmatprep.subr.bf16.mxu0 0
    %1008 = vmatpush1.bf16.msra.mxu0 0
    %1009 = vmatprep.subr.bf16.mxu0 0
    %1010 = vmatpush1.bf16.msra.mxu0 0
    %1011 = vmatprep.subr.bf16.mxu0 0
    %1012 = vmatpush1.bf16.msra.mxu0 0
    %1013 = vmatprep.subr.bf16.mxu0 0
    %1014 = vmatpush1.bf16.msra.mxu0 0
    %1015 = vmatprep.mubr.bf16.mxu0 0
    %1016 = vmatmul.mubr.bf16.gmra.mrb[0].mxu0 %v978
    %v1017 = vpop.f32.mrb[0].mxu0
    %v1018 = vadd.f32 0.0, %v1017
    %v1019 = vpop.f32.mrb[0].mxu0
    %v1020 = vpop.f32.mrb[0].mxu0
    %v1021 = vadd.f32 0.0, %v1020
    %v1022 = vpop.f32.mrb[0].mxu0
    %1023 = vdwg.mxu0
    %v1024 = vadd.f32 %v748, %v1018
    %v1025 = vadd.f32 %v751, %v1021
    %1026 = vrot.lane.b32.xlu0 %v212, 104
    %v1027 = vpop.permute.xlu0 %1026
    %1028 = vrot.lane.b32.xlu0 %v212, 72
    %v1029 = vpop.permute.xlu0 %1028
    %v1031 = vsel %vm217, %v1027, 0
    %v1034 = vsel %vm217, %v1029, 0
    %1036 = vmatprep.subr.bf16.mxu0 0
    %1037 = vmatpush1.bf16.xpose.msra.mxu0 %v1034
    %1038 = vmatprep.subr.bf16.mxu0 0
    %1039 = vmatpush1.bf16.xpose.msra.mxu0 0
    %1040 = vmatprep.subr.bf16.mxu0 0
    %1041 = vmatpush1.bf16.xpose.msra.mxu0 0
    %1042 = vmatprep.subr.bf16.mxu0 0
    %1043 = vmatpush1.bf16.xpose.msra.mxu0 0
    %1044 = vmatprep.subr.bf16.mxu0 0
    %1045 = vmatpush1.bf16.xpose.msra.mxu0 0
    %1046 = vmatprep.subr.bf16.mxu0 0
    %1047 = vmatpush1.bf16.xpose.msra.mxu0 0
    %1048 = vmatprep.subr.bf16.mxu0 0
    %1049 = vmatpush1.bf16.xpose.msra.mxu0 0
    %1050 = vmatprep.subr.bf16.mxu0 0
    %1051 = vmatpush1.bf16.xpose.msra.mxu0 0
    %1052 = vmatprep.subr.bf16.mxu0 0
    %1053 = vmatpush1.bf16.xpose.msra.mxu0 0
    %1054 = vmatprep.subr.bf16.mxu0 0
    %1055 = vmatpush1.bf16.xpose.msra.mxu0 0
    %1056 = vmatprep.subr.bf16.mxu0 0
    %1057 = vmatpush1.bf16.xpose.msra.mxu0 0
    %1058 = vmatprep.subr.bf16.mxu0 0
    %1059 = vmatpush1.bf16.xpose.msra.mxu0 0
    %1060 = vmatprep.subr.bf16.mxu0 0
    %1061 = vmatpush1.bf16.xpose.msra.mxu0 0
    %1062 = vmatprep.subr.bf16.mxu0 0
    %1063 = vmatpush1.bf16.xpose.msra.mxu0 0
    %1064 = vmatprep.subr.bf16.mxu0 0
    %1065 = vmatpush1.bf16.xpose.msra.mxu0 0
    %1066 = vmatprep.subr.bf16.mxu0 0
    %1067 = vmatpush1.bf16.xpose.msra.mxu0 0
    %1068 = vmatprep.mubr.bf16.mxu0 0
    %1069 = vmatmul.mubr.bf16.gmra.mrb[0].mxu0 %v1031
    %v1070 = vpop.f32.mrb[0].mxu0
    %v1071 = vadd.f32 0.0, %v1070
    %v1072 = vpop.f32.mrb[0].mxu0
    %v1073 = vpop.f32.mrb[0].mxu0
    %v1074 = vpop.f32.mrb[0].mxu0
    %1075 = vdwg.mxu0
    %1076 = vrot.lane.b32.xlu0 %v213, 104
    %v1077 = vpop.permute.xlu0 %1076
    %1078 = vrot.lane.b32.xlu0 %v213, 72
    %v1079 = vpop.permute.xlu0 %1078
    %v1081 = vsel %vm217, %v1077, 0
    %v1084 = vsel %vm217, %v1079, 0
    %1086 = vmatprep.subr.bf16.mxu0 0
    %1087 = vmatpush1.bf16.xpose.msra.mxu0 %v1084
    %1088 = vmatprep.subr.bf16.mxu0 0
    %1089 = vmatpush1.bf16.xpose.msra.mxu0 0
    %1090 = vmatprep.subr.bf16.mxu0 0
    %1091 = vmatpush1.bf16.xpose.msra.mxu0 0
    %1092 = vmatprep.subr.bf16.mxu0 0
    %1093 = vmatpush1.bf16.xpose.msra.mxu0 0
    %1094 = vmatprep.subr.bf16.mxu0 0
    %1095 = vmatpush1.bf16.xpose.msra.mxu0 0
    %1096 = vmatprep.subr.bf16.mxu0 0
    %1097 = vmatpush1.bf16.xpose.msra.mxu0 0
    %1098 = vmatprep.subr.bf16.mxu0 0
    %1099 = vmatpush1.bf16.xpose.msra.mxu0 0
    %1100 = vmatprep.subr.bf16.mxu0 0
    %1101 = vmatpush1.bf16.xpose.msra.mxu0 0
    %1102 = vmatprep.subr.bf16.mxu0 0
    %1103 = vmatpush1.bf16.xpose.msra.mxu0 0
    %1104 = vmatprep.subr.bf16.mxu0 0
    %1105 = vmatpush1.bf16.xpose.msra.mxu0 0
    %1106 = vmatprep.subr.bf16.mxu0 0
    %1107 = vmatpush1.bf16.xpose.msra.mxu0 0
    %1108 = vmatprep.subr.bf16.mxu0 0
    %1109 = vmatpush1.bf16.xpose.msra.mxu0 0
    %1110 = vmatprep.subr.bf16.mxu0 0
    %1111 = vmatpush1.bf16.xpose.msra.mxu0 0
    %1112 = vmatprep.subr.bf16.mxu0 0
    %1113 = vmatpush1.bf16.xpose.msra.mxu0 0
    %1114 = vmatprep.subr.bf16.mxu0 0
    %1115 = vmatpush1.bf16.xpose.msra.mxu0 0
    %1116 = vmatprep.subr.bf16.mxu0 0
    %1117 = vmatpush1.bf16.xpose.msra.mxu0 0
    %1118 = vmatprep.mubr.bf16.mxu0 0
    %1119 = vmatmul.mubr.bf16.gmra.mrb[0].mxu0 %v1081
    %v1120 = vpop.f32.mrb[0].mxu0
    %v1121 = vadd.f32 0.0, %v1120
    %v1122 = vpop.f32.mrb[0].mxu0
    %v1123 = vpop.f32.mrb[0].mxu0
    %v1124 = vpop.f32.mrb[0].mxu0
    %1125 = vdwg.mxu0
    %v1126 = vmul.f32 %v1071, 0.35355338
    %v1127 = vmul.f32 %v1121, 0.35355338
    %v1128 = vsel %vm217, %v1126, -inf
    %1129 = vmax.xlane.f32.xlu0 %v1128
    %v1130 = vpop.xlane.xlu0 %1129
    %v1131 = vsel %vm217, %v1127, -inf
    %1132 = vmax.xlane.f32.xlu0 %v1131
    %v1133 = vpop.xlane.xlu0 %1132
    %v1134 = vsub.f32 %v1126, %v1130
    %v1135 = vsub.f32 %v1127, %v1133
    %v1136 = vmul.f32 %v1134, 1.442695
    %v1137 = vpow.pop %v1136
    %v1138 = vmul.f32 %v1135, 1.442695
    %v1139 = vpow.pop %v1138
    %v1140 = vsel %vm217, %v1137, 0.0
    %1141 = vadd.xlane.f32.xlu0 %v1140
    %v1142 = vpop.xlane.xlu0 %1141
    %v1143 = vsel %vm217, %v1139, 0.0
    %1144 = vadd.xlane.f32.xlu0 %v1143
    %v1145 = vpop.xlane.xlu0 %1144
    %v1146 = vrcp.pop %v1142
    %v1147 = vrcp.pop %v1145
    %v1148 = vmul.f32 %v1137, %v1146
    %v1149 = vmul.f32 %v1139, %v1147
    %v1150 = vpack.c.bf16 %v1148, %v1148
    %v1151 = vpack.c.bf16 %v1149, %v1149
    %1152 = vrot.lane.b32.xlu0 %v212, 40
    %v1153 = vpop.permute.xlu0 %1152
    %v1155 = vsel %vm217, %v1150, 0
    %v1158 = vsel %vm344, %v1153, 0
    %1160 = vmatprep.subr.bf16.mxu0 0
    %1161 = vmatpush1.bf16.msra.mxu0 %v1158
    %1162 = vmatprep.subr.bf16.mxu0 0
    %1163 = vmatpush1.bf16.msra.mxu0 0
    %1164 = vmatprep.subr.bf16.mxu0 0
    %1165 = vmatpush1.bf16.msra.mxu0 0
    %1166 = vmatprep.subr.bf16.mxu0 0
    %1167 = vmatpush1.bf16.msra.mxu0 0
    %1168 = vmatprep.subr.bf16.mxu0 0
    %1169 = vmatpush1.bf16.msra.mxu0 0
    %1170 = vmatprep.subr.bf16.mxu0 0
    %1171 = vmatpush1.bf16.msra.mxu0 0
    %1172 = vmatprep.subr.bf16.mxu0 0
    %1173 = vmatpush1.bf16.msra.mxu0 0
    %1174 = vmatprep.subr.bf16.mxu0 0
    %1175 = vmatpush1.bf16.msra.mxu0 0
    %1176 = vmatprep.subr.bf16.mxu0 0
    %1177 = vmatpush1.bf16.msra.mxu0 0
    %1178 = vmatprep.subr.bf16.mxu0 0
    %1179 = vmatpush1.bf16.msra.mxu0 0
    %1180 = vmatprep.subr.bf16.mxu0 0
    %1181 = vmatpush1.bf16.msra.mxu0 0
    %1182 = vmatprep.subr.bf16.mxu0 0
    %1183 = vmatpush1.bf16.msra.mxu0 0
    %1184 = vmatprep.subr.bf16.mxu0 0
    %1185 = vmatpush1.bf16.msra.mxu0 0
    %1186 = vmatprep.subr.bf16.mxu0 0
    %1187 = vmatpush1.bf16.msra.mxu0 0
    %1188 = vmatprep.subr.bf16.mxu0 0
    %1189 = vmatpush1.bf16.msra.mxu0 0
    %1190 = vmatprep.subr.bf16.mxu0 0
    %1191 = vmatpush1.bf16.msra.mxu0 0
    %1192 = vmatprep.mubr.bf16.mxu0 0
    %1193 = vmatmul.mubr.bf16.gmra.mrb[0].mxu0 %v1155
    %v1194 = vpop.f32.mrb[0].mxu0
    %v1195 = vadd.f32 0.0, %v1194
    %v1196 = vpop.f32.mrb[0].mxu0
    %v1197 = vpop.f32.mrb[0].mxu0
    %v1198 = vpop.f32.mrb[0].mxu0
    %1199 = vdwg.mxu0
    %1200 = vrot.lane.b32.xlu0 %v213, 40
    %v1201 = vpop.permute.xlu0 %1200
    %v1203 = vsel %vm217, %v1151, 0
    %v1206 = vsel %vm344, %v1201, 0
    %1208 = vmatprep.subr.bf16.mxu0 0
    %1209 = vmatpush1.bf16.msra.mxu0 %v1206
    %1210 = vmatprep.subr.bf16.mxu0 0
    %1211 = vmatpush1.bf16.msra.mxu0 0
    %1212 = vmatprep.subr.bf16.mxu0 0
    %1213 = vmatpush1.bf16.msra.mxu0 0
    %1214 = vmatprep.subr.bf16.mxu0 0
    %1215 = vmatpush1.bf16.msra.mxu0 0
    %1216 = vmatprep.subr.bf16.mxu0 0
    %1217 = vmatpush1.bf16.msra.mxu0 0
    %1218 = vmatprep.subr.bf16.mxu0 0
    %1219 = vmatpush1.bf16.msra.mxu0 0
    %1220 = vmatprep.subr.bf16.mxu0 0
    %1221 = vmatpush1.bf16.msra.mxu0 0
    %1222 = vmatprep.subr.bf16.mxu0 0
    %1223 = vmatpush1.bf16.msra.mxu0 0
    %1224 = vmatprep.subr.bf16.mxu0 0
    %1225 = vmatpush1.bf16.msra.mxu0 0
    %1226 = vmatprep.subr.bf16.mxu0 0
    %1227 = vmatpush1.bf16.msra.mxu0 0
    %1228 = vmatprep.subr.bf16.mxu0 0
    %1229 = vmatpush1.bf16.msra.mxu0 0
    %1230 = vmatprep.subr.bf16.mxu0 0
    %1231 = vmatpush1.bf16.msra.mxu0 0
    %1232 = vmatprep.subr.bf16.mxu0 0
    %1233 = vmatpush1.bf16.msra.mxu0 0
    %1234 = vmatprep.subr.bf16.mxu0 0
    %1235 = vmatpush1.bf16.msra.mxu0 0
    %1236 = vmatprep.subr.bf16.mxu0 0
    %1237 = vmatpush1.bf16.msra.mxu0 0
    %1238 = vmatprep.subr.bf16.mxu0 0
    %1239 = vmatpush1.bf16.msra.mxu0 0
    %1240 = vmatprep.mubr.bf16.mxu0 0
    %1241 = vmatmul.mubr.bf16.gmra.mrb[0].mxu0 %v1203
    %v1242 = vpop.f32.mrb[0].mxu0
    %v1243 = vadd.f32 0.0, %v1242
    %v1244 = vpop.f32.mrb[0].mxu0
    %v1245 = vpop.f32.mrb[0].mxu0
    %v1246 = vpop.f32.mrb[0].mxu0
    %1247 = vdwg.mxu0
    %v1248 = vpack.c.bf16 %v1243, %v1195
    %v1250 = vsel %vm217, %v1248, 0
    %v1253 = vsel %vm344, %v126, 0
    %1255 = vmatprep.subr.bf16.mxu0 0
    %1256 = vmatpush1.bf16.msra.mxu0 %v1253
    %1257 = vmatprep.subr.bf16.mxu0 0
    %1258 = vmatpush1.bf16.msra.mxu0 0
    %1259 = vmatprep.subr.bf16.mxu0 0
    %1260 = vmatpush1.bf16.msra.mxu0 0
    %1261 = vmatprep.subr.bf16.mxu0 0
    %1262 = vmatpush1.bf16.msra.mxu0 0
    %1263 = vmatprep.subr.bf16.mxu0 0
    %1264 = vmatpush1.bf16.msra.mxu0 0
    %1265 = vmatprep.subr.bf16.mxu0 0
    %1266 = vmatpush1.bf16.msra.mxu0 0
    %1267 = vmatprep.subr.bf16.mxu0 0
    %1268 = vmatpush1.bf16.msra.mxu0 0
    %1269 = vmatprep.subr.bf16.mxu0 0
    %1270 = vmatpush1.bf16.msra.mxu0 0
    %1271 = vmatprep.subr.bf16.mxu0 0
    %1272 = vmatpush1.bf16.msra.mxu0 0
    %1273 = vmatprep.subr.bf16.mxu0 0
    %1274 = vmatpush1.bf16.msra.mxu0 0
    %1275 = vmatprep.subr.bf16.mxu0 0
    %1276 = vmatpush1.bf16.msra.mxu0 0
    %1277 = vmatprep.subr.bf16.mxu0 0
    %1278 = vmatpush1.bf16.msra.mxu0 0
    %1279 = vmatprep.subr.bf16.mxu0 0
    %1280 = vmatpush1.bf16.msra.mxu0 0
    %1281 = vmatprep.subr.bf16.mxu0 0
    %1282 = vmatpush1.bf16.msra.mxu0 0
    %1283 = vmatprep.subr.bf16.mxu0 0
    %1284 = vmatpush1.bf16.msra.mxu0 0
    %1285 = vmatprep.subr.bf16.mxu0 0
    %1286 = vmatpush1.bf16.msra.mxu0 0
    %1287 = vmatprep.mubr.bf16.mxu0 0
    %1288 = vmatmul.mubr.bf16.gmra.mrb[0].mxu0 %v1250
    %v1289 = vpop.f32.mrb[0].mxu0
    %v1290 = vadd.f32 0.0, %v1289
    %v1291 = vpop.f32.mrb[0].mxu0
    %v1292 = vpop.f32.mrb[0].mxu0
    %v1293 = vadd.f32 0.0, %v1292
    %v1294 = vpop.f32.mrb[0].mxu0
    %1295 = vdwg.mxu0
    %v1296 = vadd.f32 %v1024, %v1290
    %v1297 = vadd.f32 %v1025, %v1293
    %v1298 = vld [vmem:[%s6] sm:$0x1]
    %v1300 = vlaneseq
    %v1301 = vshrl.u32 %v1300, 7
    %v1302 = vsub.s32 0, %v1301
    %v1303 = vrot.slane %v1298, %v1302
    %v1305 = vadd.f32 %v1296, %v1303
    %v1306 = vadd.f32 %v1297, %v1303
    %v1307 = vadd.f32 %v113, %v1305
    %v1308 = vadd.f32 %v116, %v1306
    %v1309 = vld [vmem:[%s7] sm:$0x1]
    %v1310 = vld [vmem:[%s8] sm:$0x1]
    %v1311 = vsel %vm167, %v1307, 0.0
    %1312 = vadd.xlane.f32.xlu0 %v1311
    %v1313 = vpop.xlane.xlu0 %1312
    %v1314 = vsel %vm167, %v1308, 0.0
    %1315 = vadd.xlane.f32.xlu0 %v1314
    %v1316 = vpop.xlane.xlu0 %1315
    %v1317 = vrcp.pop 32.0
    %v1318 = vmul.f32 %v1313, %v1317
    %v1319 = vmul.f32 %v1316, %v1317
    %v1320 = vsub.f32 %v1307, %v1318
    %v1321 = vsub.f32 %v1308, %v1319
    %v1322 = vmul.f32 %v1320, %v1320
    %v1323 = vmul.f32 %v1321, %v1321
    %v1324 = vsel %vm167, %v1322, 0.0
    %1325 = vadd.xlane.f32.xlu0 %v1324
    %v1326 = vpop.xlane.xlu0 %1325
    %v1327 = vsel %vm167, %v1323, 0.0
    %1328 = vadd.xlane.f32.xlu0 %v1327
    %v1329 = vpop.xlane.xlu0 %1328
    %v1330 = vmul.f32 %v1326, %v1317
    %v1331 = vmul.f32 %v1329, %v1317
    %v1332 = vadd.f32 %v1330, 1e-05
    %v1333 = vadd.f32 %v1331, 1e-05
    %v1334 = vrsqrt.pop %v1332
    %v1335 = vrsqrt.pop %v1333
    %v1336 = vmul.f32 %v1320, %v1334
    %v1337 = vmul.f32 %v1321, %v1335
    %v1339 = vlaneseq
    %v1340 = vshrl.u32 %v1339, 7
    %v1341 = vsub.s32 0, %v1340
    %v1342 = vrot.slane %v1309, %v1341
    %v1344 = vmul.f32 %v1336, %v1342
    %v1345 = vmul.f32 %v1337, %v1342
    %v1347 = vlaneseq
    %v1348 = vshrl.u32 %v1347, 7
    %v1349 = vsub.s32 0, %v1348
    %v1350 = vrot.slane %v1310, %v1349
    %v1352 = vadd.f32 %v1344, %v1350
    %v1353 = vadd.f32 %v1345, %v1350
    %v1354 = vpack.c.bf16 %v1353, %v1352
    %v1355 = vld [vmem:[%s10] sm:$0x1]
    %v1357 = vlaneseq
    %v1358 = vshrl.u32 %v1357, 7
    %v1359 = vsub.s32 0, %v1358
    %v1360 = vrot.slane %v1355, %v1359
    %v1366 = vunpack.c.l.b16 %v127
    %v1367 = vunpack.c.l.b16 %v128
    %v1368 = vunpack.c.l.b16 %v129
    %v1369 = vunpack.c.l.b16 %v130
    %v1370 = vpack.c.b16 %v1367, %v1366
    %v1371 = vpack.c.b16 %v1369, %v1368
    %v1375 = vsel %vm167, %v1354, 0
    %1377 = vmatprep.subr.bf16.mxu0 0
    %1378 = vmatpush1.bf16.msra.mxu0 %v1370
    %1379 = vmatprep.subr.bf16.mxu0 0
    %1380 = vmatpush1.bf16.msra.mxu0 %v1371
    %1381 = vmatprep.subr.bf16.mxu0 0
    %1382 = vmatpush1.bf16.msra.mxu0 0
    %1383 = vmatprep.subr.bf16.mxu0 0
    %1384 = vmatpush1.bf16.msra.mxu0 0
    %1385 = vmatprep.subr.bf16.mxu0 0
    %1386 = vmatpush1.bf16.msra.mxu0 0
    %1387 = vmatprep.subr.bf16.mxu0 0
    %1388 = vmatpush1.bf16.msra.mxu0 0
    %1389 = vmatprep.subr.bf16.mxu0 0
    %1390 = vmatpush1.bf16.msra.mxu0 0
    %1391 = vmatprep.subr.bf16.mxu0 0
    %1392 = vmatpush1.bf16.msra.mxu0 0
    %1393 = vmatprep.subr.bf16.mxu0 0
    %1394 = vmatpush1.bf16.msra.mxu0 0
    %1395 = vmatprep.subr.bf16.mxu0 0
    %1396 = vmatpush1.bf16.msra.mxu0 0
    %1397 = vmatprep.subr.bf16.mxu0 0
    %1398 = vmatpush1.bf16.msra.mxu0 0
    %1399 = vmatprep.subr.bf16.mxu0 0
    %1400 = vmatpush1.bf16.msra.mxu0 0
    %1401 = vmatprep.subr.bf16.mxu0 0
    %1402 = vmatpush1.bf16.msra.mxu0 0
    %1403 = vmatprep.subr.bf16.mxu0 0
    %1404 = vmatpush1.bf16.msra.mxu0 0
    %1405 = vmatprep.subr.bf16.mxu0 0
    %1406 = vmatpush1.bf16.msra.mxu0 0
    %1407 = vmatprep.subr.bf16.mxu0 0
    %1408 = vmatpush1.bf16.msra.mxu0 0
    %1409 = vmatprep.mubr.bf16.mxu0 0
    %1410 = vmatmul.mubr.bf16.gmra.mrb[0].mxu0 %v1375
    %v1411 = vpop.f32.mrb[0].mxu0
    %v1412 = vadd.f32 %v1360, %v1411
    %v1413 = vpop.f32.mrb[0].mxu0
    %v1414 = vpop.f32.mrb[0].mxu0
    %v1415 = vadd.f32 %v1360, %v1414
    %v1416 = vpop.f32.mrb[0].mxu0
    %1417 = vdwg.mxu0
    %v1418 = vmul.f32 %v1412, 0.5
    %v1419 = vmul.f32 %v1415, 0.5
    %v1420 = vmul.f32 %v1412, 0.70710677
    %v1421 = vmul.f32 %v1415, 0.70710677
    %v1422 = vand.u32 2147483647, %v1420
    %v1423 = vand.u32 2147483647, %v1421
    %v1424 = vmul.f32 %v1422, 0.3275911
    %v1425 = vmul.f32 %v1423, 0.3275911
    %v1426 = vadd.f32 %v1424, 1.0
    %v1427 = vadd.f32 %v1425, 1.0
    %v1428 = vrcp.pop %v1426
    %v1429 = vmul.f32 1.0, %v1428
    %v1430 = vrcp.pop %v1427
    %v1431 = vmul.f32 1.0, %v1430
    %v1432 = vmul.f32 %v1429, 1.0614054
    %v1433 = vmul.f32 %v1431, 1.0614054
    %v1434 = vadd.f32 %v1432, -1.4531521
    %v1435 = vadd.f32 %v1433, -1.4531521
    %v1436 = vmul.f32 %v1429, %v1434
    %v1437 = vmul.f32 %v1431, %v1435
    %v1438 = vadd.f32 %v1436, 1.4214138
    %v1439 = vadd.f32 %v1437, 1.4214138
    %v1440 = vmul.f32 %v1429, %v1438
    %v1441 = vmul.f32 %v1431, %v1439
    %v1442 = vadd.f32 %v1440, -0.28449672
    %v1443 = vadd.f32 %v1441, -0.28449672
    %v1444 = vmul.f32 %v1429, %v1442
    %v1445 = vmul.f32 %v1431, %v1443
    %v1446 = vadd.f32 %v1444, 0.2548296
    %v1447 = vadd.f32 %v1445, 0.2548296
    %v1448 = vmul.f32 %v1429, %v1446
    %v1449 = vmul.f32 %v1431, %v1447
    %v1450 = vsub.f32 0.0, %v1422
    %v1451 = vsub.f32 0.0, %v1423
    %v1452 = vmul.f32 %v1450, %v1422
    %v1453 = vmul.f32 %v1451, %v1423
    %v1454 = vmul.f32 %v1452, 1.442695
    %v1455 = vpow.pop %v1454
    %v1456 = vmul.f32 %v1453, 1.442695
    %v1457 = vpow.pop %v1456
    %v1458 = vmul.f32 %v1448, %v1455
    %v1459 = vmul.f32 %v1449, %v1457
    %v1460 = vsub.f32 1.0, %v1458
    %v1461 = vsub.f32 1.0, %v1459
    %vm1462 = vcmp.lt.f32.partialorder %v1420, 0.0
    %vm1463 = vcmp.lt.f32.partialorder %v1421, 0.0
    %v1464 = vsub.f32 0.0, %v1460
    %v1465 = vsub.f32 0.0, %v1461
    %v1466 = vsel %vm1462, %v1464, %v1460
    %v1467 = vsel %vm1463, %v1465, %v1461
    %v1468 = vadd.f32 %v1466, 1.0
    %v1469 = vadd.f32 %v1467, 1.0
    %v1470 = vmul.f32 %v1418, %v1468
    %v1471 = vmul.f32 %v1419, %v1469
    %v1472 = vpack.c.bf16 %v1471, %v1470
    %v1473 = vld [vmem:[%s12] sm:$0x1]
    %v1475 = vlaneseq
    %v1476 = vshrl.u32 %v1475, 7
    %v1477 = vsub.s32 0, %v1476
    %v1478 = vrot.slane %v1473, %v1477
    %v1496 = vunpack.c.l.b16 %v131
    %v1497 = vunpack.c.l.b16 %v132
    %v1498 = vunpack.c.l.b16 %v133
    %v1499 = vunpack.c.l.b16 %v134
    %v1500 = vunpack.c.l.b16 %v135
    %v1501 = vunpack.c.l.b16 %v136
    %v1502 = vunpack.c.l.b16 %v137
    %v1503 = vunpack.c.l.b16 %v138
    %v1504 = vunpack.c.l.b16 %v139
    %v1505 = vunpack.c.l.b16 %v140
    %v1506 = vunpack.c.l.b16 %v141
    %v1507 = vunpack.c.l.b16 %v142
    %v1508 = vunpack.c.l.b16 %v143
    %v1509 = vunpack.c.l.b16 %v144
    %v1510 = vunpack.c.l.b16 %v145
    %v1511 = vunpack.c.l.b16 %v146
    %v1512 = vpack.c.b16 %v1497, %v1496
    %v1513 = vpack.c.b16 %v1499, %v1498
    %v1514 = vpack.c.b16 %v1501, %v1500
    %v1515 = vpack.c.b16 %v1503, %v1502
    %v1516 = vpack.c.b16 %v1505, %v1504
    %v1517 = vpack.c.b16 %v1507, %v1506
    %v1518 = vpack.c.b16 %v1509, %v1508
    %v1519 = vpack.c.b16 %v1511, %v1510
    %1528 = vmatprep.subr.bf16.mxu0 0
    %1529 = vmatpush1.bf16.msra.mxu0 %v1512
    %1530 = vmatprep.subr.bf16.mxu0 0
    %1531 = vmatpush1.bf16.msra.mxu0 %v1513
    %1532 = vmatprep.subr.bf16.mxu0 0
    %1533 = vmatpush1.bf16.msra.mxu0 %v1514
    %1534 = vmatprep.subr.bf16.mxu0 0
    %1535 = vmatpush1.bf16.msra.mxu0 %v1515
    %1536 = vmatprep.subr.bf16.mxu0 0
    %1537 = vmatpush1.bf16.msra.mxu0 %v1516
    %1538 = vmatprep.subr.bf16.mxu0 0
    %1539 = vmatpush1.bf16.msra.mxu0 %v1517
    %1540 = vmatprep.subr.bf16.mxu0 0
    %1541 = vmatpush1.bf16.msra.mxu0 %v1518
    %1542 = vmatprep.subr.bf16.mxu0 0
    %1543 = vmatpush1.bf16.msra.mxu0 %v1519
    %1544 = vmatprep.subr.bf16.mxu0 0
    %1545 = vmatpush1.bf16.msra.mxu0 0
    %1546 = vmatprep.subr.bf16.mxu0 0
    %1547 = vmatpush1.bf16.msra.mxu0 0
    %1548 = vmatprep.subr.bf16.mxu0 0
    %1549 = vmatpush1.bf16.msra.mxu0 0
    %1550 = vmatprep.subr.bf16.mxu0 0
    %1551 = vmatpush1.bf16.msra.mxu0 0
    %1552 = vmatprep.subr.bf16.mxu0 0
    %1553 = vmatpush1.bf16.msra.mxu0 0
    %1554 = vmatprep.subr.bf16.mxu0 0
    %1555 = vmatpush1.bf16.msra.mxu0 0
    %1556 = vmatprep.subr.bf16.mxu0 0
    %1557 = vmatpush1.bf16.msra.mxu0 0
    %1558 = vmatprep.subr.bf16.mxu0 0
    %1559 = vmatpush1.bf16.msra.mxu0 0
    %1560 = vmatprep.mubr.bf16.mxu0 0
    %1561 = vmatmul.mubr.bf16.gmra.mrb[0].mxu0 %v1472
    %v1562 = vpop.f32.mrb[0].mxu0
    %v1563 = vadd.f32 %v1478, %v1562
    %v1564 = vpop.f32.mrb[0].mxu0
    %v1565 = vpop.f32.mrb[0].mxu0
    %v1566 = vadd.f32 %v1478, %v1565
    %v1567 = vpop.f32.mrb[0].mxu0
    %1568 = vdwg.mxu0
    %v1569 = vadd.f32 %v1352, %v1563
    %v1570 = vadd.f32 %v1353, %v1566
    %v1571 = vld [vmem:[%s13] sm:$0x1]
    %v1572 = vld [vmem:[%s14] sm:$0x1]
    %v1573 = vsel %vm167, %v1569, 0.0
    %1574 = vadd.xlane.f32.xlu0 %v1573
    %v1575 = vpop.xlane.xlu0 %1574
    %v1576 = vsel %vm167, %v1570, 0.0
    %1577 = vadd.xlane.f32.xlu0 %v1576
    %v1578 = vpop.xlane.xlu0 %1577
    %v1579 = vmul.f32 %v1575, %v1317
    %v1580 = vmul.f32 %v1578, %v1317
    %v1581 = vsub.f32 %v1569, %v1579
    %v1582 = vsub.f32 %v1570, %v1580
    %v1583 = vmul.f32 %v1581, %v1581
    %v1584 = vmul.f32 %v1582, %v1582
    %v1585 = vsel %vm167, %v1583, 0.0
    %1586 = vadd.xlane.f32.xlu0 %v1585
    %v1587 = vpop.xlane.xlu0 %1586
    %v1588 = vsel %vm167, %v1584, 0.0
    %1589 = vadd.xlane.f32.xlu0 %v1588
    %v1590 = vpop.xlane.xlu0 %1589
    %v1591 = vmul.f32 %v1587, %v1317
    %v1592 = vmul.f32 %v1590, %v1317
    %v1593 = vadd.f32 %v1591, 1e-05
    %v1594 = vadd.f32 %v1592, 1e-05
    %v1595 = vrsqrt.pop %v1593
    %v1596 = vrsqrt.pop %v1594
    %v1597 = vmul.f32 %v1581, %v1595
    %v1598 = vmul.f32 %v1582, %v1596
    %v1600 = vlaneseq
    %v1601 = vshrl.u32 %v1600, 7
    %v1602 = vsub.s32 0, %v1601
    %v1603 = vrot.slane %v1571, %v1602
    %v1605 = vmul.f32 %v1597, %v1603
    %v1606 = vmul.f32 %v1598, %v1603
    %v1608 = vlaneseq
    %v1609 = vshrl.u32 %v1608, 7
    %v1610 = vsub.s32 0, %v1609
    %v1611 = vrot.slane %v1572, %v1610
    %v1613 = vadd.f32 %v1605, %v1611
    %v1614 = vadd.f32 %v1606, %v1611
    %s1615 = scalar_lea.vmem %s3, 16
    %v1616 = vld [vmem:[%s1615] sm:$0xf]
    %v1617 = vld [vmem:[%s1615 + $0x4] sm:$0xf]
    %v1618 = vld [vmem:[%s1615 + $0x8] sm:$0xf]
    %v1619 = vld [vmem:[%s1615 + $0xc] sm:$0xf]
    %s1620 = scalar_lea.vmem %s5, 16
    %v1621 = vld [vmem:[%s1620] sm:$0xf]
    %v1622 = vld [vmem:[%s1620 + $0x4] sm:$0xf]
    %v1623 = vld [vmem:[%s1620 + $0x8] sm:$0xf]
    %v1624 = vld [vmem:[%s1620 + $0xc] sm:$0xf]
    %s1625 = scalar_lea.vmem %s9, 16
    %v1626 = vld [vmem:[%s1625] sm:$0xf]
    %v1627 = vld [vmem:[%s1625 + $0x4] sm:$0xf]
    %v1628 = vld [vmem:[%s1625 + $0x8] sm:$0xf]
    %v1629 = vld [vmem:[%s1625 + $0xc] sm:$0xf]
    %s1630 = scalar_lea.vmem %s11, 64
    %v1631 = vld [vmem:[%s1630] sm:$0xf]
    %v1632 = vld [vmem:[%s1630 + $0x4] sm:$0xf]
    %v1633 = vld [vmem:[%s1630 + $0x8] sm:$0xf]
    %v1634 = vld [vmem:[%s1630 + $0xc] sm:$0xf]
    %v1635 = vld [vmem:[%s1630 + $0x10] sm:$0xf]
    %v1636 = vld [vmem:[%s1630 + $0x14] sm:$0xf]
    %v1637 = vld [vmem:[%s1630 + $0x18] sm:$0xf]
    %v1638 = vld [vmem:[%s1630 + $0x1c] sm:$0xf]
    %v1639 = vld [vmem:[%s1630 + $0x20] sm:$0xf]
    %v1640 = vld [vmem:[%s1630 + $0x24] sm:$0xf]
    %v1641 = vld [vmem:[%s1630 + $0x28] sm:$0xf]
    %v1642 = vld [vmem:[%s1630 + $0x2c] sm:$0xf]
    %v1643 = vld [vmem:[%s1630 + $0x30] sm:$0xf]
    %v1644 = vld [vmem:[%s1630 + $0x34] sm:$0xf]
    %v1645 = vld [vmem:[%s1630 + $0x38] sm:$0xf]
    %v1646 = vld [vmem:[%s1630 + $0x3c] sm:$0xf]
    %v1647 = vpack.c.bf16 %v1614, %v1613
    %s1648 = scalar_lea.vmem %s4, 1
    %v1649 = vld [vmem:[%s1648] sm:$0x1]
    %v1651 = vlaneseq
    %v1652 = vshrl.u32 %v1651, 7
    %v1653 = vsub.s32 0, %v1652
    %v1654 = vrot.slane %v1649, %v1653
    %v1660 = vunpack.c.l.b16 %v1616
    %v1661 = vunpack.c.l.b16 %v1617
    %v1662 = vunpack.c.l.b16 %v1618
    %v1663 = vunpack.c.l.b16 %v1619
    %v1664 = vpack.c.b16 %v1661, %v1660
    %v1665 = vpack.c.b16 %v1663, %v1662
    %v1669 = vsel %vm167, %v1647, 0
    %1671 = vmatprep.subr.bf16.mxu0 0
    %1672 = vmatpush1.bf16.msra.mxu0 %v1664
    %1673 = vmatprep.subr.bf16.mxu0 0
    %1674 = vmatpush1.bf16.msra.mxu0 %v1665
    %1675 = vmatprep.subr.bf16.mxu0 0
    %1676 = vmatpush1.bf16.msra.mxu0 0
    %1677 = vmatprep.subr.bf16.mxu0 0
    %1678 = vmatpush1.bf16.msra.mxu0 0
    %1679 = vmatprep.subr.bf16.mxu0 0
    %1680 = vmatpush1.bf16.msra.mxu0 0
    %1681 = vmatprep.subr.bf16.mxu0 0
    %1682 = vmatpush1.bf16.msra.mxu0 0
    %1683 = vmatprep.subr.bf16.mxu0 0
    %1684 = vmatpush1.bf16.msra.mxu0 0
    %1685 = vmatprep.subr.bf16.mxu0 0
    %1686 = vmatpush1.bf16.msra.mxu0 0
    %1687 = vmatprep.subr.bf16.mxu0 0
    %1688 = vmatpush1.bf16.msra.mxu0 0
    %1689 = vmatprep.subr.bf16.mxu0 0
    %1690 = vmatpush1.bf16.msra.mxu0 0
    %1691 = vmatprep.subr.bf16.mxu0 0
    %1692 = vmatpush1.bf16.msra.mxu0 0
    %1693 = vmatprep.subr.bf16.mxu0 0
    %1694 = vmatpush1.bf16.msra.mxu0 0
    %1695 = vmatprep.subr.bf16.mxu0 0
    %1696 = vmatpush1.bf16.msra.mxu0 0
    %1697 = vmatprep.subr.bf16.mxu0 0
    %1698 = vmatpush1.bf16.msra.mxu0 0
    %1699 = vmatprep.subr.bf16.mxu0 0
    %1700 = vmatpush1.bf16.msra.mxu0 0
    %1701 = vmatprep.subr.bf16.mxu0 0
    %1702 = vmatpush1.bf16.msra.mxu0 0
    %1703 = vmatprep.mubr.bf16.mxu0 0
    %1704 = vmatmul.mubr.bf16.gmra.mrb[0].mxu0 %v1669
    %v1705 = vpop.f32.mrb[0].mxu0
    %v1706 = vadd.f32 %v1654, %v1705
    %v1707 = vpop.f32.mrb[0].mxu0
    %v1708 = vpop.f32.mrb[0].mxu0
    %v1709 = vadd.f32 %v1654, %v1708
    %v1710 = vpop.f32.mrb[0].mxu0
    %1711 = vdwg.mxu0
    %v1712 = vpack.c.bf16 %v1706, %v1706
    %v1713 = vpack.c.bf16 %v1709, %v1709
    %1715 = vrot.lane.b32.xlu0 %v1712, 96
    %v1716 = vpop.permute.xlu0 %1715
    %v1718 = vsel %vm217, %v1712, 0
    %v1721 = vsel %vm217, %v1716, 0
    %1723 = vmatprep.subr.bf16.mxu0 0
    %1724 = vmatpush1.bf16.xpose.msra.mxu0 %v1721
    %1725 = vmatprep.subr.bf16.mxu0 0
    %1726 = vmatpush1.bf16.xpose.msra.mxu0 0
    %1727 = vmatprep.subr.bf16.mxu0 0
    %1728 = vmatpush1.bf16.xpose.msra.mxu0 0
    %1729 = vmatprep.subr.bf16.mxu0 0
    %1730 = vmatpush1.bf16.xpose.msra.mxu0 0
    %1731 = vmatprep.subr.bf16.mxu0 0
    %1732 = vmatpush1.bf16.xpose.msra.mxu0 0
    %1733 = vmatprep.subr.bf16.mxu0 0
    %1734 = vmatpush1.bf16.xpose.msra.mxu0 0
    %1735 = vmatprep.subr.bf16.mxu0 0
    %1736 = vmatpush1.bf16.xpose.msra.mxu0 0
    %1737 = vmatprep.subr.bf16.mxu0 0
    %1738 = vmatpush1.bf16.xpose.msra.mxu0 0
    %1739 = vmatprep.subr.bf16.mxu0 0
    %1740 = vmatpush1.bf16.xpose.msra.mxu0 0
    %1741 = vmatprep.subr.bf16.mxu0 0
    %1742 = vmatpush1.bf16.xpose.msra.mxu0 0
    %1743 = vmatprep.subr.bf16.mxu0 0
    %1744 = vmatpush1.bf16.xpose.msra.mxu0 0
    %1745 = vmatprep.subr.bf16.mxu0 0
    %1746 = vmatpush1.bf16.xpose.msra.mxu0 0
    %1747 = vmatprep.subr.bf16.mxu0 0
    %1748 = vmatpush1.bf16.xpose.msra.mxu0 0
    %1749 = vmatprep.subr.bf16.mxu0 0
    %1750 = vmatpush1.bf16.xpose.msra.mxu0 0
    %1751 = vmatprep.subr.bf16.mxu0 0
    %1752 = vmatpush1.bf16.xpose.msra.mxu0 0
    %1753 = vmatprep.subr.bf16.mxu0 0
    %1754 = vmatpush1.bf16.xpose.msra.mxu0 0
    %1755 = vmatprep.mubr.bf16.mxu0 0
    %1756 = vmatmul.mubr.bf16.gmra.mrb[0].mxu0 %v1718
    %v1757 = vpop.f32.mrb[0].mxu0
    %v1758 = vadd.f32 0.0, %v1757
    %v1759 = vpop.f32.mrb[0].mxu0
    %v1760 = vpop.f32.mrb[0].mxu0
    %v1761 = vpop.f32.mrb[0].mxu0
    %1762 = vdwg.mxu0
    %1764 = vrot.lane.b32.xlu0 %v1713, 96
    %v1765 = vpop.permute.xlu0 %1764
    %v1767 = vsel %vm217, %v1713, 0
    %v1770 = vsel %vm217, %v1765, 0
    %1772 = vmatprep.subr.bf16.mxu0 0
    %1773 = vmatpush1.bf16.xpose.msra.mxu0 %v1770
    %1774 = vmatprep.subr.bf16.mxu0 0
    %1775 = vmatpush1.bf16.xpose.msra.mxu0 0
    %1776 = vmatprep.subr.bf16.mxu0 0
    %1777 = vmatpush1.bf16.xpose.msra.mxu0 0
    %1778 = vmatprep.subr.bf16.mxu0 0
    %1779 = vmatpush1.bf16.xpose.msra.mxu0 0
    %1780 = vmatprep.subr.bf16.mxu0 0
    %1781 = vmatpush1.bf16.xpose.msra.mxu0 0
    %1782 = vmatprep.subr.bf16.mxu0 0
    %1783 = vmatpush1.bf16.xpose.msra.mxu0 0
    %1784 = vmatprep.subr.bf16.mxu0 0
    %1785 = vmatpush1.bf16.xpose.msra.mxu0 0
    %1786 = vmatprep.subr.bf16.mxu0 0
    %1787 = vmatpush1.bf16.xpose.msra.mxu0 0
    %1788 = vmatprep.subr.bf16.mxu0 0
    %1789 = vmatpush1.bf16.xpose.msra.mxu0 0
    %1790 = vmatprep.subr.bf16.mxu0 0
    %1791 = vmatpush1.bf16.xpose.msra.mxu0 0
    %1792 = vmatprep.subr.bf16.mxu0 0
    %1793 = vmatpush1.bf16.xpose.msra.mxu0 0
    %1794 = vmatprep.subr.bf16.mxu0 0
    %1795 = vmatpush1.bf16.xpose.msra.mxu0 0
    %1796 = vmatprep.subr.bf16.mxu0 0
    %1797 = vmatpush1.bf16.xpose.msra.mxu0 0
    %1798 = vmatprep.subr.bf16.mxu0 0
    %1799 = vmatpush1.bf16.xpose.msra.mxu0 0
    %1800 = vmatprep.subr.bf16.mxu0 0
    %1801 = vmatpush1.bf16.xpose.msra.mxu0 0
    %1802 = vmatprep.subr.bf16.mxu0 0
    %1803 = vmatpush1.bf16.xpose.msra.mxu0 0
    %1804 = vmatprep.mubr.bf16.mxu0 0
    %1805 = vmatmul.mubr.bf16.gmra.mrb[0].mxu0 %v1767
    %v1806 = vpop.f32.mrb[0].mxu0
    %v1807 = vadd.f32 0.0, %v1806
    %v1808 = vpop.f32.mrb[0].mxu0
    %v1809 = vpop.f32.mrb[0].mxu0
    %v1810 = vpop.f32.mrb[0].mxu0
    %1811 = vdwg.mxu0
    %v1812 = vmul.f32 %v1758, 0.35355338
    %v1813 = vmul.f32 %v1807, 0.35355338
    %v1814 = vsel %vm217, %v1812, -inf
    %1815 = vmax.xlane.f32.xlu0 %v1814
    %v1816 = vpop.xlane.xlu0 %1815
    %v1817 = vsel %vm217, %v1813, -inf
    %1818 = vmax.xlane.f32.xlu0 %v1817
    %v1819 = vpop.xlane.xlu0 %1818
    %v1820 = vsub.f32 %v1812, %v1816
    %v1821 = vsub.f32 %v1813, %v1819
    %v1822 = vmul.f32 %v1820, 1.442695
    %v1823 = vpow.pop %v1822
    %v1824 = vmul.f32 %v1821, 1.442695
    %v1825 = vpow.pop %v1824
    %v1826 = vsel %vm217, %v1823, 0.0
    %1827 = vadd.xlane.f32.xlu0 %v1826
    %v1828 = vpop.xlane.xlu0 %1827
    %v1829 = vsel %vm217, %v1825, 0.0
    %1830 = vadd.xlane.f32.xlu0 %v1829
    %v1831 = vpop.xlane.xlu0 %1830
    %v1832 = vrcp.pop %v1828
    %v1833 = vrcp.pop %v1831
    %v1834 = vmul.f32 %v1823, %v1832
    %v1835 = vmul.f32 %v1825, %v1833
    %v1836 = vpack.c.bf16 %v1834, %v1834
    %v1837 = vpack.c.bf16 %v1835, %v1835
    %1838 = vrot.lane.b32.xlu0 %v1712, 64
    %v1839 = vpop.permute.xlu0 %1838
    %v1841 = vsel %vm217, %v1836, 0
    %v1844 = vsel %vm344, %v1839, 0
    %1846 = vmatprep.subr.bf16.mxu0 0
    %1847 = vmatpush1.bf16.msra.mxu0 %v1844
    %1848 = vmatprep.subr.bf16.mxu0 0
    %1849 = vmatpush1.bf16.msra.mxu0 0
    %1850 = vmatprep.subr.bf16.mxu0 0
    %1851 = vmatpush1.bf16.msra.mxu0 0
    %1852 = vmatprep.subr.bf16.mxu0 0
    %1853 = vmatpush1.bf16.msra.mxu0 0
    %1854 = vmatprep.subr.bf16.mxu0 0
    %1855 = vmatpush1.bf16.msra.mxu0 0
    %1856 = vmatprep.subr.bf16.mxu0 0
    %1857 = vmatpush1.bf16.msra.mxu0 0
    %1858 = vmatprep.subr.bf16.mxu0 0
    %1859 = vmatpush1.bf16.msra.mxu0 0
    %1860 = vmatprep.subr.bf16.mxu0 0
    %1861 = vmatpush1.bf16.msra.mxu0 0
    %1862 = vmatprep.subr.bf16.mxu0 0
    %1863 = vmatpush1.bf16.msra.mxu0 0
    %1864 = vmatprep.subr.bf16.mxu0 0
    %1865 = vmatpush1.bf16.msra.mxu0 0
    %1866 = vmatprep.subr.bf16.mxu0 0
    %1867 = vmatpush1.bf16.msra.mxu0 0
    %1868 = vmatprep.subr.bf16.mxu0 0
    %1869 = vmatpush1.bf16.msra.mxu0 0
    %1870 = vmatprep.subr.bf16.mxu0 0
    %1871 = vmatpush1.bf16.msra.mxu0 0
    %1872 = vmatprep.subr.bf16.mxu0 0
    %1873 = vmatpush1.bf16.msra.mxu0 0
    %1874 = vmatprep.subr.bf16.mxu0 0
    %1875 = vmatpush1.bf16.msra.mxu0 0
    %1876 = vmatprep.subr.bf16.mxu0 0
    %1877 = vmatpush1.bf16.msra.mxu0 0
    %1878 = vmatprep.mubr.bf16.mxu0 0
    %1879 = vmatmul.mubr.bf16.gmra.mrb[0].mxu0 %v1841
    %v1880 = vpop.f32.mrb[0].mxu0
    %v1881 = vadd.f32 0.0, %v1880
    %v1882 = vpop.f32.mrb[0].mxu0
    %v1883 = vpop.f32.mrb[0].mxu0
    %v1884 = vpop.f32.mrb[0].mxu0
    %1885 = vdwg.mxu0
    %1886 = vrot.lane.b32.xlu0 %v1713, 64
    %v1887 = vpop.permute.xlu0 %1886
    %v1889 = vsel %vm217, %v1837, 0
    %v1892 = vsel %vm344, %v1887, 0
    %1894 = vmatprep.subr.bf16.mxu0 0
    %1895 = vmatpush1.bf16.msra.mxu0 %v1892
    %1896 = vmatprep.subr.bf16.mxu0 0
    %1897 = vmatpush1.bf16.msra.mxu0 0
    %1898 = vmatprep.subr.bf16.mxu0 0
    %1899 = vmatpush1.bf16.msra.mxu0 0
    %1900 = vmatprep.subr.bf16.mxu0 0
    %1901 = vmatpush1.bf16.msra.mxu0 0
    %1902 = vmatprep.subr.bf16.mxu0 0
    %1903 = vmatpush1.bf16.msra.mxu0 0
    %1904 = vmatprep.subr.bf16.mxu0 0
    %1905 = vmatpush1.bf16.msra.mxu0 0
    %1906 = vmatprep.subr.bf16.mxu0 0
    %1907 = vmatpush1.bf16.msra.mxu0 0
    %1908 = vmatprep.subr.bf16.mxu0 0
    %1909 = vmatpush1.bf16.msra.mxu0 0
    %1910 = vmatprep.subr.bf16.mxu0 0
    %1911 = vmatpush1.bf16.msra.mxu0 0
    %1912 = vmatprep.subr.bf16.mxu0 0
    %1913 = vmatpush1.bf16.msra.mxu0 0
    %1914 = vmatprep.subr.bf16.mxu0 0
    %1915 = vmatpush1.bf16.msra.mxu0 0
    %1916 = vmatprep.subr.bf16.mxu0 0
    %1917 = vmatpush1.bf16.msra.mxu0 0
    %1918 = vmatprep.subr.bf16.mxu0 0
    %1919 = vmatpush1.bf16.msra.mxu0 0
    %1920 = vmatprep.subr.bf16.mxu0 0
    %1921 = vmatpush1.bf16.msra.mxu0 0
    %1922 = vmatprep.subr.bf16.mxu0 0
    %1923 = vmatpush1.bf16.msra.mxu0 0
    %1924 = vmatprep.subr.bf16.mxu0 0
    %1925 = vmatpush1.bf16.msra.mxu0 0
    %1926 = vmatprep.mubr.bf16.mxu0 0
    %1927 = vmatmul.mubr.bf16.gmra.mrb[0].mxu0 %v1889
    %v1928 = vpop.f32.mrb[0].mxu0
    %v1929 = vadd.f32 0.0, %v1928
    %v1930 = vpop.f32.mrb[0].mxu0
    %v1931 = vpop.f32.mrb[0].mxu0
    %v1932 = vpop.f32.mrb[0].mxu0
    %1933 = vdwg.mxu0
    %v1934 = vpack.c.bf16 %v1929, %v1881
    %1935 = vrot.lane.b32.xlu0 %v1712, 120
    %v1936 = vpop.permute.xlu0 %1935
    %1937 = vrot.lane.b32.xlu0 %v1712, 88
    %v1938 = vpop.permute.xlu0 %1937
    %v1940 = vsel %vm217, %v1936, 0
    %v1943 = vsel %vm217, %v1938, 0
    %1945 = vmatprep.subr.bf16.mxu0 0
    %1946 = vmatpush1.bf16.xpose.msra.mxu0 %v1943
    %1947 = vmatprep.subr.bf16.mxu0 0
    %1948 = vmatpush1.bf16.xpose.msra.mxu0 0
    %1949 = vmatprep.subr.bf16.mxu0 0
    %1950 = vmatpush1.bf16.xpose.msra.mxu0 0
    %1951 = vmatprep.subr.bf16.mxu0 0
    %1952 = vmatpush1.bf16.xpose.msra.mxu0 0
    %1953 = vmatprep.subr.bf16.mxu0 0
    %1954 = vmatpush1.bf16.xpose.msra.mxu0 0
    %1955 = vmatprep.subr.bf16.mxu0 0
    %1956 = vmatpush1.bf16.xpose.msra.mxu0 0
    %1957 = vmatprep.subr.bf16.mxu0 0
    %1958 = vmatpush1.bf16.xpose.msra.mxu0 0
    %1959 = vmatprep.subr.bf16.mxu0 0
    %1960 = vmatpush1.bf16.xpose.msra.mxu0 0
    %1961 = vmatprep.subr.bf16.mxu0 0
    %1962 = vmatpush1.bf16.xpose.msra.mxu0 0
    %1963 = vmatprep.subr.bf16.mxu0 0
    %1964 = vmatpush1.bf16.xpose.msra.mxu0 0
    %1965 = vmatprep.subr.bf16.mxu0 0
    %1966 = vmatpush1.bf16.xpose.msra.mxu0 0
    %1967 = vmatprep.subr.bf16.mxu0 0
    %1968 = vmatpush1.bf16.xpose.msra.mxu0 0
    %1969 = vmatprep.subr.bf16.mxu0 0
    %1970 = vmatpush1.bf16.xpose.msra.mxu0 0
    %1971 = vmatprep.subr.bf16.mxu0 0
    %1972 = vmatpush1.bf16.xpose.msra.mxu0 0
    %1973 = vmatprep.subr.bf16.mxu0 0
    %1974 = vmatpush1.bf16.xpose.msra.mxu0 0
    %1975 = vmatprep.subr.bf16.mxu0 0
    %1976 = vmatpush1.bf16.xpose.msra.mxu0 0
    %1977 = vmatprep.mubr.bf16.mxu0 0
    %1978 = vmatmul.mubr.bf16.gmra.mrb[0].mxu0 %v1940
    %v1979 = vpop.f32.mrb[0].mxu0
    %v1980 = vadd.f32 0.0, %v1979
    %v1981 = vpop.f32.mrb[0].mxu0
    %v1982 = vpop.f32.mrb[0].mxu0
    %v1983 = vpop.f32.mrb[0].mxu0
    %1984 = vdwg.mxu0
    %1985 = vrot.lane.b32.xlu0 %v1713, 120
    %v1986 = vpop.permute.xlu0 %1985
    %1987 = vrot.lane.b32.xlu0 %v1713, 88
    %v1988 = vpop.permute.xlu0 %1987
    %v1990 = vsel %vm217, %v1986, 0
    %v1993 = vsel %vm217, %v1988, 0
    %1995 = vmatprep.subr.bf16.mxu0 0
    %1996 = vmatpush1.bf16.xpose.msra.mxu0 %v1993
    %1997 = vmatprep.subr.bf16.mxu0 0
    %1998 = vmatpush1.bf16.xpose.msra.mxu0 0
    %1999 = vmatprep.subr.bf16.mxu0 0
    %2000 = vmatpush1.bf16.xpose.msra.mxu0 0
    %2001 = vmatprep.subr.bf16.mxu0 0
    %2002 = vmatpush1.bf16.xpose.msra.mxu0 0
    %2003 = vmatprep.subr.bf16.mxu0 0
    %2004 = vmatpush1.bf16.xpose.msra.mxu0 0
    %2005 = vmatprep.subr.bf16.mxu0 0
    %2006 = vmatpush1.bf16.xpose.msra.mxu0 0
    %2007 = vmatprep.subr.bf16.mxu0 0
    %2008 = vmatpush1.bf16.xpose.msra.mxu0 0
    %2009 = vmatprep.subr.bf16.mxu0 0
    %2010 = vmatpush1.bf16.xpose.msra.mxu0 0
    %2011 = vmatprep.subr.bf16.mxu0 0
    %2012 = vmatpush1.bf16.xpose.msra.mxu0 0
    %2013 = vmatprep.subr.bf16.mxu0 0
    %2014 = vmatpush1.bf16.xpose.msra.mxu0 0
    %2015 = vmatprep.subr.bf16.mxu0 0
    %2016 = vmatpush1.bf16.xpose.msra.mxu0 0
    %2017 = vmatprep.subr.bf16.mxu0 0
    %2018 = vmatpush1.bf16.xpose.msra.mxu0 0
    %2019 = vmatprep.subr.bf16.mxu0 0
    %2020 = vmatpush1.bf16.xpose.msra.mxu0 0
    %2021 = vmatprep.subr.bf16.mxu0 0
    %2022 = vmatpush1.bf16.xpose.msra.mxu0 0
    %2023 = vmatprep.subr.bf16.mxu0 0
    %2024 = vmatpush1.bf16.xpose.msra.mxu0 0
    %2025 = vmatprep.subr.bf16.mxu0 0
    %2026 = vmatpush1.bf16.xpose.msra.mxu0 0
    %2027 = vmatprep.mubr.bf16.mxu0 0
    %2028 = vmatmul.mubr.bf16.gmra.mrb[0].mxu0 %v1990
    %v2029 = vpop.f32.mrb[0].mxu0
    %v2030 = vadd.f32 0.0, %v2029
    %v2031 = vpop.f32.mrb[0].mxu0
    %v2032 = vpop.f32.mrb[0].mxu0
    %v2033 = vpop.f32.mrb[0].mxu0
    %2034 = vdwg.mxu0
    %v2035 = vmul.f32 %v1980, 0.35355338
    %v2036 = vmul.f32 %v2030, 0.35355338
    %v2037 = vsel %vm217, %v2035, -inf
    %2038 = vmax.xlane.f32.xlu0 %v2037
    %v2039 = vpop.xlane.xlu0 %2038
    %v2040 = vsel %vm217, %v2036, -inf
    %2041 = vmax.xlane.f32.xlu0 %v2040
    %v2042 = vpop.xlane.xlu0 %2041
    %v2043 = vsub.f32 %v2035, %v2039
    %v2044 = vsub.f32 %v2036, %v2042
    %v2045 = vmul.f32 %v2043, 1.442695
    %v2046 = vpow.pop %v2045
    %v2047 = vmul.f32 %v2044, 1.442695
    %v2048 = vpow.pop %v2047
    %v2049 = vsel %vm217, %v2046, 0.0
    %2050 = vadd.xlane.f32.xlu0 %v2049
    %v2051 = vpop.xlane.xlu0 %2050
    %v2052 = vsel %vm217, %v2048, 0.0
    %2053 = vadd.xlane.f32.xlu0 %v2052
    %v2054 = vpop.xlane.xlu0 %2053
    %v2055 = vrcp.pop %v2051
    %v2056 = vrcp.pop %v2054
    %v2057 = vmul.f32 %v2046, %v2055
    %v2058 = vmul.f32 %v2048, %v2056
    %v2059 = vpack.c.bf16 %v2057, %v2057
    %v2060 = vpack.c.bf16 %v2058, %v2058
    %2061 = vrot.lane.b32.xlu0 %v1712, 56
    %v2062 = vpop.permute.xlu0 %2061
    %v2064 = vsel %vm217, %v2059, 0
    %v2067 = vsel %vm344, %v2062, 0
    %2069 = vmatprep.subr.bf16.mxu0 0
    %2070 = vmatpush1.bf16.msra.mxu0 %v2067
    %2071 = vmatprep.subr.bf16.mxu0 0
    %2072 = vmatpush1.bf16.msra.mxu0 0
    %2073 = vmatprep.subr.bf16.mxu0 0
    %2074 = vmatpush1.bf16.msra.mxu0 0
    %2075 = vmatprep.subr.bf16.mxu0 0
    %2076 = vmatpush1.bf16.msra.mxu0 0
    %2077 = vmatprep.subr.bf16.mxu0 0
    %2078 = vmatpush1.bf16.msra.mxu0 0
    %2079 = vmatprep.subr.bf16.mxu0 0
    %2080 = vmatpush1.bf16.msra.mxu0 0
    %2081 = vmatprep.subr.bf16.mxu0 0
    %2082 = vmatpush1.bf16.msra.mxu0 0
    %2083 = vmatprep.subr.bf16.mxu0 0
    %2084 = vmatpush1.bf16.msra.mxu0 0
    %2085 = vmatprep.subr.bf16.mxu0 0
    %2086 = vmatpush1.bf16.msra.mxu0 0
    %2087 = vmatprep.subr.bf16.mxu0 0
    %2088 = vmatpush1.bf16.msra.mxu0 0
    %2089 = vmatprep.subr.bf16.mxu0 0
    %2090 = vmatpush1.bf16.msra.mxu0 0
    %2091 = vmatprep.subr.bf16.mxu0 0
    %2092 = vmatpush1.bf16.msra.mxu0 0
    %2093 = vmatprep.subr.bf16.mxu0 0
    %2094 = vmatpush1.bf16.msra.mxu0 0
    %2095 = vmatprep.subr.bf16.mxu0 0
    %2096 = vmatpush1.bf16.msra.mxu0 0
    %2097 = vmatprep.subr.bf16.mxu0 0
    %2098 = vmatpush1.bf16.msra.mxu0 0
    %2099 = vmatprep.subr.bf16.mxu0 0
    %2100 = vmatpush1.bf16.msra.mxu0 0
    %2101 = vmatprep.mubr.bf16.mxu0 0
    %2102 = vmatmul.mubr.bf16.gmra.mrb[0].mxu0 %v2064
    %v2103 = vpop.f32.mrb[0].mxu0
    %v2104 = vadd.f32 0.0, %v2103
    %v2105 = vpop.f32.mrb[0].mxu0
    %v2106 = vpop.f32.mrb[0].mxu0
    %v2107 = vpop.f32.mrb[0].mxu0
    %2108 = vdwg.mxu0
    %2109 = vrot.lane.b32.xlu0 %v1713, 56
    %v2110 = vpop.permute.xlu0 %2109
    %v2112 = vsel %vm217, %v2060, 0
    %v2115 = vsel %vm344, %v2110, 0
    %2117 = vmatprep.subr.bf16.mxu0 0
    %2118 = vmatpush1.bf16.msra.mxu0 %v2115
    %2119 = vmatprep.subr.bf16.mxu0 0
    %2120 = vmatpush1.bf16.msra.mxu0 0
    %2121 = vmatprep.subr.bf16.mxu0 0
    %2122 = vmatpush1.bf16.msra.mxu0 0
    %2123 = vmatprep.subr.bf16.mxu0 0
    %2124 = vmatpush1.bf16.msra.mxu0 0
    %2125 = vmatprep.subr.bf16.mxu0 0
    %2126 = vmatpush1.bf16.msra.mxu0 0
    %2127 = vmatprep.subr.bf16.mxu0 0
    %2128 = vmatpush1.bf16.msra.mxu0 0
    %2129 = vmatprep.subr.bf16.mxu0 0
    %2130 = vmatpush1.bf16.msra.mxu0 0
    %2131 = vmatprep.subr.bf16.mxu0 0
    %2132 = vmatpush1.bf16.msra.mxu0 0
    %2133 = vmatprep.subr.bf16.mxu0 0
    %2134 = vmatpush1.bf16.msra.mxu0 0
    %2135 = vmatprep.subr.bf16.mxu0 0
    %2136 = vmatpush1.bf16.msra.mxu0 0
    %2137 = vmatprep.subr.bf16.mxu0 0
    %2138 = vmatpush1.bf16.msra.mxu0 0
    %2139 = vmatprep.subr.bf16.mxu0 0
    %2140 = vmatpush1.bf16.msra.mxu0 0
    %2141 = vmatprep.subr.bf16.mxu0 0
    %2142 = vmatpush1.bf16.msra.mxu0 0
    %2143 = vmatprep.subr.bf16.mxu0 0
    %2144 = vmatpush1.bf16.msra.mxu0 0
    %2145 = vmatprep.subr.bf16.mxu0 0
    %2146 = vmatpush1.bf16.msra.mxu0 0
    %2147 = vmatprep.subr.bf16.mxu0 0
    %2148 = vmatpush1.bf16.msra.mxu0 0
    %2149 = vmatprep.mubr.bf16.mxu0 0
    %2150 = vmatmul.mubr.bf16.gmra.mrb[0].mxu0 %v2112
    %v2151 = vpop.f32.mrb[0].mxu0
    %v2152 = vadd.f32 0.0, %v2151
    %v2153 = vpop.f32.mrb[0].mxu0
    %v2154 = vpop.f32.mrb[0].mxu0
    %v2155 = vpop.f32.mrb[0].mxu0
    %2156 = vdwg.mxu0
    %v2157 = vpack.c.bf16 %v2152, %v2104
    %v2159 = vsel %vm217, %v2157, 0
    %v2162 = vsel %vm344, %v1622, 0
    %2164 = vmatprep.subr.bf16.mxu0 0
    %2165 = vmatpush1.bf16.msra.mxu0 %v2162
    %2166 = vmatprep.subr.bf16.mxu0 0
    %2167 = vmatpush1.bf16.msra.mxu0 0
    %2168 = vmatprep.subr.bf16.mxu0 0
    %2169 = vmatpush1.bf16.msra.mxu0 0
    %2170 = vmatprep.subr.bf16.mxu0 0
    %2171 = vmatpush1.bf16.msra.mxu0 0
    %2172 = vmatprep.subr.bf16.mxu0 0
    %2173 = vmatpush1.bf16.msra.mxu0 0
    %2174 = vmatprep.subr.bf16.mxu0 0
    %2175 = vmatpush1.bf16.msra.mxu0 0
    %2176 = vmatprep.subr.bf16.mxu0 0
    %2177 = vmatpush1.bf16.msra.mxu0 0
    %2178 = vmatprep.subr.bf16.mxu0 0
    %2179 = vmatpush1.bf16.msra.mxu0 0
    %2180 = vmatprep.subr.bf16.mxu0 0
    %2181 = vmatpush1.bf16.msra.mxu0 0
    %2182 = vmatprep.subr.bf16.mxu0 0
    %2183 = vmatpush1.bf16.msra.mxu0 0
    %2184 = vmatprep.subr.bf16.mxu0 0
    %2185 = vmatpush1.bf16.msra.mxu0 0
    %2186 = vmatprep.subr.bf16.mxu0 0
    %2187 = vmatpush1.bf16.msra.mxu0 0
    %2188 = vmatprep.subr.bf16.mxu0 0
    %2189 = vmatpush1.bf16.msra.mxu0 0
    %2190 = vmatprep.subr.bf16.mxu0 0
    %2191 = vmatpush1.bf16.msra.mxu0 0
    %2192 = vmatprep.subr.bf16.mxu0 0
    %2193 = vmatpush1.bf16.msra.mxu0 0
    %2194 = vmatprep.subr.bf16.mxu0 0
    %2195 = vmatpush1.bf16.msra.mxu0 0
    %2196 = vmatprep.mubr.bf16.mxu0 0
    %2197 = vmatmul.mubr.bf16.gmra.mrb[0].mxu0 %v2159
    %v2198 = vpop.f32.mrb[0].mxu0
    %v2199 = vadd.f32 0.0, %v2198
    %v2200 = vpop.f32.mrb[0].mxu0
    %v2201 = vpop.f32.mrb[0].mxu0
    %v2202 = vadd.f32 0.0, %v2201
    %v2203 = vpop.f32.mrb[0].mxu0
    %2204 = vdwg.mxu0
    %v2206 = vsel %vm217, %v1934, 0
    %v2209 = vsel %vm344, %v1621, 0
    %2211 = vmatprep.subr.bf16.mxu0 0
    %2212 = vmatpush1.bf16.msra.mxu0 %v2209
    %2213 = vmatprep.subr.bf16.mxu0 0
    %2214 = vmatpush1.bf16.msra.mxu0 0
    %2215 = vmatprep.subr.bf16.mxu0 0
    %2216 = vmatpush1.bf16.msra.mxu0 0
    %2217 = vmatprep.subr.bf16.mxu0 0
    %2218 = vmatpush1.bf16.msra.mxu0 0
    %2219 = vmatprep.subr.bf16.mxu0 0
    %2220 = vmatpush1.bf16.msra.mxu0 0
    %2221 = vmatprep.subr.bf16.mxu0 0
    %2222 = vmatpush1.bf16.msra.mxu0 0
    %2223 = vmatprep.subr.bf16.mxu0 0
    %2224 = vmatpush1.bf16.msra.mxu0 0
    %2225 = vmatprep.subr.bf16.mxu0 0
    %2226 = vmatpush1.bf16.msra.mxu0 0
    %2227 = vmatprep.subr.bf16.mxu0 0
    %2228 = vmatpush1.bf16.msra.mxu0 0
    %2229 = vmatprep.subr.bf16.mxu0 0
    %2230 = vmatpush1.bf16.msra.mxu0 0
    %2231 = vmatprep.subr.bf16.mxu0 0
    %2232 = vmatpush1.bf16.msra.mxu0 0
    %2233 = vmatprep.subr.bf16.mxu0 0
    %2234 = vmatpush1.bf16.msra.mxu0 0
    %2235 = vmatprep.subr.bf16.mxu0 0
    %2236 = vmatpush1.bf16.msra.mxu0 0
    %2237 = vmatprep.subr.bf16.mxu0 0
    %2238 = vmatpush1.bf16.msra.mxu0 0
    %2239 = vmatprep.subr.bf16.mxu0 0
    %2240 = vmatpush1.bf16.msra.mxu0 0
    %2241 = vmatprep.subr.bf16.mxu0 0
    %2242 = vmatpush1.bf16.msra.mxu0 0
    %2243 = vmatprep.mubr.bf16.mxu0 0
    %2244 = vmatmul.mubr.bf16.gmra.mrb[0].mxu0 %v2206
    %v2245 = vpop.f32.mrb[0].mxu0
    %v2246 = vadd.f32 %v2199, %v2245
    %v2247 = vpop.f32.mrb[0].mxu0
    %v2248 = vpop.f32.mrb[0].mxu0
    %v2249 = vadd.f32 %v2202, %v2248
    %v2250 = vpop.f32.mrb[0].mxu0
    %2251 = vdwg.mxu0
    %2252 = vrot.lane.b32.xlu0 %v1712, 112
    %v2253 = vpop.permute.xlu0 %2252
    %2254 = vrot.lane.b32.xlu0 %v1712, 80
    %v2255 = vpop.permute.xlu0 %2254
    %v2257 = vsel %vm217, %v2253, 0
    %v2260 = vsel %vm217, %v2255, 0
    %2262 = vmatprep.subr.bf16.mxu0 0
    %2263 = vmatpush1.bf16.xpose.msra.mxu0 %v2260
    %2264 = vmatprep.subr.bf16.mxu0 0
    %2265 = vmatpush1.bf16.xpose.msra.mxu0 0
    %2266 = vmatprep.subr.bf16.mxu0 0
    %2267 = vmatpush1.bf16.xpose.msra.mxu0 0
    %2268 = vmatprep.subr.bf16.mxu0 0
    %2269 = vmatpush1.bf16.xpose.msra.mxu0 0
    %2270 = vmatprep.subr.bf16.mxu0 0
    %2271 = vmatpush1.bf16.xpose.msra.mxu0 0
    %2272 = vmatprep.subr.bf16.mxu0 0
    %2273 = vmatpush1.bf16.xpose.msra.mxu0 0
    %2274 = vmatprep.subr.bf16.mxu0 0
    %2275 = vmatpush1.bf16.xpose.msra.mxu0 0
    %2276 = vmatprep.subr.bf16.mxu0 0
    %2277 = vmatpush1.bf16.xpose.msra.mxu0 0
    %2278 = vmatprep.subr.bf16.mxu0 0
    %2279 = vmatpush1.bf16.xpose.msra.mxu0 0
    %2280 = vmatprep.subr.bf16.mxu0 0
    %2281 = vmatpush1.bf16.xpose.msra.mxu0 0
    %2282 = vmatprep.subr.bf16.mxu0 0
    %2283 = vmatpush1.bf16.xpose.msra.mxu0 0
    %2284 = vmatprep.subr.bf16.mxu0 0
    %2285 = vmatpush1.bf16.xpose.msra.mxu0 0
    %2286 = vmatprep.subr.bf16.mxu0 0
    %2287 = vmatpush1.bf16.xpose.msra.mxu0 0
    %2288 = vmatprep.subr.bf16.mxu0 0
    %2289 = vmatpush1.bf16.xpose.msra.mxu0 0
    %2290 = vmatprep.subr.bf16.mxu0 0
    %2291 = vmatpush1.bf16.xpose.msra.mxu0 0
    %2292 = vmatprep.subr.bf16.mxu0 0
    %2293 = vmatpush1.bf16.xpose.msra.mxu0 0
    %2294 = vmatprep.mubr.bf16.mxu0 0
    %2295 = vmatmul.mubr.bf16.gmra.mrb[0].mxu0 %v2257
    %v2296 = vpop.f32.mrb[0].mxu0
    %v2297 = vadd.f32 0.0, %v2296
    %v2298 = vpop.f32.mrb[0].mxu0
    %v2299 = vpop.f32.mrb[0].mxu0
    %v2300 = vpop.f32.mrb[0].mxu0
    %2301 = vdwg.mxu0
    %2302 = vrot.lane.b32.xlu0 %v1713, 112
    %v2303 = vpop.permute.xlu0 %2302
    %2304 = vrot.lane.b32.xlu0 %v1713, 80
    %v2305 = vpop.permute.xlu0 %2304
    %v2307 = vsel %vm217, %v2303, 0
    %v2310 = vsel %vm217, %v2305, 0
    %2312 = vmatprep.subr.bf16.mxu0 0
    %2313 = vmatpush1.bf16.xpose.msra.mxu0 %v2310
    %2314 = vmatprep.subr.bf16.mxu0 0
    %2315 = vmatpush1.bf16.xpose.msra.mxu0 0
    %2316 = vmatprep.subr.bf16.mxu0 0
    %2317 = vmatpush1.bf16.xpose.msra.mxu0 0
    %2318 = vmatprep.subr.bf16.mxu0 0
    %2319 = vmatpush1.bf16.xpose.msra.mxu0 0
    %2320 = vmatprep.subr.bf16.mxu0 0
    %2321 = vmatpush1.bf16.xpose.msra.mxu0 0
    %2322 = vmatprep.subr.bf16.mxu0 0
    %2323 = vmatpush1.bf16.xpose.msra.mxu0 0
    %2324 = vmatprep.subr.bf16.mxu0 0
    %2325 = vmatpush1.bf16.xpose.msra.mxu0 0
    %2326 = vmatprep.subr.bf16.mxu0 0
    %2327 = vmatpush1.bf16.xpose.msra.mxu0 0
    %2328 = vmatprep.subr.bf16.mxu0 0
    %2329 = vmatpush1.bf16.xpose.msra.mxu0 0
    %2330 = vmatprep.subr.bf16.mxu0 0
    %2331 = vmatpush1.bf16.xpose.msra.mxu0 0
    %2332 = vmatprep.subr.bf16.mxu0 0
    %2333 = vmatpush1.bf16.xpose.msra.mxu0 0
    %2334 = vmatprep.subr.bf16.mxu0 0
    %2335 = vmatpush1.bf16.xpose.msra.mxu0 0
    %2336 = vmatprep.subr.bf16.mxu0 0
    %2337 = vmatpush1.bf16.xpose.msra.mxu0 0
    %2338 = vmatprep.subr.bf16.mxu0 0
    %2339 = vmatpush1.bf16.xpose.msra.mxu0 0
    %2340 = vmatprep.subr.bf16.mxu0 0
    %2341 = vmatpush1.bf16.xpose.msra.mxu0 0
    %2342 = vmatprep.subr.bf16.mxu0 0
    %2343 = vmatpush1.bf16.xpose.msra.mxu0 0
    %2344 = vmatprep.mubr.bf16.mxu0 0
    %2345 = vmatmul.mubr.bf16.gmra.mrb[0].mxu0 %v2307
    %v2346 = vpop.f32.mrb[0].mxu0
    %v2347 = vadd.f32 0.0, %v2346
    %v2348 = vpop.f32.mrb[0].mxu0
    %v2349 = vpop.f32.mrb[0].mxu0
    %v2350 = vpop.f32.mrb[0].mxu0
    %2351 = vdwg.mxu0
    %v2352 = vmul.f32 %v2297, 0.35355338
    %v2353 = vmul.f32 %v2347, 0.35355338
    %v2354 = vsel %vm217, %v2352, -inf
    %2355 = vmax.xlane.f32.xlu0 %v2354
    %v2356 = vpop.xlane.xlu0 %2355
    %v2357 = vsel %vm217, %v2353, -inf
    %2358 = vmax.xlane.f32.xlu0 %v2357
    %v2359 = vpop.xlane.xlu0 %2358
    %v2360 = vsub.f32 %v2352, %v2356
    %v2361 = vsub.f32 %v2353, %v2359
    %v2362 = vmul.f32 %v2360, 1.442695
    %v2363 = vpow.pop %v2362
    %v2364 = vmul.f32 %v2361, 1.442695
    %v2365 = vpow.pop %v2364
    %v2366 = vsel %vm217, %v2363, 0.0
    %2367 = vadd.xlane.f32.xlu0 %v2366
    %v2368 = vpop.xlane.xlu0 %2367
    %v2369 = vsel %vm217, %v2365, 0.0
    %2370 = vadd.xlane.f32.xlu0 %v2369
    %v2371 = vpop.xlane.xlu0 %2370
    %v2372 = vrcp.pop %v2368
    %v2373 = vrcp.pop %v2371
    %v2374 = vmul.f32 %v2363, %v2372
    %v2375 = vmul.f32 %v2365, %v2373
    %v2376 = vpack.c.bf16 %v2374, %v2374
    %v2377 = vpack.c.bf16 %v2375, %v2375
    %2378 = vrot.lane.b32.xlu0 %v1712, 48
    %v2379 = vpop.permute.xlu0 %2378
    %v2381 = vsel %vm217, %v2376, 0
    %v2384 = vsel %vm344, %v2379, 0
    %2386 = vmatprep.subr.bf16.mxu0 0
    %2387 = vmatpush1.bf16.msra.mxu0 %v2384
    %2388 = vmatprep.subr.bf16.mxu0 0
    %2389 = vmatpush1.bf16.msra.mxu0 0
    %2390 = vmatprep.subr.bf16.mxu0 0
    %2391 = vmatpush1.bf16.msra.mxu0 0
    %2392 = vmatprep.subr.bf16.mxu0 0
    %2393 = vmatpush1.bf16.msra.mxu0 0
    %2394 = vmatprep.subr.bf16.mxu0 0
    %2395 = vmatpush1.bf16.msra.mxu0 0
    %2396 = vmatprep.subr.bf16.mxu0 0
    %2397 = vmatpush1.bf16.msra.mxu0 0
    %2398 = vmatprep.subr.bf16.mxu0 0
    %2399 = vmatpush1.bf16.msra.mxu0 0
    %2400 = vmatprep.subr.bf16.mxu0 0
    %2401 = vmatpush1.bf16.msra.mxu0 0
    %2402 = vmatprep.subr.bf16.mxu0 0
    %2403 = vmatpush1.bf16.msra.mxu0 0
    %2404 = vmatprep.subr.bf16.mxu0 0
    %2405 = vmatpush1.bf16.msra.mxu0 0
    %2406 = vmatprep.subr.bf16.mxu0 0
    %2407 = vmatpush1.bf16.msra.mxu0 0
    %2408 = vmatprep.subr.bf16.mxu0 0
    %2409 = vmatpush1.bf16.msra.mxu0 0
    %2410 = vmatprep.subr.bf16.mxu0 0
    %2411 = vmatpush1.bf16.msra.mxu0 0
    %2412 = vmatprep.subr.bf16.mxu0 0
    %2413 = vmatpush1.bf16.msra.mxu0 0
    %2414 = vmatprep.subr.bf16.mxu0 0
    %2415 = vmatpush1.bf16.msra.mxu0 0
    %2416 = vmatprep.subr.bf16.mxu0 0
    %2417 = vmatpush1.bf16.msra.mxu0 0
    %2418 = vmatprep.mubr.bf16.mxu0 0
    %2419 = vmatmul.mubr.bf16.gmra.mrb[0].mxu0 %v2381
    %v2420 = vpop.f32.mrb[0].mxu0
    %v2421 = vadd.f32 0.0, %v2420
    %v2422 = vpop.f32.mrb[0].mxu0
    %v2423 = vpop.f32.mrb[0].mxu0
    %v2424 = vpop.f32.mrb[0].mxu0
    %2425 = vdwg.mxu0
    %2426 = vrot.lane.b32.xlu0 %v1713, 48
    %v2427 = vpop.permute.xlu0 %2426
    %v2429 = vsel %vm217, %v2377, 0
    %v2432 = vsel %vm344, %v2427, 0
    %2434 = vmatprep.subr.bf16.mxu0 0
    %2435 = vmatpush1.bf16.msra.mxu0 %v2432
    %2436 = vmatprep.subr.bf16.mxu0 0
    %2437 = vmatpush1.bf16.msra.mxu0 0
    %2438 = vmatprep.subr.bf16.mxu0 0
    %2439 = vmatpush1.bf16.msra.mxu0 0
    %2440 = vmatprep.subr.bf16.mxu0 0
    %2441 = vmatpush1.bf16.msra.mxu0 0
    %2442 = vmatprep.subr.bf16.mxu0 0
    %2443 = vmatpush1.bf16.msra.mxu0 0
    %2444 = vmatprep.subr.bf16.mxu0 0
    %2445 = vmatpush1.bf16.msra.mxu0 0
    %2446 = vmatprep.subr.bf16.mxu0 0
    %2447 = vmatpush1.bf16.msra.mxu0 0
    %2448 = vmatprep.subr.bf16.mxu0 0
    %2449 = vmatpush1.bf16.msra.mxu0 0
    %2450 = vmatprep.subr.bf16.mxu0 0
    %2451 = vmatpush1.bf16.msra.mxu0 0
    %2452 = vmatprep.subr.bf16.mxu0 0
    %2453 = vmatpush1.bf16.msra.mxu0 0
    %2454 = vmatprep.subr.bf16.mxu0 0
    %2455 = vmatpush1.bf16.msra.mxu0 0
    %2456 = vmatprep.subr.bf16.mxu0 0
    %2457 = vmatpush1.bf16.msra.mxu0 0
    %2458 = vmatprep.subr.bf16.mxu0 0
    %2459 = vmatpush1.bf16.msra.mxu0 0
    %2460 = vmatprep.subr.bf16.mxu0 0
    %2461 = vmatpush1.bf16.msra.mxu0 0
    %2462 = vmatprep.subr.bf16.mxu0 0
    %2463 = vmatpush1.bf16.msra.mxu0 0
    %2464 = vmatprep.subr.bf16.mxu0 0
    %2465 = vmatpush1.bf16.msra.mxu0 0
    %2466 = vmatprep.mubr.bf16.mxu0 0
    %2467 = vmatmul.mubr.bf16.gmra.mrb[0].mxu0 %v2429
    %v2468 = vpop.f32.mrb[0].mxu0
    %v2469 = vadd.f32 0.0, %v2468
    %v2470 = vpop.f32.mrb[0].mxu0
    %v2471 = vpop.f32.mrb[0].mxu0
    %v2472 = vpop.f32.mrb[0].mxu0
    %2473 = vdwg.mxu0
    %v2474 = vpack.c.bf16 %v2469, %v2421
    %v2476 = vsel %vm217, %v2474, 0
    %v2479 = vsel %vm344, %v1623, 0
    %2481 = vmatprep.subr.bf16.mxu0 0
    %2482 = vmatpush1.bf16.msra.mxu0 %v2479
    %2483 = vmatprep.subr.bf16.mxu0 0
    %2484 = vmatpush1.bf16.msra.mxu0 0
    %2485 = vmatprep.subr.bf16.mxu0 0
    %2486 = vmatpush1.bf16.msra.mxu0 0
    %2487 = vmatprep.subr.bf16.mxu0 0
    %2488 = vmatpush1.bf16.msra.mxu0 0
    %2489 = vmatprep.subr.bf16.mxu0 0
    %2490 = vmatpush1.bf16.msra.mxu0 0
    %2491 = vmatprep.subr.bf16.mxu0 0
    %2492 = vmatpush1.bf16.msra.mxu0 0
    %2493 = vmatprep.subr.bf16.mxu0 0
    %2494 = vmatpush1.bf16.msra.mxu0 0
    %2495 = vmatprep.subr.bf16.mxu0 0
    %2496 = vmatpush1.bf16.msra.mxu0 0
    %2497 = vmatprep.subr.bf16.mxu0 0
    %2498 = vmatpush1.bf16.msra.mxu0 0
    %2499 = vmatprep.subr.bf16.mxu0 0
    %2500 = vmatpush1.bf16.msra.mxu0 0
    %2501 = vmatprep.subr.bf16.mxu0 0
    %2502 = vmatpush1.bf16.msra.mxu0 0
    %2503 = vmatprep.subr.bf16.mxu0 0
    %2504 = vmatpush1.bf16.msra.mxu0 0
    %2505 = vmatprep.subr.bf16.mxu0 0
    %2506 = vmatpush1.bf16.msra.mxu0 0
    %2507 = vmatprep.subr.bf16.mxu0 0
    %2508 = vmatpush1.bf16.msra.mxu0 0
    %2509 = vmatprep.subr.bf16.mxu0 0
    %2510 = vmatpush1.bf16.msra.mxu0 0
    %2511 = vmatprep.subr.bf16.mxu0 0
    %2512 = vmatpush1.bf16.msra.mxu0 0
    %2513 = vmatprep.mubr.bf16.mxu0 0
    %2514 = vmatmul.mubr.bf16.gmra.mrb[0].mxu0 %v2476
    %v2515 = vpop.f32.mrb[0].mxu0
    %v2516 = vadd.f32 0.0, %v2515
    %v2517 = vpop.f32.mrb[0].mxu0
    %v2518 = vpop.f32.mrb[0].mxu0
    %v2519 = vadd.f32 0.0, %v2518
    %v2520 = vpop.f32.mrb[0].mxu0
    %2521 = vdwg.mxu0
    %v2522 = vadd.f32 %v2246, %v2516
    %v2523 = vadd.f32 %v2249, %v2519
    %2524 = vrot.lane.b32.xlu0 %v1712, 104
    %v2525 = vpop.permute.xlu0 %2524
    %2526 = vrot.lane.b32.xlu0 %v1712, 72
    %v2527 = vpop.permute.xlu0 %2526
    %v2529 = vsel %vm217, %v2525, 0
    %v2532 = vsel %vm217, %v2527, 0
    %2534 = vmatprep.subr.bf16.mxu0 0
    %2535 = vmatpush1.bf16.xpose.msra.mxu0 %v2532
    %2536 = vmatprep.subr.bf16.mxu0 0
    %2537 = vmatpush1.bf16.xpose.msra.mxu0 0
    %2538 = vmatprep.subr.bf16.mxu0 0
    %2539 = vmatpush1.bf16.xpose.msra.mxu0 0
    %2540 = vmatprep.subr.bf16.mxu0 0
    %2541 = vmatpush1.bf16.xpose.msra.mxu0 0
    %2542 = vmatprep.subr.bf16.mxu0 0
    %2543 = vmatpush1.bf16.xpose.msra.mxu0 0
    %2544 = vmatprep.subr.bf16.mxu0 0
    %2545 = vmatpush1.bf16.xpose.msra.mxu0 0
    %2546 = vmatprep.subr.bf16.mxu0 0
    %2547 = vmatpush1.bf16.xpose.msra.mxu0 0
    %2548 = vmatprep.subr.bf16.mxu0 0
    %2549 = vmatpush1.bf16.xpose.msra.mxu0 0
    %2550 = vmatprep.subr.bf16.mxu0 0
    %2551 = vmatpush1.bf16.xpose.msra.mxu0 0
    %2552 = vmatprep.subr.bf16.mxu0 0
    %2553 = vmatpush1.bf16.xpose.msra.mxu0 0
    %2554 = vmatprep.subr.bf16.mxu0 0
    %2555 = vmatpush1.bf16.xpose.msra.mxu0 0
    %2556 = vmatprep.subr.bf16.mxu0 0
    %2557 = vmatpush1.bf16.xpose.msra.mxu0 0
    %2558 = vmatprep.subr.bf16.mxu0 0
    %2559 = vmatpush1.bf16.xpose.msra.mxu0 0
    %2560 = vmatprep.subr.bf16.mxu0 0
    %2561 = vmatpush1.bf16.xpose.msra.mxu0 0
    %2562 = vmatprep.subr.bf16.mxu0 0
    %2563 = vmatpush1.bf16.xpose.msra.mxu0 0
    %2564 = vmatprep.subr.bf16.mxu0 0
    %2565 = vmatpush1.bf16.xpose.msra.mxu0 0
    %2566 = vmatprep.mubr.bf16.mxu0 0
    %2567 = vmatmul.mubr.bf16.gmra.mrb[0].mxu0 %v2529
    %v2568 = vpop.f32.mrb[0].mxu0
    %v2569 = vadd.f32 0.0, %v2568
    %v2570 = vpop.f32.mrb[0].mxu0
    %v2571 = vpop.f32.mrb[0].mxu0
    %v2572 = vpop.f32.mrb[0].mxu0
    %2573 = vdwg.mxu0
    %2574 = vrot.lane.b32.xlu0 %v1713, 104
    %v2575 = vpop.permute.xlu0 %2574
    %2576 = vrot.lane.b32.xlu0 %v1713, 72
    %v2577 = vpop.permute.xlu0 %2576
    %v2579 = vsel %vm217, %v2575, 0
    %v2582 = vsel %vm217, %v2577, 0
    %2584 = vmatprep.subr.bf16.mxu0 0
    %2585 = vmatpush1.bf16.xpose.msra.mxu0 %v2582
    %2586 = vmatprep.subr.bf16.mxu0 0
    %2587 = vmatpush1.bf16.xpose.msra.mxu0 0
    %2588 = vmatprep.subr.bf16.mxu0 0
    %2589 = vmatpush1.bf16.xpose.msra.mxu0 0
    %2590 = vmatprep.subr.bf16.mxu0 0
    %2591 = vmatpush1.bf16.xpose.msra.mxu0 0
    %2592 = vmatprep.subr.bf16.mxu0 0
    %2593 = vmatpush1.bf16.xpose.msra.mxu0 0
    %2594 = vmatprep.subr.bf16.mxu0 0
    %2595 = vmatpush1.bf16.xpose.msra.mxu0 0
    %2596 = vmatprep.subr.bf16.mxu0 0
    %2597 = vmatpush1.bf16.xpose.msra.mxu0 0
    %2598 = vmatprep.subr.bf16.mxu0 0
    %2599 = vmatpush1.bf16.xpose.msra.mxu0 0
    %2600 = vmatprep.subr.bf16.mxu0 0
    %2601 = vmatpush1.bf16.xpose.msra.mxu0 0
    %2602 = vmatprep.subr.bf16.mxu0 0
    %2603 = vmatpush1.bf16.xpose.msra.mxu0 0
    %2604 = vmatprep.subr.bf16.mxu0 0
    %2605 = vmatpush1.bf16.xpose.msra.mxu0 0
    %2606 = vmatprep.subr.bf16.mxu0 0
    %2607 = vmatpush1.bf16.xpose.msra.mxu0 0
    %2608 = vmatprep.subr.bf16.mxu0 0
    %2609 = vmatpush1.bf16.xpose.msra.mxu0 0
    %2610 = vmatprep.subr.bf16.mxu0 0
    %2611 = vmatpush1.bf16.xpose.msra.mxu0 0
    %2612 = vmatprep.subr.bf16.mxu0 0
    %2613 = vmatpush1.bf16.xpose.msra.mxu0 0
    %2614 = vmatprep.subr.bf16.mxu0 0
    %2615 = vmatpush1.bf16.xpose.msra.mxu0 0
    %2616 = vmatprep.mubr.bf16.mxu0 0
    %2617 = vmatmul.mubr.bf16.gmra.mrb[0].mxu0 %v2579
    %v2618 = vpop.f32.mrb[0].mxu0
    %v2619 = vadd.f32 0.0, %v2618
    %v2620 = vpop.f32.mrb[0].mxu0
    %v2621 = vpop.f32.mrb[0].mxu0
    %v2622 = vpop.f32.mrb[0].mxu0
    %2623 = vdwg.mxu0
    %v2624 = vmul.f32 %v2569, 0.35355338
    %v2625 = vmul.f32 %v2619, 0.35355338
    %v2626 = vsel %vm217, %v2624, -inf
    %2627 = vmax.xlane.f32.xlu0 %v2626
    %v2628 = vpop.xlane.xlu0 %2627
    %v2629 = vsel %vm217, %v2625, -inf
    %2630 = vmax.xlane.f32.xlu0 %v2629
    %v2631 = vpop.xlane.xlu0 %2630
    %v2632 = vsub.f32 %v2624, %v2628
    %v2633 = vsub.f32 %v2625, %v2631
    %v2634 = vmul.f32 %v2632, 1.442695
    %v2635 = vpow.pop %v2634
    %v2636 = vmul.f32 %v2633, 1.442695
    %v2637 = vpow.pop %v2636
    %v2638 = vsel %vm217, %v2635, 0.0
    %2639 = vadd.xlane.f32.xlu0 %v2638
    %v2640 = vpop.xlane.xlu0 %2639
    %v2641 = vsel %vm217, %v2637, 0.0
    %2642 = vadd.xlane.f32.xlu0 %v2641
    %v2643 = vpop.xlane.xlu0 %2642
    %v2644 = vrcp.pop %v2640
    %v2645 = vrcp.pop %v2643
    %v2646 = vmul.f32 %v2635, %v2644
    %v2647 = vmul.f32 %v2637, %v2645
    %v2648 = vpack.c.bf16 %v2646, %v2646
    %v2649 = vpack.c.bf16 %v2647, %v2647
    %2650 = vrot.lane.b32.xlu0 %v1712, 40
    %v2651 = vpop.permute.xlu0 %2650
    %v2653 = vsel %vm217, %v2648, 0
    %v2656 = vsel %vm344, %v2651, 0
    %2658 = vmatprep.subr.bf16.mxu0 0
    %2659 = vmatpush1.bf16.msra.mxu0 %v2656
    %2660 = vmatprep.subr.bf16.mxu0 0
    %2661 = vmatpush1.bf16.msra.mxu0 0
    %2662 = vmatprep.subr.bf16.mxu0 0
    %2663 = vmatpush1.bf16.msra.mxu0 0
    %2664 = vmatprep.subr.bf16.mxu0 0
    %2665 = vmatpush1.bf16.msra.mxu0 0
    %2666 = vmatprep.subr.bf16.mxu0 0
    %2667 = vmatpush1.bf16.msra.mxu0 0
    %2668 = vmatprep.subr.bf16.mxu0 0
    %2669 = vmatpush1.bf16.msra.mxu0 0
    %2670 = vmatprep.subr.bf16.mxu0 0
    %2671 = vmatpush1.bf16.msra.mxu0 0
    %2672 = vmatprep.subr.bf16.mxu0 0
    %2673 = vmatpush1.bf16.msra.mxu0 0
    %2674 = vmatprep.subr.bf16.mxu0 0
    %2675 = vmatpush1.bf16.msra.mxu0 0
    %2676 = vmatprep.subr.bf16.mxu0 0
    %2677 = vmatpush1.bf16.msra.mxu0 0
    %2678 = vmatprep.subr.bf16.mxu0 0
    %2679 = vmatpush1.bf16.msra.mxu0 0
    %2680 = vmatprep.subr.bf16.mxu0 0
    %2681 = vmatpush1.bf16.msra.mxu0 0
    %2682 = vmatprep.subr.bf16.mxu0 0
    %2683 = vmatpush1.bf16.msra.mxu0 0
    %2684 = vmatprep.subr.bf16.mxu0 0
    %2685 = vmatpush1.bf16.msra.mxu0 0
    %2686 = vmatprep.subr.bf16.mxu0 0
    %2687 = vmatpush1.bf16.msra.mxu0 0
    %2688 = vmatprep.subr.bf16.mxu0 0
    %2689 = vmatpush1.bf16.msra.mxu0 0
    %2690 = vmatprep.mubr.bf16.mxu0 0
    %2691 = vmatmul.mubr.bf16.gmra.mrb[0].mxu0 %v2653
    %v2692 = vpop.f32.mrb[0].mxu0
    %v2693 = vadd.f32 0.0, %v2692
    %v2694 = vpop.f32.mrb[0].mxu0
    %v2695 = vpop.f32.mrb[0].mxu0
    %v2696 = vpop.f32.mrb[0].mxu0
    %2697 = vdwg.mxu0
    %2698 = vrot.lane.b32.xlu0 %v1713, 40
    %v2699 = vpop.permute.xlu0 %2698
    %v2701 = vsel %vm217, %v2649, 0
    %v2704 = vsel %vm344, %v2699, 0
    %2706 = vmatprep.subr.bf16.mxu0 0
    %2707 = vmatpush1.bf16.msra.mxu0 %v2704
    %2708 = vmatprep.subr.bf16.mxu0 0
    %2709 = vmatpush1.bf16.msra.mxu0 0
    %2710 = vmatprep.subr.bf16.mxu0 0
    %2711 = vmatpush1.bf16.msra.mxu0 0
    %2712 = vmatprep.subr.bf16.mxu0 0
    %2713 = vmatpush1.bf16.msra.mxu0 0
    %2714 = vmatprep.subr.bf16.mxu0 0
    %2715 = vmatpush1.bf16.msra.mxu0 0
    %2716 = vmatprep.subr.bf16.mxu0 0
    %2717 = vmatpush1.bf16.msra.mxu0 0
    %2718 = vmatprep.subr.bf16.mxu0 0
    %2719 = vmatpush1.bf16.msra.mxu0 0
    %2720 = vmatprep.subr.bf16.mxu0 0
    %2721 = vmatpush1.bf16.msra.mxu0 0
    %2722 = vmatprep.subr.bf16.mxu0 0
    %2723 = vmatpush1.bf16.msra.mxu0 0
    %2724 = vmatprep.subr.bf16.mxu0 0
    %2725 = vmatpush1.bf16.msra.mxu0 0
    %2726 = vmatprep.subr.bf16.mxu0 0
    %2727 = vmatpush1.bf16.msra.mxu0 0
    %2728 = vmatprep.subr.bf16.mxu0 0
    %2729 = vmatpush1.bf16.msra.mxu0 0
    %2730 = vmatprep.subr.bf16.mxu0 0
    %2731 = vmatpush1.bf16.msra.mxu0 0
    %2732 = vmatprep.subr.bf16.mxu0 0
    %2733 = vmatpush1.bf16.msra.mxu0 0
    %2734 = vmatprep.subr.bf16.mxu0 0
    %2735 = vmatpush1.bf16.msra.mxu0 0
    %2736 = vmatprep.subr.bf16.mxu0 0
    %2737 = vmatpush1.bf16.msra.mxu0 0
    %2738 = vmatprep.mubr.bf16.mxu0 0
    %2739 = vmatmul.mubr.bf16.gmra.mrb[0].mxu0 %v2701
    %v2740 = vpop.f32.mrb[0].mxu0
    %v2741 = vadd.f32 0.0, %v2740
    %v2742 = vpop.f32.mrb[0].mxu0
    %v2743 = vpop.f32.mrb[0].mxu0
    %v2744 = vpop.f32.mrb[0].mxu0
    %2745 = vdwg.mxu0
    %v2746 = vpack.c.bf16 %v2741, %v2693
    %v2748 = vsel %vm217, %v2746, 0
    %v2751 = vsel %vm344, %v1624, 0
    %2753 = vmatprep.subr.bf16.mxu0 0
    %2754 = vmatpush1.bf16.msra.mxu0 %v2751
    %2755 = vmatprep.subr.bf16.mxu0 0
    %2756 = vmatpush1.bf16.msra.mxu0 0
    %2757 = vmatprep.subr.bf16.mxu0 0
    %2758 = vmatpush1.bf16.msra.mxu0 0
    %2759 = vmatprep.subr.bf16.mxu0 0
    %2760 = vmatpush1.bf16.msra.mxu0 0
    %2761 = vmatprep.subr.bf16.mxu0 0
    %2762 = vmatpush1.bf16.msra.mxu0 0
    %2763 = vmatprep.subr.bf16.mxu0 0
    %2764 = vmatpush1.bf16.msra.mxu0 0
    %2765 = vmatprep.subr.bf16.mxu0 0
    %2766 = vmatpush1.bf16.msra.mxu0 0
    %2767 = vmatprep.subr.bf16.mxu0 0
    %2768 = vmatpush1.bf16.msra.mxu0 0
    %2769 = vmatprep.subr.bf16.mxu0 0
    %2770 = vmatpush1.bf16.msra.mxu0 0
    %2771 = vmatprep.subr.bf16.mxu0 0
    %2772 = vmatpush1.bf16.msra.mxu0 0
    %2773 = vmatprep.subr.bf16.mxu0 0
    %2774 = vmatpush1.bf16.msra.mxu0 0
    %2775 = vmatprep.subr.bf16.mxu0 0
    %2776 = vmatpush1.bf16.msra.mxu0 0
    %2777 = vmatprep.subr.bf16.mxu0 0
    %2778 = vmatpush1.bf16.msra.mxu0 0
    %2779 = vmatprep.subr.bf16.mxu0 0
    %2780 = vmatpush1.bf16.msra.mxu0 0
    %2781 = vmatprep.subr.bf16.mxu0 0
    %2782 = vmatpush1.bf16.msra.mxu0 0
    %2783 = vmatprep.subr.bf16.mxu0 0
    %2784 = vmatpush1.bf16.msra.mxu0 0
    %2785 = vmatprep.mubr.bf16.mxu0 0
    %2786 = vmatmul.mubr.bf16.gmra.mrb[0].mxu0 %v2748
    %v2787 = vpop.f32.mrb[0].mxu0
    %v2788 = vadd.f32 0.0, %v2787
    %v2789 = vpop.f32.mrb[0].mxu0
    %v2790 = vpop.f32.mrb[0].mxu0
    %v2791 = vadd.f32 0.0, %v2790
    %v2792 = vpop.f32.mrb[0].mxu0
    %2793 = vdwg.mxu0
    %v2794 = vadd.f32 %v2522, %v2788
    %v2795 = vadd.f32 %v2523, %v2791
    %s2796 = scalar_lea.vmem %s6, 1
    %v2797 = vld [vmem:[%s2796] sm:$0x1]
    %v2799 = vlaneseq
    %v2800 = vshrl.u32 %v2799, 7
    %v2801 = vsub.s32 0, %v2800
    %v2802 = vrot.slane %v2797, %v2801
    %v2804 = vadd.f32 %v2794, %v2802
    %v2805 = vadd.f32 %v2795, %v2802
    %v2806 = vadd.f32 %v1613, %v2804
    %v2807 = vadd.f32 %v1614, %v2805
    %s2808 = scalar_lea.vmem %s7, 1
    %v2809 = vld [vmem:[%s2808] sm:$0x1]
    %s2810 = scalar_lea.vmem %s8, 1
    %v2811 = vld [vmem:[%s2810] sm:$0x1]
    %v2812 = vsel %vm167, %v2806, 0.0
    %2813 = vadd.xlane.f32.xlu0 %v2812
    %v2814 = vpop.xlane.xlu0 %2813
    %v2815 = vsel %vm167, %v2807, 0.0
    %2816 = vadd.xlane.f32.xlu0 %v2815
    %v2817 = vpop.xlane.xlu0 %2816
    %v2818 = vmul.f32 %v2814, %v1317
    %v2819 = vmul.f32 %v2817, %v1317
    %v2820 = vsub.f32 %v2806, %v2818
    %v2821 = vsub.f32 %v2807, %v2819
    %v2822 = vmul.f32 %v2820, %v2820
    %v2823 = vmul.f32 %v2821, %v2821
    %v2824 = vsel %vm167, %v2822, 0.0
    %2825 = vadd.xlane.f32.xlu0 %v2824
    %v2826 = vpop.xlane.xlu0 %2825
    %v2827 = vsel %vm167, %v2823, 0.0
    %2828 = vadd.xlane.f32.xlu0 %v2827
    %v2829 = vpop.xlane.xlu0 %2828
    %v2830 = vmul.f32 %v2826, %v1317
    %v2831 = vmul.f32 %v2829, %v1317
    %v2832 = vadd.f32 %v2830, 1e-05
    %v2833 = vadd.f32 %v2831, 1e-05
    %v2834 = vrsqrt.pop %v2832
    %v2835 = vrsqrt.pop %v2833
    %v2836 = vmul.f32 %v2820, %v2834
    %v2837 = vmul.f32 %v2821, %v2835
    %v2839 = vlaneseq
    %v2840 = vshrl.u32 %v2839, 7
    %v2841 = vsub.s32 0, %v2840
    %v2842 = vrot.slane %v2809, %v2841
    %v2844 = vmul.f32 %v2836, %v2842
    %v2845 = vmul.f32 %v2837, %v2842
    %v2847 = vlaneseq
    %v2848 = vshrl.u32 %v2847, 7
    %v2849 = vsub.s32 0, %v2848
    %v2850 = vrot.slane %v2811, %v2849
    %v2852 = vadd.f32 %v2844, %v2850
    %v2853 = vadd.f32 %v2845, %v2850
    %v2854 = vpack.c.bf16 %v2853, %v2852
    %s2855 = scalar_lea.vmem %s10, 1
    %v2856 = vld [vmem:[%s2855] sm:$0x1]
    %v2858 = vlaneseq
    %v2859 = vshrl.u32 %v2858, 7
    %v2860 = vsub.s32 0, %v2859
    %v2861 = vrot.slane %v2856, %v2860
    %v2867 = vunpack.c.l.b16 %v1626
    %v2868 = vunpack.c.l.b16 %v1627
    %v2869 = vunpack.c.l.b16 %v1628
    %v2870 = vunpack.c.l.b16 %v1629
    %v2871 = vpack.c.b16 %v2868, %v2867
    %v2872 = vpack.c.b16 %v2870, %v2869
    %v2876 = vsel %vm167, %v2854, 0
    %2878 = vmatprep.subr.bf16.mxu0 0
    %2879 = vmatpush1.bf16.msra.mxu0 %v2871
    %2880 = vmatprep.subr.bf16.mxu0 0
    %2881 = vmatpush1.bf16.msra.mxu0 %v2872
    %2882 = vmatprep.subr.bf16.mxu0 0
    %2883 = vmatpush1.bf16.msra.mxu0 0
    %2884 = vmatprep.subr.bf16.mxu0 0
    %2885 = vmatpush1.bf16.msra.mxu0 0
    %2886 = vmatprep.subr.bf16.mxu0 0
    %2887 = vmatpush1.bf16.msra.mxu0 0
    %2888 = vmatprep.subr.bf16.mxu0 0
    %2889 = vmatpush1.bf16.msra.mxu0 0
    %2890 = vmatprep.subr.bf16.mxu0 0
    %2891 = vmatpush1.bf16.msra.mxu0 0
    %2892 = vmatprep.subr.bf16.mxu0 0
    %2893 = vmatpush1.bf16.msra.mxu0 0
    %2894 = vmatprep.subr.bf16.mxu0 0
    %2895 = vmatpush1.bf16.msra.mxu0 0
    %2896 = vmatprep.subr.bf16.mxu0 0
    %2897 = vmatpush1.bf16.msra.mxu0 0
    %2898 = vmatprep.subr.bf16.mxu0 0
    %2899 = vmatpush1.bf16.msra.mxu0 0
    %2900 = vmatprep.subr.bf16.mxu0 0
    %2901 = vmatpush1.bf16.msra.mxu0 0
    %2902 = vmatprep.subr.bf16.mxu0 0
    %2903 = vmatpush1.bf16.msra.mxu0 0
    %2904 = vmatprep.subr.bf16.mxu0 0
    %2905 = vmatpush1.bf16.msra.mxu0 0
    %2906 = vmatprep.subr.bf16.mxu0 0
    %2907 = vmatpush1.bf16.msra.mxu0 0
    %2908 = vmatprep.subr.bf16.mxu0 0
    %2909 = vmatpush1.bf16.msra.mxu0 0
    %2910 = vmatprep.mubr.bf16.mxu0 0
    %2911 = vmatmul.mubr.bf16.gmra.mrb[0].mxu0 %v2876
    %v2912 = vpop.f32.mrb[0].mxu0
    %v2913 = vadd.f32 %v2861, %v2912
    %v2914 = vpop.f32.mrb[0].mxu0
    %v2915 = vpop.f32.mrb[0].mxu0
    %v2916 = vadd.f32 %v2861, %v2915
    %v2917 = vpop.f32.mrb[0].mxu0
    %2918 = vdwg.mxu0
    %v2919 = vmul.f32 %v2913, 0.5
    %v2920 = vmul.f32 %v2916, 0.5
    %v2921 = vmul.f32 %v2913, 0.70710677
    %v2922 = vmul.f32 %v2916, 0.70710677
    %v2923 = vand.u32 2147483647, %v2921
    %v2924 = vand.u32 2147483647, %v2922
    %v2925 = vmul.f32 %v2923, 0.3275911
    %v2926 = vmul.f32 %v2924, 0.3275911
    %v2927 = vadd.f32 %v2925, 1.0
    %v2928 = vadd.f32 %v2926, 1.0
    %v2929 = vrcp.pop %v2927
    %v2930 = vmul.f32 1.0, %v2929
    %v2931 = vrcp.pop %v2928
    %v2932 = vmul.f32 1.0, %v2931
    %v2933 = vmul.f32 %v2930, 1.0614054
    %v2934 = vmul.f32 %v2932, 1.0614054
    %v2935 = vadd.f32 %v2933, -1.4531521
    %v2936 = vadd.f32 %v2934, -1.4531521
    %v2937 = vmul.f32 %v2930, %v2935
    %v2938 = vmul.f32 %v2932, %v2936
    %v2939 = vadd.f32 %v2937, 1.4214138
    %v2940 = vadd.f32 %v2938, 1.4214138
    %v2941 = vmul.f32 %v2930, %v2939
    %v2942 = vmul.f32 %v2932, %v2940
    %v2943 = vadd.f32 %v2941, -0.28449672
    %v2944 = vadd.f32 %v2942, -0.28449672
    %v2945 = vmul.f32 %v2930, %v2943
    %v2946 = vmul.f32 %v2932, %v2944
    %v2947 = vadd.f32 %v2945, 0.2548296
    %v2948 = vadd.f32 %v2946, 0.2548296
    %v2949 = vmul.f32 %v2930, %v2947
    %v2950 = vmul.f32 %v2932, %v2948
    %v2951 = vsub.f32 0.0, %v2923
    %v2952 = vsub.f32 0.0, %v2924
    %v2953 = vmul.f32 %v2951, %v2923
    %v2954 = vmul.f32 %v2952, %v2924
    %v2955 = vmul.f32 %v2953, 1.442695
    %v2956 = vpow.pop %v2955
    %v2957 = vmul.f32 %v2954, 1.442695
    %v2958 = vpow.pop %v2957
    %v2959 = vmul.f32 %v2949, %v2956
    %v2960 = vmul.f32 %v2950, %v2958
    %v2961 = vsub.f32 1.0, %v2959
    %v2962 = vsub.f32 1.0, %v2960
    %vm2963 = vcmp.lt.f32.partialorder %v2921, 0.0
    %vm2964 = vcmp.lt.f32.partialorder %v2922, 0.0
    %v2965 = vsub.f32 0.0, %v2961
    %v2966 = vsub.f32 0.0, %v2962
    %v2967 = vsel %vm2963, %v2965, %v2961
    %v2968 = vsel %vm2964, %v2966, %v2962
    %v2969 = vadd.f32 %v2967, 1.0
    %v2970 = vadd.f32 %v2968, 1.0
    %v2971 = vmul.f32 %v2919, %v2969
    %v2972 = vmul.f32 %v2920, %v2970
    %v2973 = vpack.c.bf16 %v2972, %v2971
    %s2974 = scalar_lea.vmem %s12, 1
    %v2975 = vld [vmem:[%s2974] sm:$0x1]
    %v2977 = vlaneseq
    %v2978 = vshrl.u32 %v2977, 7
    %v2979 = vsub.s32 0, %v2978
    %v2980 = vrot.slane %v2975, %v2979
    %v2998 = vunpack.c.l.b16 %v1631
    %v2999 = vunpack.c.l.b16 %v1632
    %v3000 = vunpack.c.l.b16 %v1633
    %v3001 = vunpack.c.l.b16 %v1634
    %v3002 = vunpack.c.l.b16 %v1635
    %v3003 = vunpack.c.l.b16 %v1636
    %v3004 = vunpack.c.l.b16 %v1637
    %v3005 = vunpack.c.l.b16 %v1638
    %v3006 = vunpack.c.l.b16 %v1639
    %v3007 = vunpack.c.l.b16 %v1640
    %v3008 = vunpack.c.l.b16 %v1641
    %v3009 = vunpack.c.l.b16 %v1642
    %v3010 = vunpack.c.l.b16 %v1643
    %v3011 = vunpack.c.l.b16 %v1644
    %v3012 = vunpack.c.l.b16 %v1645
    %v3013 = vunpack.c.l.b16 %v1646
    %v3014 = vpack.c.b16 %v2999, %v2998
    %v3015 = vpack.c.b16 %v3001, %v3000
    %v3016 = vpack.c.b16 %v3003, %v3002
    %v3017 = vpack.c.b16 %v3005, %v3004
    %v3018 = vpack.c.b16 %v3007, %v3006
    %v3019 = vpack.c.b16 %v3009, %v3008
    %v3020 = vpack.c.b16 %v3011, %v3010
    %v3021 = vpack.c.b16 %v3013, %v3012
    %3030 = vmatprep.subr.bf16.mxu0 0
    %3031 = vmatpush1.bf16.msra.mxu0 %v3014
    %3032 = vmatprep.subr.bf16.mxu0 0
    %3033 = vmatpush1.bf16.msra.mxu0 %v3015
    %3034 = vmatprep.subr.bf16.mxu0 0
    %3035 = vmatpush1.bf16.msra.mxu0 %v3016
    %3036 = vmatprep.subr.bf16.mxu0 0
    %3037 = vmatpush1.bf16.msra.mxu0 %v3017
    %3038 = vmatprep.subr.bf16.mxu0 0
    %3039 = vmatpush1.bf16.msra.mxu0 %v3018
    %3040 = vmatprep.subr.bf16.mxu0 0
    %3041 = vmatpush1.bf16.msra.mxu0 %v3019
    %3042 = vmatprep.subr.bf16.mxu0 0
    %3043 = vmatpush1.bf16.msra.mxu0 %v3020
    %3044 = vmatprep.subr.bf16.mxu0 0
    %3045 = vmatpush1.bf16.msra.mxu0 %v3021
    %3046 = vmatprep.subr.bf16.mxu0 0
    %3047 = vmatpush1.bf16.msra.mxu0 0
    %3048 = vmatprep.subr.bf16.mxu0 0
    %3049 = vmatpush1.bf16.msra.mxu0 0
    %3050 = vmatprep.subr.bf16.mxu0 0
    %3051 = vmatpush1.bf16.msra.mxu0 0
    %3052 = vmatprep.subr.bf16.mxu0 0
    %3053 = vmatpush1.bf16.msra.mxu0 0
    %3054 = vmatprep.subr.bf16.mxu0 0
    %3055 = vmatpush1.bf16.msra.mxu0 0
    %3056 = vmatprep.subr.bf16.mxu0 0
    %3057 = vmatpush1.bf16.msra.mxu0 0
    %3058 = vmatprep.subr.bf16.mxu0 0
    %3059 = vmatpush1.bf16.msra.mxu0 0
    %3060 = vmatprep.subr.bf16.mxu0 0
    %3061 = vmatpush1.bf16.msra.mxu0 0
    %3062 = vmatprep.mubr.bf16.mxu0 0
    %3063 = vmatmul.mubr.bf16.gmra.mrb[0].mxu0 %v2973
    %v3064 = vpop.f32.mrb[0].mxu0
    %v3065 = vadd.f32 %v2980, %v3064
    %v3066 = vpop.f32.mrb[0].mxu0
    %v3067 = vpop.f32.mrb[0].mxu0
    %v3068 = vadd.f32 %v2980, %v3067
    %v3069 = vpop.f32.mrb[0].mxu0
    %3070 = vdwg.mxu0
    %v3071 = vadd.f32 %v2852, %v3065
    %v3072 = vadd.f32 %v2853, %v3068
    %s3073 = scalar_lea.vmem %s13, 1
    %v3074 = vld [vmem:[%s3073] sm:$0x1]
    %s3075 = scalar_lea.vmem %s14, 1
    %v3076 = vld [vmem:[%s3075] sm:$0x1]
    %v3077 = vsel %vm167, %v3071, 0.0
    %3078 = vadd.xlane.f32.xlu0 %v3077
    %v3079 = vpop.xlane.xlu0 %3078
    %v3080 = vsel %vm167, %v3072, 0.0
    %3081 = vadd.xlane.f32.xlu0 %v3080
    %v3082 = vpop.xlane.xlu0 %3081
    %v3083 = vmul.f32 %v3079, %v1317
    %v3084 = vmul.f32 %v3082, %v1317
    %v3085 = vsub.f32 %v3071, %v3083
    %v3086 = vsub.f32 %v3072, %v3084
    %v3087 = vmul.f32 %v3085, %v3085
    %v3088 = vmul.f32 %v3086, %v3086
    %v3089 = vsel %vm167, %v3087, 0.0
    %3090 = vadd.xlane.f32.xlu0 %v3089
    %v3091 = vpop.xlane.xlu0 %3090
    %v3092 = vsel %vm167, %v3088, 0.0
    %3093 = vadd.xlane.f32.xlu0 %v3092
    %v3094 = vpop.xlane.xlu0 %3093
    %v3095 = vmul.f32 %v3091, %v1317
    %v3096 = vmul.f32 %v3094, %v1317
    %v3097 = vadd.f32 %v3095, 1e-05
    %v3098 = vadd.f32 %v3096, 1e-05
    %v3099 = vrsqrt.pop %v3097
    %v3100 = vrsqrt.pop %v3098
    %v3101 = vmul.f32 %v3085, %v3099
    %v3102 = vmul.f32 %v3086, %v3100
    %v3104 = vlaneseq
    %v3105 = vshrl.u32 %v3104, 7
    %v3106 = vsub.s32 0, %v3105
    %v3107 = vrot.slane %v3074, %v3106
    %v3109 = vmul.f32 %v3101, %v3107
    %v3110 = vmul.f32 %v3102, %v3107
    %v3112 = vlaneseq
    %v3113 = vshrl.u32 %v3112, 7
    %v3114 = vsub.s32 0, %v3113
    %v3115 = vrot.slane %v3076, %v3114
    %v3117 = vadd.f32 %v3109, %v3115
    %v3118 = vadd.f32 %v3110, %v3115
    %v3119 = vpack.c.bf16 %v3118, %v3117
    %v3120 = vld [vmem:[%s15] sm:$0xf]
    %v3121 = vld [vmem:[%s15 + $0x4] sm:$0xf]
    %v3122 = vld [vmem:[%s15 + $0x8] sm:$0xf]
    %v3123 = vld [vmem:[%s15 + $0xc] sm:$0xf]
    %v3124 = vld [vmem:[%s16] sm:$0x1]
    %v3126 = vlaneseq
    %v3127 = vshrl.u32 %v3126, 7
    %v3128 = vsub.s32 0, %v3127
    %v3129 = vrot.slane %v3124, %v3128
    %v3135 = vunpack.c.l.b16 %v3120
    %v3136 = vunpack.c.l.b16 %v3121
    %v3137 = vunpack.c.l.b16 %v3122
    %v3138 = vunpack.c.l.b16 %v3123
    %v3139 = vpack.c.b16 %v3136, %v3135
    %v3140 = vpack.c.b16 %v3138, %v3137
    %v3144 = vsel %vm167, %v3119, 0
    %3146 = vmatprep.subr.bf16.mxu0 0
    %3147 = vmatpush1.bf16.msra.mxu0 %v3139
    %3148 = vmatprep.subr.bf16.mxu0 0
    %3149 = vmatpush1.bf16.msra.mxu0 %v3140
    %3150 = vmatprep.subr.bf16.mxu0 0
    %3151 = vmatpush1.bf16.msra.mxu0 0
    %3152 = vmatprep.subr.bf16.mxu0 0
    %3153 = vmatpush1.bf16.msra.mxu0 0
    %3154 = vmatprep.subr.bf16.mxu0 0
    %3155 = vmatpush1.bf16.msra.mxu0 0
    %3156 = vmatprep.subr.bf16.mxu0 0
    %3157 = vmatpush1.bf16.msra.mxu0 0
    %3158 = vmatprep.subr.bf16.mxu0 0
    %3159 = vmatpush1.bf16.msra.mxu0 0
    %3160 = vmatprep.subr.bf16.mxu0 0
    %3161 = vmatpush1.bf16.msra.mxu0 0
    %3162 = vmatprep.subr.bf16.mxu0 0
    %3163 = vmatpush1.bf16.msra.mxu0 0
    %3164 = vmatprep.subr.bf16.mxu0 0
    %3165 = vmatpush1.bf16.msra.mxu0 0
    %3166 = vmatprep.subr.bf16.mxu0 0
    %3167 = vmatpush1.bf16.msra.mxu0 0
    %3168 = vmatprep.subr.bf16.mxu0 0
    %3169 = vmatpush1.bf16.msra.mxu0 0
    %3170 = vmatprep.subr.bf16.mxu0 0
    %3171 = vmatpush1.bf16.msra.mxu0 0
    %3172 = vmatprep.subr.bf16.mxu0 0
    %3173 = vmatpush1.bf16.msra.mxu0 0
    %3174 = vmatprep.subr.bf16.mxu0 0
    %3175 = vmatpush1.bf16.msra.mxu0 0
    %3176 = vmatprep.subr.bf16.mxu0 0
    %3177 = vmatpush1.bf16.msra.mxu0 0
    %3178 = vmatprep.mubr.bf16.mxu0 0
    %3179 = vmatmul.mubr.bf16.gmra.mrb[0].mxu0 %v3144
    %v3180 = vpop.f32.mrb[0].mxu0
    %v3181 = vadd.f32 %v3129, %v3180
    %v3182 = vpop.f32.mrb[0].mxu0
    %v3183 = vpop.f32.mrb[0].mxu0
    %v3184 = vadd.f32 %v3129, %v3183
    %v3185 = vpop.f32.mrb[0].mxu0
    %3186 = vdwg.mxu0
    %v3187 = vmul.f32 %v3181, 0.5
    %v3188 = vmul.f32 %v3184, 0.5
    %v3189 = vmul.f32 %v3181, 0.70710677
    %v3190 = vmul.f32 %v3184, 0.70710677
    %v3191 = vand.u32 2147483647, %v3189
    %v3192 = vand.u32 2147483647, %v3190
    %v3193 = vmul.f32 %v3191, 0.3275911
    %v3194 = vmul.f32 %v3192, 0.3275911
    %v3195 = vadd.f32 %v3193, 1.0
    %v3196 = vadd.f32 %v3194, 1.0
    %v3197 = vrcp.pop %v3195
    %v3198 = vmul.f32 1.0, %v3197
    %v3199 = vrcp.pop %v3196
    %v3200 = vmul.f32 1.0, %v3199
    %v3201 = vmul.f32 %v3198, 1.0614054
    %v3202 = vmul.f32 %v3200, 1.0614054
    %v3203 = vadd.f32 %v3201, -1.4531521
    %v3204 = vadd.f32 %v3202, -1.4531521
    %v3205 = vmul.f32 %v3198, %v3203
    %v3206 = vmul.f32 %v3200, %v3204
    %v3207 = vadd.f32 %v3205, 1.4214138
    %v3208 = vadd.f32 %v3206, 1.4214138
    %v3209 = vmul.f32 %v3198, %v3207
    %v3210 = vmul.f32 %v3200, %v3208
    %v3211 = vadd.f32 %v3209, -0.28449672
    %v3212 = vadd.f32 %v3210, -0.28449672
    %v3213 = vmul.f32 %v3198, %v3211
    %v3214 = vmul.f32 %v3200, %v3212
    %v3215 = vadd.f32 %v3213, 0.2548296
    %v3216 = vadd.f32 %v3214, 0.2548296
    %v3217 = vmul.f32 %v3198, %v3215
    %v3218 = vmul.f32 %v3200, %v3216
    %v3219 = vsub.f32 0.0, %v3191
    %v3220 = vsub.f32 0.0, %v3192
    %v3221 = vmul.f32 %v3219, %v3191
    %v3222 = vmul.f32 %v3220, %v3192
    %v3223 = vmul.f32 %v3221, 1.442695
    %v3224 = vpow.pop %v3223
    %v3225 = vmul.f32 %v3222, 1.442695
    %v3226 = vpow.pop %v3225
    %v3227 = vmul.f32 %v3217, %v3224
    %v3228 = vmul.f32 %v3218, %v3226
    %v3229 = vsub.f32 1.0, %v3227
    %v3230 = vsub.f32 1.0, %v3228
    %vm3231 = vcmp.lt.f32.partialorder %v3189, 0.0
    %vm3232 = vcmp.lt.f32.partialorder %v3190, 0.0
    %v3233 = vsub.f32 0.0, %v3229
    %v3234 = vsub.f32 0.0, %v3230
    %v3235 = vsel %vm3231, %v3233, %v3229
    %v3236 = vsel %vm3232, %v3234, %v3230
    %v3237 = vadd.f32 %v3235, 1.0
    %v3238 = vadd.f32 %v3236, 1.0
    %v3239 = vmul.f32 %v3187, %v3237
    %v3240 = vmul.f32 %v3188, %v3238
    %v3241 = vld [vmem:[%s17] sm:$0x1]
    %v3243 = vlaneseq
    %v3244 = vshrl.u32 %v3243, 7
    %v3245 = vsub.s32 0, %v3244
    %v3246 = vrot.slane %v3241, %v3245
    %v3248 = vmul.f32 %v3239, %v3246
    %v3249 = vmul.f32 %v3240, %v3246
    %v3250 = vsel %vm74, %v3248, 0.0
    %3251 = vadd.xlane.f32.xlu0 %v3250
    %v3252 = vpop.xlane.xlu0 %3251
    %v3253 = vsel %vm74, %v3249, 0.0
    %3254 = vadd.xlane.f32.xlu0 %v3253
    %v3255 = vpop.xlane.xlu0 %3254
    %v3256 = vrot.slane %v3252, 4
    %v3257 = vmax.f32 %v3252, %v3256
    %v3258 = vrot.slane %v3257, 2
    %v3259 = vmax.f32 %v3257, %v3258
    %v3260 = vrot.slane %v3259, 1
    %v3261 = vmax.f32 %v3259, %v3260
    %v3262 = vrot.slane %v3255, 4
    %v3263 = vmax.f32 %v3255, %v3262
    %v3264 = vrot.slane %v3263, 2
    %v3265 = vmax.f32 %v3263, %v3264
    %v3266 = vrot.slane %v3265, 1
    %v3267 = vmax.f32 %v3265, %v3266
    %v3268 = vsub.f32 %v3252, %v3261
    %v3269 = vsub.f32 %v3255, %v3267
    %v3270 = vmul.f32 %v3268, 1.442695
    %v3271 = vpow.pop %v3270
    %v3272 = vmul.f32 %v3269, 1.442695
    %v3273 = vpow.pop %v3272
    %v3274 = vrot.slane %v3271, 4
    %v3275 = vadd.f32 %v3271, %v3274
    %v3276 = vrot.slane %v3275, 2
    %v3277 = vadd.f32 %v3275, %v3276
    %v3278 = vrot.slane %v3277, 1
    %v3279 = vadd.f32 %v3277, %v3278
    %v3280 = vrot.slane %v3273, 4
    %v3281 = vadd.f32 %v3273, %v3280
    %v3282 = vrot.slane %v3281, 2
    %v3283 = vadd.f32 %v3281, %v3282
    %v3284 = vrot.slane %v3283, 1
    %v3285 = vadd.f32 %v3283, %v3284
    %v3286 = vrcp.pop %v3279
    %v3287 = vrcp.pop %v3285
    %v3288 = vmul.f32 %v3271, %v3286
    %v3289 = vmul.f32 %v3273, %v3287
    %v3290 = vmul.f32 %v3117, %v3288
    %v3291 = vmul.f32 %v3118, %v3289
    %v3292 = vsel %vm167, %v3290, 0.0
    %v3293 = vrot.slane %v3292, 4
    %v3294 = vadd.f32 %v3292, %v3293
    %v3295 = vrot.slane %v3294, 2
    %v3296 = vadd.f32 %v3294, %v3295
    %v3297 = vrot.slane %v3296, 1
    %v3298 = vadd.f32 %v3296, %v3297
    %v3299 = vsel %vm167, %v3291, 0.0
    %v3300 = vrot.slane %v3299, 4
    %v3301 = vadd.f32 %v3299, %v3300
    %v3302 = vrot.slane %v3301, 2
    %v3303 = vadd.f32 %v3301, %v3302
    %v3304 = vrot.slane %v3303, 1
    %v3305 = vadd.f32 %v3303, %v3304
    %vm3308 = vcmask 1041409
    %v3309 = vsel %vm3308, %v3305, %v3298
    %vm3311 = vcmask 254976
    %3312 = vst.msk [vmem:[#allocation2] sm:$0x3] %vm3311, %v3309
    // Predicated region
    $region74: #{tpu_custom_call.1} parent=1 // pred_check
      _
    $region75: #{tpu_custom_call.1} parent=1 // pred_check_branch
      %3314 = sbr.rel (0) target = $region77
    $region76: #{tpu_custom_call.1} parent=1 // pred_region
      %s3316 = ssub.s32 32, 32
      %3317 = vsyncadd [#allocation3], %s3316
      %s3319 = sshll.u32 [#allocation2], 4
      %s3320 = int_to_ptr.vmem [resolvable:$true] %s3319
      %3322 = dma.vmem_to_hbm [thread:$0]  %s3320, 32, %s18, [#allocation3]
    $region77: #{tpu_custom_call.1} parent=1 // pred_fallthru
      _
    // Predicated region
    $region78: #{tpu_custom_call.1} parent=1 // pred_check
      _
    $region79: #{tpu_custom_call.1} parent=1 // pred_check_branch
      %3324 = sbr.rel (0) target = $region81
    $region80: #{tpu_custom_call.1} parent=1 // pred_region
      %3325 = dma.done [#allocation3], 32
    $region81: #{tpu_custom_call.1} parent=1 // pred_fallthru
      _
    %3326 = vsyncpa [#allocation3], 1

</llo_original>
